<compile_context>
chip_gen: v6e
topology: v6e:2x2x1
jax: 0.10.0
libtpu: 0.0.40
codegen_flags: <defaults>
</compile_context>

<pallas_src>
import functools
import math

import jax
import jax.numpy as jnp
from jax.experimental import pallas as pl
from jax.experimental.pallas import tpu as pltpu


# ---------------------------------------------------------------------------
# Kernel: fused 3x3 / stride-2 / pad-1 conv + bias + ReLU.
# ---------------------------------------------------------------------------
def _conv3x3_s2_relu_kernel(x_ref, xh_ref, w_ref, b_ref, o_ref):
    """One (batch, output-row-block) step.

    x_ref : (1, TOH, 2, OW+1, 2C) bf16  pair-split padded input rows for this
                                        row block (row pair p, phase q ==
                                        padded row 2p+q; lane = 2*C packs the
                                        two column phases of a column pair).
    xh_ref: (1, 1,   2, OW+1, 2C) bf16  +1 row-pair halo (next row pair).
    w_ref : (6, 2C, Cout) bf16          weights, t = kh*2 + kwp; kwp=1 has its
                                        phase-1 half zeroed.
    b_ref : (1, Cout) f32               bias.
    o_ref : (1, TOH, OW, Cout) bf16     output row block.
    """
    _, TOH, _, OWp1, C2 = x_ref.shape
    OW = OWp1 - 1
    Cout = o_ref.shape[-1]
    M = TOH * OW

    acc = jnp.zeros((M, Cout), jnp.float32)
    for kh in range(3):
        for kwp in range(2):           # column super-pixel offset 0 / 1
            t = kh * 2 + kwp
            if kh < 2:
                # row pair oh, phase kh -- fully inside the main block.
                lhs = x_ref[0, :, kh, pl.ds(kwp, OW), :]          # (TOH, OW, 2C)
            else:
                # kh == 2: row pair oh+1, phase 0 -> last row comes from halo.
                lo = xh_ref[0, :, 0, pl.ds(kwp, OW), :]           # (1, OW, 2C)
                if TOH > 1:
                    hi = x_ref[0, pl.ds(1, TOH - 1), 0, pl.ds(kwp, OW), :]
                    lhs = jnp.concatenate([hi, lo], axis=0)       # (TOH, OW, 2C)
                else:
                    lhs = lo
            # Reshape is a view whenever OW % 8 == 0 (all big stages).
            acc += jnp.dot(lhs.reshape(M, C2), w_ref[t],
                           preferred_element_type=jnp.float32)

    acc = jnp.maximum(acc + b_ref[...], 0.0)                      # bias + ReLU
    o_ref[0] = acc.reshape(TOH, OW, Cout).astype(o_ref.dtype)


def _pick_row_tile(oh, ow, target_rows=1024):
    """Largest divisor of `oh` with toh*ow <= target_rows; prefer >=2 blocks."""
    divisors = [d for d in range(1, oh + 1) if oh % d == 0]
    toh = max([d for d in divisors if d * ow <= target_rows] or [1])
    if oh // toh < 2 and oh > 1:       # keep both TensorCores busy at batch 1
        toh = max([d for d in divisors if d <= oh // 2] or [1])
    return toh


def _tile_bytes(rows, cols, itemsize):
    """Padded VMEM bytes of a (rows, cols) minor tile."""
    sub = 32 // itemsize               # sublane packing: 8 f32 / 16 bf16
    rows_p = ((rows + sub - 1) // sub) * sub
    cols_p = ((cols + 127) // 128) * 128
    return rows_p * cols_p * itemsize


def conv3x3_s2_relu(x_nhwc, w2, bias):
    """NHWC 3x3 conv, stride 2, pad 1, + bias + ReLU (bf16 in/out, f32 accum)."""
    B, H, W, C = x_nhwc.shape
    assert H % 2 == 0 and W % 2 == 0, "even spatial dims expected"
    OH, OW = H // 2, W // 2
    C2 = 2 * C
    Cout = w2.shape[-1]
    assert w2.shape == (6, C2, Cout)

    # 1-px zero halo (only the top/left border is actually read) followed by a
    # *free* reshape into the pair-split view -- no gather/transpose restage.
    xpad = jnp.pad(x_nhwc, ((0, 0), (1, 1), (1, 1), (0, 0)))
    xv = xpad.reshape(B, OH + 1, 2, OW + 1, C2)

    toh = _pick_row_tile(OH, OW)
    nrb = OH // toh

    # VMEM budget: double-buffered inputs/outputs + weights + f32 accumulator.
    blk_in = toh * 2 * _tile_bytes(OW + 1, C2, 2)
    blk_halo = 2 * _tile_bytes(OW + 1, C2, 2)
    blk_w = 6 * _tile_bytes(C2, Cout, 2)
    blk_out = toh * _tile_bytes(OW, Cout, 2)
    blk_acc = _tile_bytes(toh * OW, Cout, 4)
    est = 2 * (blk_in + blk_halo) + blk_w + 2 * blk_out + 2 * blk_acc
    vmem_limit = int(min(64 * 2**20, max(32 * 2**20, 3 * est)))

    flops = 2 * B * OH * OW * 9 * C * Cout
    bytes_accessed = (xv.size * 2 + w2.size * 2 + bias.size * 4
                      + B * OH * OW * Cout * 2)

    return pl.pallas_call(
        _conv3x3_s2_relu_kernel,
        out_shape=jax.ShapeDtypeStruct((B, OH, OW, Cout), jnp.bfloat16),
        grid_spec=pltpu.PrefetchScalarGridSpec(
            num_scalar_prefetch=0,
            grid=(B, nrb),
            in_specs=[
                # Haloless row-pair window for this row block.
                pl.BlockSpec((1, toh, 2, OW + 1, C2),
                             lambda b, r: (b, r, 0, 0, 0)),
                # +1 row-pair halo (same array, 1-pair blocks).
                pl.BlockSpec((1, 1, 2, OW + 1, C2),
                             lambda b, r: (b, (r + 1) * toh, 0, 0, 0)),
                pl.BlockSpec((6, C2, Cout), lambda b, r: (0, 0, 0)),
                pl.BlockSpec((1, Cout), lambda b, r: (0, 0)),
            ],
            out_specs=pl.BlockSpec((1, toh, OW, Cout),
                                   lambda b, r: (b, r, 0, 0)),
        ),
        compiler_params=pltpu.CompilerParams(
            dimension_semantics=("parallel", "parallel"),
            vmem_limit_bytes=vmem_limit),
        cost_estimate=pl.CostEstimate(
            flops=flops, transcendentals=0, bytes_accessed=bytes_accessed),
    )(xv, xv, w2, bias)


# ---------------------------------------------------------------------------
# Synthetic encoder parameters.
# ---------------------------------------------------------------------------
def init_params(key, in_channels, stage_channels):
    """Returns (kernel-layout bf16 weights, f32 biases, raw f32 params)."""
    kernel_w, kernel_b, raw_params = [], [], []
    cin = in_channels
    for cout in stage_channels:
        key, kw_key, kb_key = jax.random.split(key, 3)
        scale = 1.0 / math.sqrt(3 * 3 * cin)
        w = jax.random.normal(kw_key, (3, 3, cin, cout), jnp.float32) * scale
        b = jax.random.normal(kb_key, (cout,), jnp.float32) * 0.01
        raw_params.append((w, b))

        # Super-pixel weights, t = kh*2 + kwp:
        #   kwp=0 contracts both column phases of pair ow   -> [w[kh,0]; w[kh,1]]
        #   kwp=1 contracts phase 0 of pair ow+1             -> [w[kh,2]; 0]
        w_b = w.astype(jnp.bfloat16)
        zero = jnp.zeros((cin, cout), jnp.bfloat16)
        taps = []
        for kh in range(3):
            taps.append(jnp.concatenate([w_b[kh, 0], w_b[kh, 1]], axis=0))
            taps.append(jnp.concatenate([w_b[kh, 2], zero], axis=0))
        kernel_w.append(jnp.stack(taps, axis=0))          # (6, 2*cin, cout)
        kernel_b.append(b.reshape(1, cout))
        cin = cout
    return tuple(kernel_w), tuple(kernel_b), raw_params


@jax.jit
def timm_universal_encoder_forward(x_nchw, weights, biases):
    """Mirror of TimmUniversalEncoder.forward: returns [x] + stage features (NCHW)."""
    features = [x_nchw]                                  # features[0] is raw input
    h = jnp.transpose(x_nchw, (0, 2, 3, 1)).astype(jnp.bfloat16)   # NCHW -> NHWC
    stage_outs = []
    for w2, b in zip(weights, biases):
        h = conv3x3_s2_relu(h, w2, b)                    # (B, OH, OW, Cout) bf16
        stage_outs.append(h)
    for h_s in stage_outs:                               # NHWC -> NCHW, f32
        features.append(jnp.transpose(h_s, (0, 3, 1, 2)).astype(x_nchw.dtype))
    return features


def reference_forward(x_nchw, raw_params):
    """Pure-JAX reference with the same bf16 rounding points as the kernels."""
    features = [x_nchw]
    h = jnp.transpose(x_nchw, (0, 2, 3, 1)).astype(jnp.bfloat16)
    for w, b in raw_params:
        y = jax.lax.conv_general_dilated(
            h, w.astype(jnp.bfloat16),
            window_strides=(2, 2), padding=((1, 1), (1, 1)),
            dimension_numbers=("NHWC", "HWIO", "NHWC"),
            preferred_element_type=jnp.float32)
        y = jnp.maximum(y + b[None, None, None, :], 0.0)
        h = y.astype(jnp.bfloat16)
        features.append(jnp.transpose(h, (0, 3, 1, 2)).astype(x_nchw.dtype))
    return features


class TimmUniversalEncoderPallas:
    """Structural analogue of TimmUniversalEncoder (synthetic backbone)."""

    def __init__(self, in_channels=3, depth=5, output_stride=32,
                 stage_channels=(8, 16, 32, 64, 64), key=None):
        assert depth == len(stage_channels)
        self._in_channels = in_channels
        self._depth = depth
        self._output_stride = output_stride
        self._out_channels = [in_channels] + list(stage_channels)
        self._stage_channels = tuple(stage_channels)
        if key is None:
            key = jax.random.PRNGKey(0)
        self._weights, self._biases, self._raw_params = init_params(
            key, in_channels, list(stage_channels))

    def forward(self, x_nchw):
        return timm_universal_encoder_forward(x_nchw, self._weights, self._biases)

    @property
    def out_channels(self):
        return self._out_channels

    @property
    def output_stride(self):
        return min(self._output_stride, 2 ** self._depth)


if __name__ == "__main__":
    key = jax.random.PRNGKey(0)
    kx, kp = jax.random.split(key)

    # depth=5 stride-2 stages need >= 32 spatial to reach output_stride 32.
    B, C, H, W = 2, 4, 32, 32
    x = jax.random.normal(kx, (B, C, H, W), jnp.float32)

    encoder = TimmUniversalEncoderPallas(in_channels=C, depth=5,
                                         output_stride=32, key=kp)
    feats = encoder.forward(x)
    feats = [jax.block_until_ready(f) for f in feats]

    expected_shapes = [(B, C, H, W)] + [
        (B, c, H // (2 ** (i + 1)), W // (2 ** (i + 1)))
        for i, c in enumerate(encoder.out_channels[1:])
    ]
    got_shapes = [tuple(map(int, f.shape)) for f in feats]
    assert got_shapes == expected_shapes, (got_shapes, expected_shapes)
    assert all(bool(jnp.all(jnp.isfinite(f))) for f in feats)
    # ReLU outputs must be non-negative (skip features[0] == raw input).
    assert all(bool(jnp.all(f >= 0)) for f in feats[1:])

    # Numerical check vs. a pure-JAX conv reference (same bf16 rounding points).
    ref = reference_forward(x, encoder._raw_params)
    for i, (got, want) in enumerate(zip(feats[1:], ref[1:])):
        max_err = float(jnp.max(jnp.abs(got - want)))
        assert bool(jnp.allclose(got, want, atol=2e-2, rtol=2e-2)), \
            f"stage {i + 1} mismatch (max abs err {max_err})"

    print("KERNEL_OK")
</pallas_src>

<mosaic_0001>
module attributes {stable_mosaic.version = 11 : i64} {
  func.func @_conv3x3_s2_relu_kernel(%arg0: i32, %arg1: i32, %arg2: memref<1x8x2x17x8xbf16, #tpu.memory_space<vmem>>, %arg3: memref<1x1x2x17x8xbf16, #tpu.memory_space<vmem>>, %arg4: memref<6x8x8xbf16, #tpu.memory_space<vmem>>, %arg5: memref<1x8xf32, #tpu.memory_space<vmem>>, %arg6: memref<1x8x16x8xbf16, #tpu.memory_space<vmem>>) attributes {dimension_semantics = [#tpu.dimension_semantics<parallel>, #tpu.dimension_semantics<parallel>], iteration_bounds = array<i64: 2, 2>, scalar_prefetch = 0 : i64, scratch_operands = 0 : i64, tpu.core_type = #tpu.core_type<tc>, window_params = [{transform_indices = @transform_0, window_bounds = array<i64: 1, 8, 2, 17, 8>}, {transform_indices = @transform_1, window_bounds = array<i64: 1, 1, 2, 17, 8>}, {pipeline_mode = #tpu.pipeline_mode<synchronous>, transform_indices = @transform_2, window_bounds = array<i64: 6, 8, 8>}, {pipeline_mode = #tpu.pipeline_mode<synchronous>, transform_indices = @transform_3, window_bounds = array<i64: 1, 8>}, {transform_indices = @transform_4, window_bounds = array<i64: 1, 8, 16, 8>}]} {
    %cst = arith.constant 0.000000e+00 : f32
    %0 = vector.broadcast %cst : f32 to vector<128x8xf32>
    %c0 = arith.constant 0 : index
    %c0_0 = arith.constant 0 : index
    %c0_1 = arith.constant 0 : index
    %c0_2 = arith.constant 0 : index
    %c0_3 = arith.constant 0 : index
    %1 = vector.load %arg2[%c0, %c0_0, %c0_1, %c0_2, %c0_3] : memref<1x8x2x17x8xbf16, #tpu.memory_space<vmem>>, vector<1x8x1x16x8xbf16>
    %2 = vector.shape_cast %1 : vector<1x8x1x16x8xbf16> to vector<8x16x8xbf16>
    %3 = vector.shape_cast %2 : vector<8x16x8xbf16> to vector<128x8xbf16>
    %c0_4 = arith.constant 0 : index
    %c0_5 = arith.constant 0 : index
    %c0_6 = arith.constant 0 : index
    %4 = vector.load %arg4[%c0_4, %c0_5, %c0_6] : memref<6x8x8xbf16, #tpu.memory_space<vmem>>, vector<1x8x8xbf16>
    %5 = vector.shape_cast %4 : vector<1x8x8xbf16> to vector<8x8xbf16>
    %cst_7 = arith.constant dense<0.000000e+00> : vector<128x8xf32>
    %6 = tpu.matmul %3, %5, %cst_7 {dimension_numbers = #tpu.dot_dimension_numbers<[1], [0], [0], [1], [0, 0, 1, 1], [], []>} : vector<128x8xbf16>, vector<8x8xbf16>, vector<128x8xf32> -> vector<128x8xf32>
    %7 = arith.addf %0, %6 : vector<128x8xf32>
    %c0_8 = arith.constant 0 : index
    %c0_9 = arith.constant 0 : index
    %c0_10 = arith.constant 0 : index
    %c1 = arith.constant 1 : index
    %c0_11 = arith.constant 0 : index
    %8 = vector.load %arg2[%c0_8, %c0_9, %c0_10, %c1, %c0_11] : memref<1x8x2x17x8xbf16, #tpu.memory_space<vmem>>, vector<1x8x1x16x8xbf16>
    %9 = vector.shape_cast %8 : vector<1x8x1x16x8xbf16> to vector<8x16x8xbf16>
    %10 = vector.shape_cast %9 : vector<8x16x8xbf16> to vector<128x8xbf16>
    %c1_12 = arith.constant 1 : index
    %c0_13 = arith.constant 0 : index
    %c0_14 = arith.constant 0 : index
    %11 = vector.load %arg4[%c1_12, %c0_13, %c0_14] : memref<6x8x8xbf16, #tpu.memory_space<vmem>>, vector<1x8x8xbf16>
    %12 = vector.shape_cast %11 : vector<1x8x8xbf16> to vector<8x8xbf16>
    %cst_15 = arith.constant dense<0.000000e+00> : vector<128x8xf32>
    %13 = tpu.matmul %10, %12, %cst_15 {dimension_numbers = #tpu.dot_dimension_numbers<[1], [0], [0], [1], [0, 0, 1, 1], [], []>} : vector<128x8xbf16>, vector<8x8xbf16>, vector<128x8xf32> -> vector<128x8xf32>
    %14 = arith.addf %7, %13 : vector<128x8xf32>
    %c0_16 = arith.constant 0 : index
    %c0_17 = arith.constant 0 : index
    %c1_18 = arith.constant 1 : index
    %c0_19 = arith.constant 0 : index
    %c0_20 = arith.constant 0 : index
    %15 = vector.load %arg2[%c0_16, %c0_17, %c1_18, %c0_19, %c0_20] : memref<1x8x2x17x8xbf16, #tpu.memory_space<vmem>>, vector<1x8x1x16x8xbf16>
    %16 = vector.shape_cast %15 : vector<1x8x1x16x8xbf16> to vector<8x16x8xbf16>
    %17 = vector.shape_cast %16 : vector<8x16x8xbf16> to vector<128x8xbf16>
    %c2 = arith.constant 2 : index
    %c0_21 = arith.constant 0 : index
    %c0_22 = arith.constant 0 : index
    %18 = vector.load %arg4[%c2, %c0_21, %c0_22] : memref<6x8x8xbf16, #tpu.memory_space<vmem>>, vector<1x8x8xbf16>
    %19 = vector.shape_cast %18 : vector<1x8x8xbf16> to vector<8x8xbf16>
    %cst_23 = arith.constant dense<0.000000e+00> : vector<128x8xf32>
    %20 = tpu.matmul %17, %19, %cst_23 {dimension_numbers = #tpu.dot_dimension_numbers<[1], [0], [0], [1], [0, 0, 1, 1], [], []>} : vector<128x8xbf16>, vector<8x8xbf16>, vector<128x8xf32> -> vector<128x8xf32>
    %21 = arith.addf %14, %20 : vector<128x8xf32>
    %c0_24 = arith.constant 0 : index
    %c0_25 = arith.constant 0 : index
    %c1_26 = arith.constant 1 : index
    %c1_27 = arith.constant 1 : index
    %c0_28 = arith.constant 0 : index
    %22 = vector.load %arg2[%c0_24, %c0_25, %c1_26, %c1_27, %c0_28] : memref<1x8x2x17x8xbf16, #tpu.memory_space<vmem>>, vector<1x8x1x16x8xbf16>
    %23 = vector.shape_cast %22 : vector<1x8x1x16x8xbf16> to vector<8x16x8xbf16>
    %24 = vector.shape_cast %23 : vector<8x16x8xbf16> to vector<128x8xbf16>
    %c3 = arith.constant 3 : index
    %c0_29 = arith.constant 0 : index
    %c0_30 = arith.constant 0 : index
    %25 = vector.load %arg4[%c3, %c0_29, %c0_30] : memref<6x8x8xbf16, #tpu.memory_space<vmem>>, vector<1x8x8xbf16>
    %26 = vector.shape_cast %25 : vector<1x8x8xbf16> to vector<8x8xbf16>
    %cst_31 = arith.constant dense<0.000000e+00> : vector<128x8xf32>
    %27 = tpu.matmul %24, %26, %cst_31 {dimension_numbers = #tpu.dot_dimension_numbers<[1], [0], [0], [1], [0, 0, 1, 1], [], []>} : vector<128x8xbf16>, vector<8x8xbf16>, vector<128x8xf32> -> vector<128x8xf32>
    %28 = arith.addf %21, %27 : vector<128x8xf32>
    %c0_32 = arith.constant 0 : index
    %c0_33 = arith.constant 0 : index
    %c0_34 = arith.constant 0 : index
    %c0_35 = arith.constant 0 : index
    %c0_36 = arith.constant 0 : index
    %29 = vector.load %arg3[%c0_32, %c0_33, %c0_34, %c0_35, %c0_36] : memref<1x1x2x17x8xbf16, #tpu.memory_space<vmem>>, vector<1x1x1x16x8xbf16>
    %30 = vector.shape_cast %29 : vector<1x1x1x16x8xbf16> to vector<1x16x8xbf16>
    %c0_37 = arith.constant 0 : index
    %c1_38 = arith.constant 1 : index
    %c0_39 = arith.constant 0 : index
    %c0_40 = arith.constant 0 : index
    %c0_41 = arith.constant 0 : index
    %31 = vector.load %arg2[%c0_37, %c1_38, %c0_39, %c0_40, %c0_41] : memref<1x8x2x17x8xbf16, #tpu.memory_space<vmem>>, vector<1x7x1x16x8xbf16>
    %32 = vector.shape_cast %31 : vector<1x7x1x16x8xbf16> to vector<7x16x8xbf16>
    %33 = tpu.concatenate %32, %30 in 0 : vector<7x16x8xbf16>, vector<1x16x8xbf16> -> vector<8x16x8xbf16>
    %34 = vector.shape_cast %33 : vector<8x16x8xbf16> to vector<128x8xbf16>
    %c4 = arith.constant 4 : index
    %c0_42 = arith.constant 0 : index
    %c0_43 = arith.constant 0 : index
    %35 = vector.load %arg4[%c4, %c0_42, %c0_43] : memref<6x8x8xbf16, #tpu.memory_space<vmem>>, vector<1x8x8xbf16>
    %36 = vector.shape_cast %35 : vector<1x8x8xbf16> to vector<8x8xbf16>
    %cst_44 = arith.constant dense<0.000000e+00> : vector<128x8xf32>
    %37 = tpu.matmul %34, %36, %cst_44 {dimension_numbers = #tpu.dot_dimension_numbers<[1], [0], [0], [1], [0, 0, 1, 1], [], []>} : vector<128x8xbf16>, vector<8x8xbf16>, vector<128x8xf32> -> vector<128x8xf32>
    %38 = arith.addf %28, %37 : vector<128x8xf32>
    %c0_45 = arith.constant 0 : index
    %c0_46 = arith.constant 0 : index
    %c0_47 = arith.constant 0 : index
    %c1_48 = arith.constant 1 : index
    %c0_49 = arith.constant 0 : index
    %39 = vector.load %arg3[%c0_45, %c0_46, %c0_47, %c1_48, %c0_49] : memref<1x1x2x17x8xbf16, #tpu.memory_space<vmem>>, vector<1x1x1x16x8xbf16>
    %40 = vector.shape_cast %39 : vector<1x1x1x16x8xbf16> to vector<1x16x8xbf16>
    %c0_50 = arith.constant 0 : index
    %c1_51 = arith.constant 1 : index
    %c0_52 = arith.constant 0 : index
    %c1_53 = arith.constant 1 : index
    %c0_54 = arith.constant 0 : index
    %41 = vector.load %arg2[%c0_50, %c1_51, %c0_52, %c1_53, %c0_54] : memref<1x8x2x17x8xbf16, #tpu.memory_space<vmem>>, vector<1x7x1x16x8xbf16>
    %42 = vector.shape_cast %41 : vector<1x7x1x16x8xbf16> to vector<7x16x8xbf16>
    %43 = tpu.concatenate %42, %40 in 0 : vector<7x16x8xbf16>, vector<1x16x8xbf16> -> vector<8x16x8xbf16>
    %44 = vector.shape_cast %43 : vector<8x16x8xbf16> to vector<128x8xbf16>
    %c5 = arith.constant 5 : index
    %c0_55 = arith.constant 0 : index
    %c0_56 = arith.constant 0 : index
    %45 = vector.load %arg4[%c5, %c0_55, %c0_56] : memref<6x8x8xbf16, #tpu.memory_space<vmem>>, vector<1x8x8xbf16>
    %46 = vector.shape_cast %45 : vector<1x8x8xbf16> to vector<8x8xbf16>
    %cst_57 = arith.constant dense<0.000000e+00> : vector<128x8xf32>
    %47 = tpu.matmul %44, %46, %cst_57 {dimension_numbers = #tpu.dot_dimension_numbers<[1], [0], [0], [1], [0, 0, 1, 1], [], []>} : vector<128x8xbf16>, vector<8x8xbf16>, vector<128x8xf32> -> vector<128x8xf32>
    %48 = arith.addf %38, %47 : vector<128x8xf32>
    %c0_58 = arith.constant 0 : index
    %c0_59 = arith.constant 0 : index
    %49 = vector.load %arg5[%c0_58, %c0_59] : memref<1x8xf32, #tpu.memory_space<vmem>>, vector<1x8xf32>
    %50 = vector.broadcast %49 : vector<1x8xf32> to vector<128x8xf32>
    %51 = arith.addf %48, %50 : vector<128x8xf32>
    %cst_60 = arith.constant 0.000000e+00 : f32
    %52 = vector.broadcast %cst_60 : f32 to vector<128x8xf32>
    %53 = arith.maximumf %51, %52 : vector<128x8xf32>
    %54 = vector.shape_cast %53 : vector<128x8xf32> to vector<8x16x8xf32>
    %55 = arith.truncf %54 : vector<8x16x8xf32> to vector<8x16x8xbf16>
    %c0_61 = arith.constant 0 : index
    %c0_62 = arith.constant 0 : index
    %c0_63 = arith.constant 0 : index
    %c0_64 = arith.constant 0 : index
    %56 = vector.load %arg6[%c0_61, %c0_62, %c0_63, %c0_64] : memref<1x8x16x8xbf16, #tpu.memory_space<vmem>>, vector<1x8x16x8xbf16>
    %57 = vector.shape_cast %56 : vector<1x8x16x8xbf16> to vector<8x16x8xbf16>
    %58 = vector.shape_cast %55 : vector<8x16x8xbf16> to vector<1x8x16x8xbf16>
    tpu.vector_store %arg6[%c0_61, %c0_62, %c0_63, %c0_64], %58 {strides = array<i32>} : memref<1x8x16x8xbf16, #tpu.memory_space<vmem>>, vector<1x8x16x8xbf16>,
    return
  }
  func.func @transform_0(%arg0: i32, %arg1: i32) -> (i32, i32, i32, i32, i32) {
    %c0_i32 = arith.constant 0 : i32
    %c0_i32_0 = arith.constant 0 : i32
    %c0_i32_1 = arith.constant 0 : i32
    %c0_i32_2 = arith.constant 0 : i32
    return %arg0, %arg1, %c0_i32, %c0_i32_0, %c0_i32_1 : i32, i32, i32, i32, i32
  }
  func.func @transform_1(%arg0: i32, %arg1: i32) -> (i32, i32, i32, i32, i32) {
    %c1_i32 = arith.constant 1 : i32
    %0 = arith.addi %arg1, %c1_i32 : i32
    %c8_i32 = arith.constant 8 : i32
    %1 = arith.muli %0, %c8_i32 : i32
    %c0_i32 = arith.constant 0 : i32
    %c0_i32_0 = arith.constant 0 : i32
    %c0_i32_1 = arith.constant 0 : i32
    %c0_i32_2 = arith.constant 0 : i32
    return %arg0, %1, %c0_i32, %c0_i32_0, %c0_i32_1 : i32, i32, i32, i32, i32
  }
  func.func @transform_2(%arg0: i32, %arg1: i32) -> (i32, i32, i32) {
    %c0_i32 = arith.constant 0 : i32
    %c0_i32_0 = arith.constant 0 : i32
    %c0_i32_1 = arith.constant 0 : i32
    %c0_i32_2 = arith.constant 0 : i32
    return %c0_i32, %c0_i32_0, %c0_i32_1 : i32, i32, i32
  }
  func.func @transform_3(%arg0: i32, %arg1: i32) -> (i32, i32) {
    %c0_i32 = arith.constant 0 : i32
    %c0_i32_0 = arith.constant 0 : i32
    %c0_i32_1 = arith.constant 0 : i32
    return %c0_i32, %c0_i32_0 : i32, i32
  }
  func.func @transform_4(%arg0: i32, %arg1: i32) -> (i32, i32, i32, i32) {
    %c0_i32 = arith.constant 0 : i32
    %c0_i32_0 = arith.constant 0 : i32
    %c0_i32_1 = arith.constant 0 : i32
    return %arg0, %arg1, %c0_i32, %c0_i32_0 : i32, i32, i32, i32
  }
}

module attributes {stable_mosaic.version = 11 : i64} {
  func.func @_conv3x3_s2_relu_kernel(%arg0: i32, %arg1: i32, %arg2: memref<1x4x2x9x16xbf16, #tpu.memory_space<vmem>>, %arg3: memref<1x1x2x9x16xbf16, #tpu.memory_space<vmem>>, %arg4: memref<6x16x16xbf16, #tpu.memory_space<vmem>>, %arg5: memref<1x16xf32, #tpu.memory_space<vmem>>, %arg6: memref<1x4x8x16xbf16, #tpu.memory_space<vmem>>) attributes {dimension_semantics = [#tpu.dimension_semantics<parallel>, #tpu.dimension_semantics<parallel>], iteration_bounds = array<i64: 2, 2>, scalar_prefetch = 0 : i64, scratch_operands = 0 : i64, tpu.core_type = #tpu.core_type<tc>, window_params = [{transform_indices = @transform_0, window_bounds = array<i64: 1, 4, 2, 9, 16>}, {transform_indices = @transform_1, window_bounds = array<i64: 1, 1, 2, 9, 16>}, {pipeline_mode = #tpu.pipeline_mode<synchronous>, transform_indices = @transform_2, window_bounds = array<i64: 6, 16, 16>}, {pipeline_mode = #tpu.pipeline_mode<synchronous>, transform_indices = @transform_3, window_bounds = array<i64: 1, 16>}, {transform_indices = @transform_4, window_bounds = array<i64: 1, 4, 8, 16>}]} {
    %cst = arith.constant 0.000000e+00 : f32
    %0 = vector.broadcast %cst : f32 to vector<32x16xf32>
    %c0 = arith.constant 0 : index
    %c0_0 = arith.constant 0 : index
    %c0_1 = arith.constant 0 : index
    %c0_2 = arith.constant 0 : index
    %c0_3 = arith.constant 0 : index
    %1 = vector.load %arg2[%c0, %c0_0, %c0_1, %c0_2, %c0_3] : memref<1x4x2x9x16xbf16, #tpu.memory_space<vmem>>, vector<1x4x1x8x16xbf16>
    %2 = vector.shape_cast %1 : vector<1x4x1x8x16xbf16> to vector<4x8x16xbf16>
    %3 = vector.shape_cast %2 : vector<4x8x16xbf16> to vector<32x16xbf16>
    %c0_4 = arith.constant 0 : index
    %c0_5 = arith.constant 0 : index
    %c0_6 = arith.constant 0 : index
    %4 = vector.load %arg4[%c0_4, %c0_5, %c0_6] : memref<6x16x16xbf16, #tpu.memory_space<vmem>>, vector<1x16x16xbf16>
    %5 = vector.shape_cast %4 : vector<1x16x16xbf16> to vector<16x16xbf16>
    %cst_7 = arith.constant dense<0.000000e+00> : vector<32x16xf32>
    %6 = tpu.matmul %3, %5, %cst_7 {dimension_numbers = #tpu.dot_dimension_numbers<[1], [0], [0], [1], [0, 0, 1, 1], [], []>} : vector<32x16xbf16>, vector<16x16xbf16>, vector<32x16xf32> -> vector<32x16xf32>
    %7 = arith.addf %0, %6 : vector<32x16xf32>
    %c0_8 = arith.constant 0 : index
    %c0_9 = arith.constant 0 : index
    %c0_10 = arith.constant 0 : index
    %c1 = arith.constant 1 : index
    %c0_11 = arith.constant 0 : index
    %8 = vector.load %arg2[%c0_8, %c0_9, %c0_10, %c1, %c0_11] : memref<1x4x2x9x16xbf16, #tpu.memory_space<vmem>>, vector<1x4x1x8x16xbf16>
    %9 = vector.shape_cast %8 : vector<1x4x1x8x16xbf16> to vector<4x8x16xbf16>
    %10 = vector.shape_cast %9 : vector<4x8x16xbf16> to vector<32x16xbf16>
    %c1_12 = arith.constant 1 : index
    %c0_13 = arith.constant 0 : index
    %c0_14 = arith.constant 0 : index
    %11 = vector.load %arg4[%c1_12, %c0_13, %c0_14] : memref<6x16x16xbf16, #tpu.memory_space<vmem>>, vector<1x16x16xbf16>
    %12 = vector.shape_cast %11 : vector<1x16x16xbf16> to vector<16x16xbf16>
    %cst_15 = arith.constant dense<0.000000e+00> : vector<32x16xf32>
    %13 = tpu.matmul %10, %12, %cst_15 {dimension_numbers = #tpu.dot_dimension_numbers<[1], [0], [0], [1], [0, 0, 1, 1], [], []>} : vector<32x16xbf16>, vector<16x16xbf16>, vector<32x16xf32> -> vector<32x16xf32>
    %14 = arith.addf %7, %13 : vector<32x16xf32>
    %c0_16 = arith.constant 0 : index
    %c0_17 = arith.constant 0 : index
    %c1_18 = arith.constant 1 : index
    %c0_19 = arith.constant 0 : index
    %c0_20 = arith.constant 0 : index
    %15 = vector.load %arg2[%c0_16, %c0_17, %c1_18, %c0_19, %c0_20] : memref<1x4x2x9x16xbf16, #tpu.memory_space<vmem>>, vector<1x4x1x8x16xbf16>
    %16 = vector.shape_cast %15 : vector<1x4x1x8x16xbf16> to vector<4x8x16xbf16>
    %17 = vector.shape_cast %16 : vector<4x8x16xbf16> to vector<32x16xbf16>
    %c2 = arith.constant 2 : index
    %c0_21 = arith.constant 0 : index
    %c0_22 = arith.constant 0 : index
    %18 = vector.load %arg4[%c2, %c0_21, %c0_22] : memref<6x16x16xbf16, #tpu.memory_space<vmem>>, vector<1x16x16xbf16>
    %19 = vector.shape_cast %18 : vector<1x16x16xbf16> to vector<16x16xbf16>
    %cst_23 = arith.constant dense<0.000000e+00> : vector<32x16xf32>
    %20 = tpu.matmul %17, %19, %cst_23 {dimension_numbers = #tpu.dot_dimension_numbers<[1], [0], [0], [1], [0, 0, 1, 1], [], []>} : vector<32x16xbf16>, vector<16x16xbf16>, vector<32x16xf32> -> vector<32x16xf32>
    %21 = arith.addf %14, %20 : vector<32x16xf32>
    %c0_24 = arith.constant 0 : index
    %c0_25 = arith.constant 0 : index
    %c1_26 = arith.constant 1 : index
    %c1_27 = arith.constant 1 : index
    %c0_28 = arith.constant 0 : index
    %22 = vector.load %arg2[%c0_24, %c0_25, %c1_26, %c1_27, %c0_28] : memref<1x4x2x9x16xbf16, #tpu.memory_space<vmem>>, vector<1x4x1x8x16xbf16>
    %23 = vector.shape_cast %22 : vector<1x4x1x8x16xbf16> to vector<4x8x16xbf16>
    %24 = vector.shape_cast %23 : vector<4x8x16xbf16> to vector<32x16xbf16>
    %c3 = arith.constant 3 : index
    %c0_29 = arith.constant 0 : index
    %c0_30 = arith.constant 0 : index
    %25 = vector.load %arg4[%c3, %c0_29, %c0_30] : memref<6x16x16xbf16, #tpu.memory_space<vmem>>, vector<1x16x16xbf16>
    %26 = vector.shape_cast %25 : vector<1x16x16xbf16> to vector<16x16xbf16>
    %cst_31 = arith.constant dense<0.000000e+00> : vector<32x16xf32>
    %27 = tpu.matmul %24, %26, %cst_31 {dimension_numbers = #tpu.dot_dimension_numbers<[1], [0], [0], [1], [0, 0, 1, 1], [], []>} : vector<32x16xbf16>, vector<16x16xbf16>, vector<32x16xf32> -> vector<32x16xf32>
    %28 = arith.addf %21, %27 : vector<32x16xf32>
    %c0_32 = arith.constant 0 : index
    %c0_33 = arith.constant 0 : index
    %c0_34 = arith.constant 0 : index
    %c0_35 = arith.constant 0 : index
    %c0_36 = arith.constant 0 : index
    %29 = vector.load %arg3[%c0_32, %c0_33, %c0_34, %c0_35, %c0_36] : memref<1x1x2x9x16xbf16, #tpu.memory_space<vmem>>, vector<1x1x1x8x16xbf16>
    %30 = vector.shape_cast %29 : vector<1x1x1x8x16xbf16> to vector<1x8x16xbf16>
    %c0_37 = arith.constant 0 : index
    %c1_38 = arith.constant 1 : index
    %c0_39 = arith.constant 0 : index
    %c0_40 = arith.constant 0 : index
    %c0_41 = arith.constant 0 : index
    %31 = vector.load %arg2[%c0_37, %c1_38, %c0_39, %c0_40, %c0_41] : memref<1x4x2x9x16xbf16, #tpu.memory_space<vmem>>, vector<1x3x1x8x16xbf16>
    %32 = vector.shape_cast %31 : vector<1x3x1x8x16xbf16> to vector<3x8x16xbf16>
    %33 = tpu.concatenate %32, %30 in 0 : vector<3x8x16xbf16>, vector<1x8x16xbf16> -> vector<4x8x16xbf16>
    %34 = vector.shape_cast %33 : vector<4x8x16xbf16> to vector<32x16xbf16>
    %c4 = arith.constant 4 : index
    %c0_42 = arith.constant 0 : index
    %c0_43 = arith.constant 0 : index
    %35 = vector.load %arg4[%c4, %c0_42, %c0_43] : memref<6x16x16xbf16, #tpu.memory_space<vmem>>, vector<1x16x16xbf16>
    %36 = vector.shape_cast %35 : vector<1x16x16xbf16> to vector<16x16xbf16>
    %cst_44 = arith.constant dense<0.000000e+00> : vector<32x16xf32>
    %37 = tpu.matmul %34, %36, %cst_44 {dimension_numbers = #tpu.dot_dimension_numbers<[1], [0], [0], [1], [0, 0, 1, 1], [], []>} : vector<32x16xbf16>, vector<16x16xbf16>, vector<32x16xf32> -> vector<32x16xf32>
    %38 = arith.addf %28, %37 : vector<32x16xf32>
    %c0_45 = arith.constant 0 : index
    %c0_46 = arith.constant 0 : index
    %c0_47 = arith.constant 0 : index
    %c1_48 = arith.constant 1 : index
    %c0_49 = arith.constant 0 : index
    %39 = vector.load %arg3[%c0_45, %c0_46, %c0_47, %c1_48, %c0_49] : memref<1x1x2x9x16xbf16, #tpu.memory_space<vmem>>, vector<1x1x1x8x16xbf16>
    %40 = vector.shape_cast %39 : vector<1x1x1x8x16xbf16> to vector<1x8x16xbf16>
    %c0_50 = arith.constant 0 : index
    %c1_51 = arith.constant 1 : index
    %c0_52 = arith.constant 0 : index
    %c1_53 = arith.constant 1 : index
    %c0_54 = arith.constant 0 : index
    %41 = vector.load %arg2[%c0_50, %c1_51, %c0_52, %c1_53, %c0_54] : memref<1x4x2x9x16xbf16, #tpu.memory_space<vmem>>, vector<1x3x1x8x16xbf16>
    %42 = vector.shape_cast %41 : vector<1x3x1x8x16xbf16> to vector<3x8x16xbf16>
    %43 = tpu.concatenate %42, %40 in 0 : vector<3x8x16xbf16>, vector<1x8x16xbf16> -> vector<4x8x16xbf16>
    %44 = vector.shape_cast %43 : vector<4x8x16xbf16> to vector<32x16xbf16>
    %c5 = arith.constant 5 : index
    %c0_55 = arith.constant 0 : index
    %c0_56 = arith.constant 0 : index
    %45 = vector.load %arg4[%c5, %c0_55, %c0_56] : memref<6x16x16xbf16, #tpu.memory_space<vmem>>, vector<1x16x16xbf16>
    %46 = vector.shape_cast %45 : vector<1x16x16xbf16> to vector<16x16xbf16>
    %cst_57 = arith.constant dense<0.000000e+00> : vector<32x16xf32>
    %47 = tpu.matmul %44, %46, %cst_57 {dimension_numbers = #tpu.dot_dimension_numbers<[1], [0], [0], [1], [0, 0, 1, 1], [], []>} : vector<32x16xbf16>, vector<16x16xbf16>, vector<32x16xf32> -> vector<32x16xf32>
    %48 = arith.addf %38, %47 : vector<32x16xf32>
    %c0_58 = arith.constant 0 : index
    %c0_59 = arith.constant 0 : index
    %49 = vector.load %arg5[%c0_58, %c0_59] : memref<1x16xf32, #tpu.memory_space<vmem>>, vector<1x16xf32>
    %50 = vector.broadcast %49 : vector<1x16xf32> to vector<32x16xf32>
    %51 = arith.addf %48, %50 : vector<32x16xf32>
    %cst_60 = arith.constant 0.000000e+00 : f32
    %52 = vector.broadcast %cst_60 : f32 to vector<32x16xf32>
    %53 = arith.maximumf %51, %52 : vector<32x16xf32>
    %54 = vector.shape_cast %53 : vector<32x16xf32> to vector<4x8x16xf32>
    %55 = arith.truncf %54 : vector<4x8x16xf32> to vector<4x8x16xbf16>
    %c0_61 = arith.constant 0 : index
    %c0_62 = arith.constant 0 : index
    %c0_63 = arith.constant 0 : index
    %c0_64 = arith.constant 0 : index
    %56 = vector.load %arg6[%c0_61, %c0_62, %c0_63, %c0_64] : memref<1x4x8x16xbf16, #tpu.memory_space<vmem>>, vector<1x4x8x16xbf16>
    %57 = vector.shape_cast %56 : vector<1x4x8x16xbf16> to vector<4x8x16xbf16>
    %58 = vector.shape_cast %55 : vector<4x8x16xbf16> to vector<1x4x8x16xbf16>
    tpu.vector_store %arg6[%c0_61, %c0_62, %c0_63, %c0_64], %58 {strides = array<i32>} : memref<1x4x8x16xbf16, #tpu.memory_space<vmem>>, vector<1x4x8x16xbf16>,
    return
  }
  func.func @transform_0(%arg0: i32, %arg1: i32) -> (i32, i32, i32, i32, i32) {
    %c0_i32 = arith.constant 0 : i32
    %c0_i32_0 = arith.constant 0 : i32
    %c0_i32_1 = arith.constant 0 : i32
    %c0_i32_2 = arith.constant 0 : i32
    return %arg0, %arg1, %c0_i32, %c0_i32_0, %c0_i32_1 : i32, i32, i32, i32, i32
  }
  func.func @transform_1(%arg0: i32, %arg1: i32) -> (i32, i32, i32, i32, i32) {
    %c1_i32 = arith.constant 1 : i32
    %0 = arith.addi %arg1, %c1_i32 : i32
    %c4_i32 = arith.constant 4 : i32
    %1 = arith.muli %0, %c4_i32 : i32
    %c0_i32 = arith.constant 0 : i32
    %c0_i32_0 = arith.constant 0 : i32
    %c0_i32_1 = arith.constant 0 : i32
    %c0_i32_2 = arith.constant 0 : i32
    return %arg0, %1, %c0_i32, %c0_i32_0, %c0_i32_1 : i32, i32, i32, i32, i32
  }
  func.func @transform_2(%arg0: i32, %arg1: i32) -> (i32, i32, i32) {
    %c0_i32 = arith.constant 0 : i32
    %c0_i32_0 = arith.constant 0 : i32
    %c0_i32_1 = arith.constant 0 : i32
    %c0_i32_2 = arith.constant 0 : i32
    return %c0_i32, %c0_i32_0, %c0_i32_1 : i32, i32, i32
  }
  func.func @transform_3(%arg0: i32, %arg1: i32) -> (i32, i32) {
    %c0_i32 = arith.constant 0 : i32
    %c0_i32_0 = arith.constant 0 : i32
    %c0_i32_1 = arith.constant 0 : i32
    return %c0_i32, %c0_i32_0 : i32, i32
  }
  func.func @transform_4(%arg0: i32, %arg1: i32) -> (i32, i32, i32, i32) {
    %c0_i32 = arith.constant 0 : i32
    %c0_i32_0 = arith.constant 0 : i32
    %c0_i32_1 = arith.constant 0 : i32
    return %arg0, %arg1, %c0_i32, %c0_i32_0 : i32, i32, i32, i32
  }
}

module attributes {stable_mosaic.version = 11 : i64} {
  func.func @_conv3x3_s2_relu_kernel(%arg0: i32, %arg1: i32, %arg2: memref<1x2x2x5x32xbf16, #tpu.memory_space<vmem>>, %arg3: memref<1x1x2x5x32xbf16, #tpu.memory_space<vmem>>, %arg4: memref<6x32x32xbf16, #tpu.memory_space<vmem>>, %arg5: memref<1x32xf32, #tpu.memory_space<vmem>>, %arg6: memref<1x2x4x32xbf16, #tpu.memory_space<vmem>>) attributes {dimension_semantics = [#tpu.dimension_semantics<parallel>, #tpu.dimension_semantics<parallel>], iteration_bounds = array<i64: 2, 2>, scalar_prefetch = 0 : i64, scratch_operands = 0 : i64, tpu.core_type = #tpu.core_type<tc>, window_params = [{transform_indices = @transform_0, window_bounds = array<i64: 1, 2, 2, 5, 32>}, {transform_indices = @transform_1, window_bounds = array<i64: 1, 1, 2, 5, 32>}, {pipeline_mode = #tpu.pipeline_mode<synchronous>, transform_indices = @transform_2, window_bounds = array<i64: 6, 32, 32>}, {pipeline_mode = #tpu.pipeline_mode<synchronous>, transform_indices = @transform_3, window_bounds = array<i64: 1, 32>}, {transform_indices = @transform_4, window_bounds = array<i64: 1, 2, 4, 32>}]} {
    %cst = arith.constant 0.000000e+00 : f32
    %0 = vector.broadcast %cst : f32 to vector<8x32xf32>
    %c0 = arith.constant 0 : index
    %c0_0 = arith.constant 0 : index
    %c0_1 = arith.constant 0 : index
    %c0_2 = arith.constant 0 : index
    %c0_3 = arith.constant 0 : index
    %1 = vector.load %arg2[%c0, %c0_0, %c0_1, %c0_2, %c0_3] : memref<1x2x2x5x32xbf16, #tpu.memory_space<vmem>>, vector<1x2x1x4x32xbf16>
    %2 = vector.shape_cast %1 : vector<1x2x1x4x32xbf16> to vector<2x4x32xbf16>
    %3 = vector.shape_cast %2 : vector<2x4x32xbf16> to vector<8x32xbf16>
    %c0_4 = arith.constant 0 : index
    %c0_5 = arith.constant 0 : index
    %c0_6 = arith.constant 0 : index
    %4 = vector.load %arg4[%c0_4, %c0_5, %c0_6] : memref<6x32x32xbf16, #tpu.memory_space<vmem>>, vector<1x32x32xbf16>
    %5 = vector.shape_cast %4 : vector<1x32x32xbf16> to vector<32x32xbf16>
    %cst_7 = arith.constant dense<0.000000e+00> : vector<8x32xf32>
    %6 = tpu.matmul %3, %5, %cst_7 {dimension_numbers = #tpu.dot_dimension_numbers<[1], [0], [0], [1], [0, 0, 1, 1], [], []>} : vector<8x32xbf16>, vector<32x32xbf16>, vector<8x32xf32> -> vector<8x32xf32>
    %7 = arith.addf %0, %6 : vector<8x32xf32>
    %c0_8 = arith.constant 0 : index
    %c0_9 = arith.constant 0 : index
    %c0_10 = arith.constant 0 : index
    %c1 = arith.constant 1 : index
    %c0_11 = arith.constant 0 : index
    %8 = vector.load %arg2[%c0_8, %c0_9, %c0_10, %c1, %c0_11] : memref<1x2x2x5x32xbf16, #tpu.memory_space<vmem>>, vector<1x2x1x4x32xbf16>
    %9 = vector.shape_cast %8 : vector<1x2x1x4x32xbf16> to vector<2x4x32xbf16>
    %10 = vector.shape_cast %9 : vector<2x4x32xbf16> to vector<8x32xbf16>
    %c1_12 = arith.constant 1 : index
    %c0_13 = arith.constant 0 : index
    %c0_14 = arith.constant 0 : index
    %11 = vector.load %arg4[%c1_12, %c0_13, %c0_14] : memref<6x32x32xbf16, #tpu.memory_space<vmem>>, vector<1x32x32xbf16>
    %12 = vector.shape_cast %11 : vector<1x32x32xbf16> to vector<32x32xbf16>
    %cst_15 = arith.constant dense<0.000000e+00> : vector<8x32xf32>
    %13 = tpu.matmul %10, %12, %cst_15 {dimension_numbers = #tpu.dot_dimension_numbers<[1], [0], [0], [1], [0, 0, 1, 1], [], []>} : vector<8x32xbf16>, vector<32x32xbf16>, vector<8x32xf32> -> vector<8x32xf32>
    %14 = arith.addf %7, %13 : vector<8x32xf32>
    %c0_16 = arith.constant 0 : index
    %c0_17 = arith.constant 0 : index
    %c1_18 = arith.constant 1 : index
    %c0_19 = arith.constant 0 : index
    %c0_20 = arith.constant 0 : index
    %15 = vector.load %arg2[%c0_16, %c0_17, %c1_18, %c0_19, %c0_20] : memref<1x2x2x5x32xbf16, #tpu.memory_space<vmem>>, vector<1x2x1x4x32xbf16>
    %16 = vector.shape_cast %15 : vector<1x2x1x4x32xbf16> to vector<2x4x32xbf16>
    %17 = vector.shape_cast %16 : vector<2x4x32xbf16> to vector<8x32xbf16>
    %c2 = arith.constant 2 : index
    %c0_21 = arith.constant 0 : index
    %c0_22 = arith.constant 0 : index
    %18 = vector.load %arg4[%c2, %c0_21, %c0_22] : memref<6x32x32xbf16, #tpu.memory_space<vmem>>, vector<1x32x32xbf16>
    %19 = vector.shape_cast %18 : vector<1x32x32xbf16> to vector<32x32xbf16>
    %cst_23 = arith.constant dense<0.000000e+00> : vector<8x32xf32>
    %20 = tpu.matmul %17, %19, %cst_23 {dimension_numbers = #tpu.dot_dimension_numbers<[1], [0], [0], [1], [0, 0, 1, 1], [], []>} : vector<8x32xbf16>, vector<32x32xbf16>, vector<8x32xf32> -> vector<8x32xf32>
    %21 = arith.addf %14, %20 : vector<8x32xf32>
    %c0_24 = arith.constant 0 : index
    %c0_25 = arith.constant 0 : index
    %c1_26 = arith.constant 1 : index
    %c1_27 = arith.constant 1 : index
    %c0_28 = arith.constant 0 : index
    %22 = vector.load %arg2[%c0_24, %c0_25, %c1_26, %c1_27, %c0_28] : memref<1x2x2x5x32xbf16, #tpu.memory_space<vmem>>, vector<1x2x1x4x32xbf16>
    %23 = vector.shape_cast %22 : vector<1x2x1x4x32xbf16> to vector<2x4x32xbf16>
    %24 = vector.shape_cast %23 : vector<2x4x32xbf16> to vector<8x32xbf16>
    %c3 = arith.constant 3 : index
    %c0_29 = arith.constant 0 : index
    %c0_30 = arith.constant 0 : index
    %25 = vector.load %arg4[%c3, %c0_29, %c0_30] : memref<6x32x32xbf16, #tpu.memory_space<vmem>>, vector<1x32x32xbf16>
    %26 = vector.shape_cast %25 : vector<1x32x32xbf16> to vector<32x32xbf16>
    %cst_31 = arith.constant dense<0.000000e+00> : vector<8x32xf32>
    %27 = tpu.matmul %24, %26, %cst_31 {dimension_numbers = #tpu.dot_dimension_numbers<[1], [0], [0], [1], [0, 0, 1, 1], [], []>} : vector<8x32xbf16>, vector<32x32xbf16>, vector<8x32xf32> -> vector<8x32xf32>
    %28 = arith.addf %21, %27 : vector<8x32xf32>
    %c0_32 = arith.constant 0 : index
    %c0_33 = arith.constant 0 : index
    %c0_34 = arith.constant 0 : index
    %c0_35 = arith.constant 0 : index
    %c0_36 = arith.constant 0 : index
    %29 = vector.load %arg3[%c0_32, %c0_33, %c0_34, %c0_35, %c0_36] : memref<1x1x2x5x32xbf16, #tpu.memory_space<vmem>>, vector<1x1x1x4x32xbf16>
    %30 = vector.shape_cast %29 : vector<1x1x1x4x32xbf16> to vector<1x4x32xbf16>
    %c0_37 = arith.constant 0 : index
    %c1_38 = arith.constant 1 : index
    %c0_39 = arith.constant 0 : index
    %c0_40 = arith.constant 0 : index
    %c0_41 = arith.constant 0 : index
    %31 = vector.load %arg2[%c0_37, %c1_38, %c0_39, %c0_40, %c0_41] : memref<1x2x2x5x32xbf16, #tpu.memory_space<vmem>>, vector<1x1x1x4x32xbf16>
    %32 = vector.shape_cast %31 : vector<1x1x1x4x32xbf16> to vector<1x4x32xbf16>
    %33 = tpu.concatenate %32, %30 in 0 : vector<1x4x32xbf16>, vector<1x4x32xbf16> -> vector<2x4x32xbf16>
    %34 = vector.shape_cast %33 : vector<2x4x32xbf16> to vector<8x32xbf16>
    %c4 = arith.constant 4 : index
    %c0_42 = arith.constant 0 : index
    %c0_43 = arith.constant 0 : index
    %35 = vector.load %arg4[%c4, %c0_42, %c0_43] : memref<6x32x32xbf16, #tpu.memory_space<vmem>>, vector<1x32x32xbf16>
    %36 = vector.shape_cast %35 : vector<1x32x32xbf16> to vector<32x32xbf16>
    %cst_44 = arith.constant dense<0.000000e+00> : vector<8x32xf32>
    %37 = tpu.matmul %34, %36, %cst_44 {dimension_numbers = #tpu.dot_dimension_numbers<[1], [0], [0], [1], [0, 0, 1, 1], [], []>} : vector<8x32xbf16>, vector<32x32xbf16>, vector<8x32xf32> -> vector<8x32xf32>
    %38 = arith.addf %28, %37 : vector<8x32xf32>
    %c0_45 = arith.constant 0 : index
    %c0_46 = arith.constant 0 : index
    %c0_47 = arith.constant 0 : index
    %c1_48 = arith.constant 1 : index
    %c0_49 = arith.constant 0 : index
    %39 = vector.load %arg3[%c0_45, %c0_46, %c0_47, %c1_48, %c0_49] : memref<1x1x2x5x32xbf16, #tpu.memory_space<vmem>>, vector<1x1x1x4x32xbf16>
    %40 = vector.shape_cast %39 : vector<1x1x1x4x32xbf16> to vector<1x4x32xbf16>
    %c0_50 = arith.constant 0 : index
    %c1_51 = arith.constant 1 : index
    %c0_52 = arith.constant 0 : index
    %c1_53 = arith.constant 1 : index
    %c0_54 = arith.constant 0 : index
    %41 = vector.load %arg2[%c0_50, %c1_51, %c0_52, %c1_53, %c0_54] : memref<1x2x2x5x32xbf16, #tpu.memory_space<vmem>>, vector<1x1x1x4x32xbf16>
    %42 = vector.shape_cast %41 : vector<1x1x1x4x32xbf16> to vector<1x4x32xbf16>
    %43 = tpu.concatenate %42, %40 in 0 : vector<1x4x32xbf16>, vector<1x4x32xbf16> -> vector<2x4x32xbf16>
    %44 = vector.shape_cast %43 : vector<2x4x32xbf16> to vector<8x32xbf16>
    %c5 = arith.constant 5 : index
    %c0_55 = arith.constant 0 : index
    %c0_56 = arith.constant 0 : index
    %45 = vector.load %arg4[%c5, %c0_55, %c0_56] : memref<6x32x32xbf16, #tpu.memory_space<vmem>>, vector<1x32x32xbf16>
    %46 = vector.shape_cast %45 : vector<1x32x32xbf16> to vector<32x32xbf16>
    %cst_57 = arith.constant dense<0.000000e+00> : vector<8x32xf32>
    %47 = tpu.matmul %44, %46, %cst_57 {dimension_numbers = #tpu.dot_dimension_numbers<[1], [0], [0], [1], [0, 0, 1, 1], [], []>} : vector<8x32xbf16>, vector<32x32xbf16>, vector<8x32xf32> -> vector<8x32xf32>
    %48 = arith.addf %38, %47 : vector<8x32xf32>
    %c0_58 = arith.constant 0 : index
    %c0_59 = arith.constant 0 : index
    %49 = vector.load %arg5[%c0_58, %c0_59] : memref<1x32xf32, #tpu.memory_space<vmem>>, vector<1x32xf32>
    %50 = vector.broadcast %49 : vector<1x32xf32> to vector<8x32xf32>
    %51 = arith.addf %48, %50 : vector<8x32xf32>
    %cst_60 = arith.constant 0.000000e+00 : f32
    %52 = vector.broadcast %cst_60 : f32 to vector<8x32xf32>
    %53 = arith.maximumf %51, %52 : vector<8x32xf32>
    %54 = vector.shape_cast %53 : vector<8x32xf32> to vector<2x4x32xf32>
    %55 = arith.truncf %54 : vector<2x4x32xf32> to vector<2x4x32xbf16>
    %c0_61 = arith.constant 0 : index
    %c0_62 = arith.constant 0 : index
    %c0_63 = arith.constant 0 : index
    %c0_64 = arith.constant 0 : index
    %56 = vector.load %arg6[%c0_61, %c0_62, %c0_63, %c0_64] : memref<1x2x4x32xbf16, #tpu.memory_space<vmem>>, vector<1x2x4x32xbf16>
    %57 = vector.shape_cast %56 : vector<1x2x4x32xbf16> to vector<2x4x32xbf16>
    %58 = vector.shape_cast %55 : vector<2x4x32xbf16> to vector<1x2x4x32xbf16>
    tpu.vector_store %arg6[%c0_61, %c0_62, %c0_63, %c0_64], %58 {strides = array<i32>} : memref<1x2x4x32xbf16, #tpu.memory_space<vmem>>, vector<1x2x4x32xbf16>,
    return
  }
  func.func @transform_0(%arg0: i32, %arg1: i32) -> (i32, i32, i32, i32, i32) {
    %c0_i32 = arith.constant 0 : i32
    %c0_i32_0 = arith.constant 0 : i32
    %c0_i32_1 = arith.constant 0 : i32
    %c0_i32_2 = arith.constant 0 : i32
    return %arg0, %arg1, %c0_i32, %c0_i32_0, %c0_i32_1 : i32, i32, i32, i32, i32
  }
  func.func @transform_1(%arg0: i32, %arg1: i32) -> (i32, i32, i32, i32, i32) {
    %c1_i32 = arith.constant 1 : i32
    %0 = arith.addi %arg1, %c1_i32 : i32
    %c2_i32 = arith.constant 2 : i32
    %1 = arith.muli %0, %c2_i32 : i32
    %c0_i32 = arith.constant 0 : i32
    %c0_i32_0 = arith.constant 0 : i32
    %c0_i32_1 = arith.constant 0 : i32
    %c0_i32_2 = arith.constant 0 : i32
    return %arg0, %1, %c0_i32, %c0_i32_0, %c0_i32_1 : i32, i32, i32, i32, i32
  }
  func.func @transform_2(%arg0: i32, %arg1: i32) -> (i32, i32, i32) {
    %c0_i32 = arith.constant 0 : i32
    %c0_i32_0 = arith.constant 0 : i32
    %c0_i32_1 = arith.constant 0 : i32
    %c0_i32_2 = arith.constant 0 : i32
    return %c0_i32, %c0_i32_0, %c0_i32_1 : i32, i32, i32
  }
  func.func @transform_3(%arg0: i32, %arg1: i32) -> (i32, i32) {
    %c0_i32 = arith.constant 0 : i32
    %c0_i32_0 = arith.constant 0 : i32
    %c0_i32_1 = arith.constant 0 : i32
    return %c0_i32, %c0_i32_0 : i32, i32
  }
  func.func @transform_4(%arg0: i32, %arg1: i32) -> (i32, i32, i32, i32) {
    %c0_i32 = arith.constant 0 : i32
    %c0_i32_0 = arith.constant 0 : i32
    %c0_i32_1 = arith.constant 0 : i32
    return %arg0, %arg1, %c0_i32, %c0_i32_0 : i32, i32, i32, i32
  }
}

module attributes {stable_mosaic.version = 11 : i64} {
  func.func @_conv3x3_s2_relu_kernel(%arg0: i32, %arg1: i32, %arg2: memref<1x1x2x3x64xbf16, #tpu.memory_space<vmem>>, %arg3: memref<1x1x2x3x64xbf16, #tpu.memory_space<vmem>>, %arg4: memref<6x64x64xbf16, #tpu.memory_space<vmem>>, %arg5: memref<1x64xf32, #tpu.memory_space<vmem>>, %arg6: memref<1x1x2x64xbf16, #tpu.memory_space<vmem>>) attributes {dimension_semantics = [#tpu.dimension_semantics<parallel>, #tpu.dimension_semantics<parallel>], iteration_bounds = array<i64: 2, 2>, scalar_prefetch = 0 : i64, scratch_operands = 0 : i64, tpu.core_type = #tpu.core_type<tc>, window_params = [{transform_indices = @transform_0, window_bounds = array<i64: 1, 1, 2, 3, 64>}, {transform_indices = @transform_1, window_bounds = array<i64: 1, 1, 2, 3, 64>}, {pipeline_mode = #tpu.pipeline_mode<synchronous>, transform_indices = @transform_2, window_bounds = array<i64: 6, 64, 64>}, {pipeline_mode = #tpu.pipeline_mode<synchronous>, transform_indices = @transform_3, window_bounds = array<i64: 1, 64>}, {transform_indices = @transform_4, window_bounds = array<i64: 1, 1, 2, 64>}]} {
    %cst = arith.constant 0.000000e+00 : f32
    %0 = vector.broadcast %cst : f32 to vector<2x64xf32>
    %c0 = arith.constant 0 : index
    %c0_0 = arith.constant 0 : index
    %c0_1 = arith.constant 0 : index
    %c0_2 = arith.constant 0 : index
    %c0_3 = arith.constant 0 : index
    %1 = vector.load %arg2[%c0, %c0_0, %c0_1, %c0_2, %c0_3] : memref<1x1x2x3x64xbf16, #tpu.memory_space<vmem>>, vector<1x1x1x2x64xbf16>
    %2 = vector.shape_cast %1 : vector<1x1x1x2x64xbf16> to vector<1x2x64xbf16>
    %3 = vector.shape_cast %2 : vector<1x2x64xbf16> to vector<2x64xbf16>
    %c0_4 = arith.constant 0 : index
    %c0_5 = arith.constant 0 : index
    %c0_6 = arith.constant 0 : index
    %4 = vector.load %arg4[%c0_4, %c0_5, %c0_6] : memref<6x64x64xbf16, #tpu.memory_space<vmem>>, vector<1x64x64xbf16>
    %5 = vector.shape_cast %4 : vector<1x64x64xbf16> to vector<64x64xbf16>
    %cst_7 = arith.constant dense<0.000000e+00> : vector<2x64xf32>
    %6 = tpu.matmul %3, %5, %cst_7 {dimension_numbers = #tpu.dot_dimension_numbers<[1], [0], [0], [1], [0, 0, 1, 1], [], []>} : vector<2x64xbf16>, vector<64x64xbf16>, vector<2x64xf32> -> vector<2x64xf32>
    %7 = arith.addf %0, %6 : vector<2x64xf32>
    %c0_8 = arith.constant 0 : index
    %c0_9 = arith.constant 0 : index
    %c0_10 = arith.constant 0 : index
    %c1 = arith.constant 1 : index
    %c0_11 = arith.constant 0 : index
    %8 = vector.load %arg2[%c0_8, %c0_9, %c0_10, %c1, %c0_11] : memref<1x1x2x3x64xbf16, #tpu.memory_space<vmem>>, vector<1x1x1x2x64xbf16>
    %9 = vector.shape_cast %8 : vector<1x1x1x2x64xbf16> to vector<1x2x64xbf16>
    %10 = vector.shape_cast %9 : vector<1x2x64xbf16> to vector<2x64xbf16>
    %c1_12 = arith.constant 1 : index
    %c0_13 = arith.constant 0 : index
    %c0_14 = arith.constant 0 : index
    %11 = vector.load %arg4[%c1_12, %c0_13, %c0_14] : memref<6x64x64xbf16, #tpu.memory_space<vmem>>, vector<1x64x64xbf16>
    %12 = vector.shape_cast %11 : vector<1x64x64xbf16> to vector<64x64xbf16>
    %cst_15 = arith.constant dense<0.000000e+00> : vector<2x64xf32>
    %13 = tpu.matmul %10, %12, %cst_15 {dimension_numbers = #tpu.dot_dimension_numbers<[1], [0], [0], [1], [0, 0, 1, 1], [], []>} : vector<2x64xbf16>, vector<64x64xbf16>, vector<2x64xf32> -> vector<2x64xf32>
    %14 = arith.addf %7, %13 : vector<2x64xf32>
    %c0_16 = arith.constant 0 : index
    %c0_17 = arith.constant 0 : index
    %c1_18 = arith.constant 1 : index
    %c0_19 = arith.constant 0 : index
    %c0_20 = arith.constant 0 : index
    %15 = vector.load %arg2[%c0_16, %c0_17, %c1_18, %c0_19, %c0_20] : memref<1x1x2x3x64xbf16, #tpu.memory_space<vmem>>, vector<1x1x1x2x64xbf16>
    %16 = vector.shape_cast %15 : vector<1x1x1x2x64xbf16> to vector<1x2x64xbf16>
    %17 = vector.shape_cast %16 : vector<1x2x64xbf16> to vector<2x64xbf16>
    %c2 = arith.constant 2 : index
    %c0_21 = arith.constant 0 : index
    %c0_22 = arith.constant 0 : index
    %18 = vector.load %arg4[%c2, %c0_21, %c0_22] : memref<6x64x64xbf16, #tpu.memory_space<vmem>>, vector<1x64x64xbf16>
    %19 = vector.shape_cast %18 : vector<1x64x64xbf16> to vector<64x64xbf16>
    %cst_23 = arith.constant dense<0.000000e+00> : vector<2x64xf32>
    %20 = tpu.matmul %17, %19, %cst_23 {dimension_numbers = #tpu.dot_dimension_numbers<[1], [0], [0], [1], [0, 0, 1, 1], [], []>} : vector<2x64xbf16>, vector<64x64xbf16>, vector<2x64xf32> -> vector<2x64xf32>
    %21 = arith.addf %14, %20 : vector<2x64xf32>
    %c0_24 = arith.constant 0 : index
    %c0_25 = arith.constant 0 : index
    %c1_26 = arith.constant 1 : index
    %c1_27 = arith.constant 1 : index
    %c0_28 = arith.constant 0 : index
    %22 = vector.load %arg2[%c0_24, %c0_25, %c1_26, %c1_27, %c0_28] : memref<1x1x2x3x64xbf16, #tpu.memory_space<vmem>>, vector<1x1x1x2x64xbf16>
    %23 = vector.shape_cast %22 : vector<1x1x1x2x64xbf16> to vector<1x2x64xbf16>
    %24 = vector.shape_cast %23 : vector<1x2x64xbf16> to vector<2x64xbf16>
    %c3 = arith.constant 3 : index
    %c0_29 = arith.constant 0 : index
    %c0_30 = arith.constant 0 : index
    %25 = vector.load %arg4[%c3, %c0_29, %c0_30] : memref<6x64x64xbf16, #tpu.memory_space<vmem>>, vector<1x64x64xbf16>
    %26 = vector.shape_cast %25 : vector<1x64x64xbf16> to vector<64x64xbf16>
    %cst_31 = arith.constant dense<0.000000e+00> : vector<2x64xf32>
    %27 = tpu.matmul %24, %26, %cst_31 {dimension_numbers = #tpu.dot_dimension_numbers<[1], [0], [0], [1], [0, 0, 1, 1], [], []>} : vector<2x64xbf16>, vector<64x64xbf16>, vector<2x64xf32> -> vector<2x64xf32>
    %28 = arith.addf %21, %27 : vector<2x64xf32>
    %c0_32 = arith.constant 0 : index
    %c0_33 = arith.constant 0 : index
    %c0_34 = arith.constant 0 : index
    %c0_35 = arith.constant 0 : index
    %c0_36 = arith.constant 0 : index
    %29 = vector.load %arg3[%c0_32, %c0_33, %c0_34, %c0_35, %c0_36] : memref<1x1x2x3x64xbf16, #tpu.memory_space<vmem>>, vector<1x1x1x2x64xbf16>
    %30 = vector.shape_cast %29 : vector<1x1x1x2x64xbf16> to vector<1x2x64xbf16>
    %31 = vector.shape_cast %30 : vector<1x2x64xbf16> to vector<2x64xbf16>
    %c4 = arith.constant 4 : index
    %c0_37 = arith.constant 0 : index
    %c0_38 = arith.constant 0 : index
    %32 = vector.load %arg4[%c4, %c0_37, %c0_38] : memref<6x64x64xbf16, #tpu.memory_space<vmem>>, vector<1x64x64xbf16>
    %33 = vector.shape_cast %32 : vector<1x64x64xbf16> to vector<64x64xbf16>
    %cst_39 = arith.constant dense<0.000000e+00> : vector<2x64xf32>
    %34 = tpu.matmul %31, %33, %cst_39 {dimension_numbers = #tpu.dot_dimension_numbers<[1], [0], [0], [1], [0, 0, 1, 1], [], []>} : vector<2x64xbf16>, vector<64x64xbf16>, vector<2x64xf32> -> vector<2x64xf32>
    %35 = arith.addf %28, %34 : vector<2x64xf32>
    %c0_40 = arith.constant 0 : index
    %c0_41 = arith.constant 0 : index
    %c0_42 = arith.constant 0 : index
    %c1_43 = arith.constant 1 : index
    %c0_44 = arith.constant 0 : index
    %36 = vector.load %arg3[%c0_40, %c0_41, %c0_42, %c1_43, %c0_44] : memref<1x1x2x3x64xbf16, #tpu.memory_space<vmem>>, vector<1x1x1x2x64xbf16>
    %37 = vector.shape_cast %36 : vector<1x1x1x2x64xbf16> to vector<1x2x64xbf16>
    %38 = vector.shape_cast %37 : vector<1x2x64xbf16> to vector<2x64xbf16>
    %c5 = arith.constant 5 : index
    %c0_45 = arith.constant 0 : index
    %c0_46 = arith.constant 0 : index
    %39 = vector.load %arg4[%c5, %c0_45, %c0_46] : memref<6x64x64xbf16, #tpu.memory_space<vmem>>, vector<1x64x64xbf16>
    %40 = vector.shape_cast %39 : vector<1x64x64xbf16> to vector<64x64xbf16>
    %cst_47 = arith.constant dense<0.000000e+00> : vector<2x64xf32>
    %41 = tpu.matmul %38, %40, %cst_47 {dimension_numbers = #tpu.dot_dimension_numbers<[1], [0], [0], [1], [0, 0, 1, 1], [], []>} : vector<2x64xbf16>, vector<64x64xbf16>, vector<2x64xf32> -> vector<2x64xf32>
    %42 = arith.addf %35, %41 : vector<2x64xf32>
    %c0_48 = arith.constant 0 : index
    %c0_49 = arith.constant 0 : index
    %43 = vector.load %arg5[%c0_48, %c0_49] : memref<1x64xf32, #tpu.memory_space<vmem>>, vector<1x64xf32>
    %44 = vector.broadcast %43 : vector<1x64xf32> to vector<2x64xf32>
    %45 = arith.addf %42, %44 : vector<2x64xf32>
    %cst_50 = arith.constant 0.000000e+00 : f32
    %46 = vector.broadcast %cst_50 : f32 to vector<2x64xf32>
    %47 = arith.maximumf %45, %46 : vector<2x64xf32>
    %48 = vector.shape_cast %47 : vector<2x64xf32> to vector<1x2x64xf32>
    %49 = arith.truncf %48 : vector<1x2x64xf32> to vector<1x2x64xbf16>
    %c0_51 = arith.constant 0 : index
    %c0_52 = arith.constant 0 : index
    %c0_53 = arith.constant 0 : index
    %c0_54 = arith.constant 0 : index
    %50 = vector.load %arg6[%c0_51, %c0_52, %c0_53, %c0_54] : memref<1x1x2x64xbf16, #tpu.memory_space<vmem>>, vector<1x1x2x64xbf16>
    %51 = vector.shape_cast %50 : vector<1x1x2x64xbf16> to vector<1x2x64xbf16>
    %52 = vector.shape_cast %49 : vector<1x2x64xbf16> to vector<1x1x2x64xbf16>
    tpu.vector_store %arg6[%c0_51, %c0_52, %c0_53, %c0_54], %52 {strides = array<i32>} : memref<1x1x2x64xbf16, #tpu.memory_space<vmem>>, vector<1x1x2x64xbf16>,
    return
  }
  func.func @transform_0(%arg0: i32, %arg1: i32) -> (i32, i32, i32, i32, i32) {
    %c0_i32 = arith.constant 0 : i32
    %c0_i32_0 = arith.constant 0 : i32
    %c0_i32_1 = arith.constant 0 : i32
    %c0_i32_2 = arith.constant 0 : i32
    return %arg0, %arg1, %c0_i32, %c0_i32_0, %c0_i32_1 : i32, i32, i32, i32, i32
  }
  func.func @transform_1(%arg0: i32, %arg1: i32) -> (i32, i32, i32, i32, i32) {
    %c1_i32 = arith.constant 1 : i32
    %0 = arith.addi %arg1, %c1_i32 : i32
    %c1_i32_0 = arith.constant 1 : i32
    %1 = arith.muli %0, %c1_i32_0 : i32
    %c0_i32 = arith.constant 0 : i32
    %c0_i32_1 = arith.constant 0 : i32
    %c0_i32_2 = arith.constant 0 : i32
    %c0_i32_3 = arith.constant 0 : i32
    return %arg0, %1, %c0_i32, %c0_i32_1, %c0_i32_2 : i32, i32, i32, i32, i32
  }
  func.func @transform_2(%arg0: i32, %arg1: i32) -> (i32, i32, i32) {
    %c0_i32 = arith.constant 0 : i32
    %c0_i32_0 = arith.constant 0 : i32
    %c0_i32_1 = arith.constant 0 : i32
    %c0_i32_2 = arith.constant 0 : i32
    return %c0_i32, %c0_i32_0, %c0_i32_1 : i32, i32, i32
  }
  func.func @transform_3(%arg0: i32, %arg1: i32) -> (i32, i32) {
    %c0_i32 = arith.constant 0 : i32
    %c0_i32_0 = arith.constant 0 : i32
    %c0_i32_1 = arith.constant 0 : i32
    return %c0_i32, %c0_i32_0 : i32, i32
  }
  func.func @transform_4(%arg0: i32, %arg1: i32) -> (i32, i32, i32, i32) {
    %c0_i32 = arith.constant 0 : i32
    %c0_i32_0 = arith.constant 0 : i32
    %c0_i32_1 = arith.constant 0 : i32
    return %arg0, %arg1, %c0_i32, %c0_i32_0 : i32, i32, i32, i32
  }
}

module attributes {stable_mosaic.version = 11 : i64} {
  func.func @_conv3x3_s2_relu_kernel(%arg0: i32, %arg1: i32, %arg2: memref<1x1x2x2x128xbf16, #tpu.memory_space<vmem>>, %arg3: memref<1x1x2x2x128xbf16, #tpu.memory_space<vmem>>, %arg4: memref<6x128x64xbf16, #tpu.memory_space<vmem>>, %arg5: memref<1x64xf32, #tpu.memory_space<vmem>>, %arg6: memref<1x1x1x64xbf16, #tpu.memory_space<vmem>>) attributes {dimension_semantics = [#tpu.dimension_semantics<parallel>, #tpu.dimension_semantics<parallel>], iteration_bounds = array<i64: 2, 1>, scalar_prefetch = 0 : i64, scratch_operands = 0 : i64, tpu.core_type = #tpu.core_type<tc>, window_params = [{transform_indices = @transform_0, window_bounds = array<i64: 1, 1, 2, 2, 128>}, {transform_indices = @transform_1, window_bounds = array<i64: 1, 1, 2, 2, 128>}, {pipeline_mode = #tpu.pipeline_mode<synchronous>, transform_indices = @transform_2, window_bounds = array<i64: 6, 128, 64>}, {pipeline_mode = #tpu.pipeline_mode<synchronous>, transform_indices = @transform_3, window_bounds = array<i64: 1, 64>}, {transform_indices = @transform_4, window_bounds = array<i64: 1, 1, 1, 64>}]} {
    %cst = arith.constant 0.000000e+00 : f32
    %0 = vector.broadcast %cst : f32 to vector<1x64xf32>
    %c0 = arith.constant 0 : index
    %c0_0 = arith.constant 0 : index
    %c0_1 = arith.constant 0 : index
    %c0_2 = arith.constant 0 : index
    %c0_3 = arith.constant 0 : index
    %1 = vector.load %arg2[%c0, %c0_0, %c0_1, %c0_2, %c0_3] : memref<1x1x2x2x128xbf16, #tpu.memory_space<vmem>>, vector<1x1x1x1x128xbf16>
    %2 = vector.shape_cast %1 : vector<1x1x1x1x128xbf16> to vector<1x1x128xbf16>
    %3 = vector.shape_cast %2 : vector<1x1x128xbf16> to vector<1x128xbf16>
    %c0_4 = arith.constant 0 : index
    %c0_5 = arith.constant 0 : index
    %c0_6 = arith.constant 0 : index
    %4 = vector.load %arg4[%c0_4, %c0_5, %c0_6] : memref<6x128x64xbf16, #tpu.memory_space<vmem>>, vector<1x128x64xbf16>
    %5 = vector.shape_cast %4 : vector<1x128x64xbf16> to vector<128x64xbf16>
    %cst_7 = arith.constant dense<0.000000e+00> : vector<1x64xf32>
    %6 = tpu.matmul %3, %5, %cst_7 {dimension_numbers = #tpu.dot_dimension_numbers<[1], [0], [0], [1], [0, 0, 1, 1], [], []>} : vector<1x128xbf16>, vector<128x64xbf16>, vector<1x64xf32> -> vector<1x64xf32>
    %7 = arith.addf %0, %6 : vector<1x64xf32>
    %c0_8 = arith.constant 0 : index
    %c0_9 = arith.constant 0 : index
    %c0_10 = arith.constant 0 : index
    %c1 = arith.constant 1 : index
    %c0_11 = arith.constant 0 : index
    %8 = vector.load %arg2[%c0_8, %c0_9, %c0_10, %c1, %c0_11] : memref<1x1x2x2x128xbf16, #tpu.memory_space<vmem>>, vector<1x1x1x1x128xbf16>
    %9 = vector.shape_cast %8 : vector<1x1x1x1x128xbf16> to vector<1x1x128xbf16>
    %10 = vector.shape_cast %9 : vector<1x1x128xbf16> to vector<1x128xbf16>
    %c1_12 = arith.constant 1 : index
    %c0_13 = arith.constant 0 : index
    %c0_14 = arith.constant 0 : index
    %11 = vector.load %arg4[%c1_12, %c0_13, %c0_14] : memref<6x128x64xbf16, #tpu.memory_space<vmem>>, vector<1x128x64xbf16>
    %12 = vector.shape_cast %11 : vector<1x128x64xbf16> to vector<128x64xbf16>
    %cst_15 = arith.constant dense<0.000000e+00> : vector<1x64xf32>
    %13 = tpu.matmul %10, %12, %cst_15 {dimension_numbers = #tpu.dot_dimension_numbers<[1], [0], [0], [1], [0, 0, 1, 1], [], []>} : vector<1x128xbf16>, vector<128x64xbf16>, vector<1x64xf32> -> vector<1x64xf32>
    %14 = arith.addf %7, %13 : vector<1x64xf32>
    %c0_16 = arith.constant 0 : index
    %c0_17 = arith.constant 0 : index
    %c1_18 = arith.constant 1 : index
    %c0_19 = arith.constant 0 : index
    %c0_20 = arith.constant 0 : index
    %15 = vector.load %arg2[%c0_16, %c0_17, %c1_18, %c0_19, %c0_20] : memref<1x1x2x2x128xbf16, #tpu.memory_space<vmem>>, vector<1x1x1x1x128xbf16>
    %16 = vector.shape_cast %15 : vector<1x1x1x1x128xbf16> to vector<1x1x128xbf16>
    %17 = vector.shape_cast %16 : vector<1x1x128xbf16> to vector<1x128xbf16>
    %c2 = arith.constant 2 : index
    %c0_21 = arith.constant 0 : index
    %c0_22 = arith.constant 0 : index
    %18 = vector.load %arg4[%c2, %c0_21, %c0_22] : memref<6x128x64xbf16, #tpu.memory_space<vmem>>, vector<1x128x64xbf16>
    %19 = vector.shape_cast %18 : vector<1x128x64xbf16> to vector<128x64xbf16>
    %cst_23 = arith.constant dense<0.000000e+00> : vector<1x64xf32>
    %20 = tpu.matmul %17, %19, %cst_23 {dimension_numbers = #tpu.dot_dimension_numbers<[1], [0], [0], [1], [0, 0, 1, 1], [], []>} : vector<1x128xbf16>, vector<128x64xbf16>, vector<1x64xf32> -> vector<1x64xf32>
    %21 = arith.addf %14, %20 : vector<1x64xf32>
    %c0_24 = arith.constant 0 : index
    %c0_25 = arith.constant 0 : index
    %c1_26 = arith.constant 1 : index
    %c1_27 = arith.constant 1 : index
    %c0_28 = arith.constant 0 : index
    %22 = vector.load %arg2[%c0_24, %c0_25, %c1_26, %c1_27, %c0_28] : memref<1x1x2x2x128xbf16, #tpu.memory_space<vmem>>, vector<1x1x1x1x128xbf16>
    %23 = vector.shape_cast %22 : vector<1x1x1x1x128xbf16> to vector<1x1x128xbf16>
    %24 = vector.shape_cast %23 : vector<1x1x128xbf16> to vector<1x128xbf16>
    %c3 = arith.constant 3 : index
    %c0_29 = arith.constant 0 : index
    %c0_30 = arith.constant 0 : index
    %25 = vector.load %arg4[%c3, %c0_29, %c0_30] : memref<6x128x64xbf16, #tpu.memory_space<vmem>>, vector<1x128x64xbf16>
    %26 = vector.shape_cast %25 : vector<1x128x64xbf16> to vector<128x64xbf16>
    %cst_31 = arith.constant dense<0.000000e+00> : vector<1x64xf32>
    %27 = tpu.matmul %24, %26, %cst_31 {dimension_numbers = #tpu.dot_dimension_numbers<[1], [0], [0], [1], [0, 0, 1, 1], [], []>} : vector<1x128xbf16>, vector<128x64xbf16>, vector<1x64xf32> -> vector<1x64xf32>
    %28 = arith.addf %21, %27 : vector<1x64xf32>
    %c0_32 = arith.constant 0 : index
    %c0_33 = arith.constant 0 : index
    %c0_34 = arith.constant 0 : index
    %c0_35 = arith.constant 0 : index
    %c0_36 = arith.constant 0 : index
    %29 = vector.load %arg3[%c0_32, %c0_33, %c0_34, %c0_35, %c0_36] : memref<1x1x2x2x128xbf16, #tpu.memory_space<vmem>>, vector<1x1x1x1x128xbf16>
    %30 = vector.shape_cast %29 : vector<1x1x1x1x128xbf16> to vector<1x1x128xbf16>
    %31 = vector.shape_cast %30 : vector<1x1x128xbf16> to vector<1x128xbf16>
    %c4 = arith.constant 4 : index
    %c0_37 = arith.constant 0 : index
    %c0_38 = arith.constant 0 : index
    %32 = vector.load %arg4[%c4, %c0_37, %c0_38] : memref<6x128x64xbf16, #tpu.memory_space<vmem>>, vector<1x128x64xbf16>
    %33 = vector.shape_cast %32 : vector<1x128x64xbf16> to vector<128x64xbf16>
    %cst_39 = arith.constant dense<0.000000e+00> : vector<1x64xf32>
    %34 = tpu.matmul %31, %33, %cst_39 {dimension_numbers = #tpu.dot_dimension_numbers<[1], [0], [0], [1], [0, 0, 1, 1], [], []>} : vector<1x128xbf16>, vector<128x64xbf16>, vector<1x64xf32> -> vector<1x64xf32>
    %35 = arith.addf %28, %34 : vector<1x64xf32>
    %c0_40 = arith.constant 0 : index
    %c0_41 = arith.constant 0 : index
    %c0_42 = arith.constant 0 : index
    %c1_43 = arith.constant 1 : index
    %c0_44 = arith.constant 0 : index
    %36 = vector.load %arg3[%c0_40, %c0_41, %c0_42, %c1_43, %c0_44] : memref<1x1x2x2x128xbf16, #tpu.memory_space<vmem>>, vector<1x1x1x1x128xbf16>
    %37 = vector.shape_cast %36 : vector<1x1x1x1x128xbf16> to vector<1x1x128xbf16>
    %38 = vector.shape_cast %37 : vector<1x1x128xbf16> to vector<1x128xbf16>
    %c5 = arith.constant 5 : index
    %c0_45 = arith.constant 0 : index
    %c0_46 = arith.constant 0 : index
    %39 = vector.load %arg4[%c5, %c0_45, %c0_46] : memref<6x128x64xbf16, #tpu.memory_space<vmem>>, vector<1x128x64xbf16>
    %40 = vector.shape_cast %39 : vector<1x128x64xbf16> to vector<128x64xbf16>
    %cst_47 = arith.constant dense<0.000000e+00> : vector<1x64xf32>
    %41 = tpu.matmul %38, %40, %cst_47 {dimension_numbers = #tpu.dot_dimension_numbers<[1], [0], [0], [1], [0, 0, 1, 1], [], []>} : vector<1x128xbf16>, vector<128x64xbf16>, vector<1x64xf32> -> vector<1x64xf32>
    %42 = arith.addf %35, %41 : vector<1x64xf32>
    %c0_48 = arith.constant 0 : index
    %c0_49 = arith.constant 0 : index
    %43 = vector.load %arg5[%c0_48, %c0_49] : memref<1x64xf32, #tpu.memory_space<vmem>>, vector<1x64xf32>
    %44 = arith.addf %42, %43 : vector<1x64xf32>
    %cst_50 = arith.constant 0.000000e+00 : f32
    %45 = vector.broadcast %cst_50 : f32 to vector<1x64xf32>
    %46 = arith.maximumf %44, %45 : vector<1x64xf32>
    %47 = vector.shape_cast %46 : vector<1x64xf32> to vector<1x1x64xf32>
    %48 = arith.truncf %47 : vector<1x1x64xf32> to vector<1x1x64xbf16>
    %c0_51 = arith.constant 0 : index
    %c0_52 = arith.constant 0 : index
    %c0_53 = arith.constant 0 : index
    %c0_54 = arith.constant 0 : index
    %49 = vector.load %arg6[%c0_51, %c0_52, %c0_53, %c0_54] : memref<1x1x1x64xbf16, #tpu.memory_space<vmem>>, vector<1x1x1x64xbf16>
    %50 = vector.shape_cast %49 : vector<1x1x1x64xbf16> to vector<1x1x64xbf16>
    %51 = vector.shape_cast %48 : vector<1x1x64xbf16> to vector<1x1x1x64xbf16>
    tpu.vector_store %arg6[%c0_51, %c0_52, %c0_53, %c0_54], %51 {strides = array<i32>} : memref<1x1x1x64xbf16, #tpu.memory_space<vmem>>, vector<1x1x1x64xbf16>,
    return
  }
  func.func @transform_0(%arg0: i32, %arg1: i32) -> (i32, i32, i32, i32, i32) {
    %c0_i32 = arith.constant 0 : i32
    %c0_i32_0 = arith.constant 0 : i32
    %c0_i32_1 = arith.constant 0 : i32
    %c0_i32_2 = arith.constant 0 : i32
    return %arg0, %arg1, %c0_i32, %c0_i32_0, %c0_i32_1 : i32, i32, i32, i32, i32
  }
  func.func @transform_1(%arg0: i32, %arg1: i32) -> (i32, i32, i32, i32, i32) {
    %c1_i32 = arith.constant 1 : i32
    %0 = arith.addi %arg1, %c1_i32 : i32
    %c1_i32_0 = arith.constant 1 : i32
    %1 = arith.muli %0, %c1_i32_0 : i32
    %c0_i32 = arith.constant 0 : i32
    %c0_i32_1 = arith.constant 0 : i32
    %c0_i32_2 = arith.constant 0 : i32
    %c0_i32_3 = arith.constant 0 : i32
    return %arg0, %1, %c0_i32, %c0_i32_1, %c0_i32_2 : i32, i32, i32, i32, i32
  }
  func.func @transform_2(%arg0: i32, %arg1: i32) -> (i32, i32, i32) {
    %c0_i32 = arith.constant 0 : i32
    %c0_i32_0 = arith.constant 0 : i32
    %c0_i32_1 = arith.constant 0 : i32
    %c0_i32_2 = arith.constant 0 : i32
    return %c0_i32, %c0_i32_0, %c0_i32_1 : i32, i32, i32
  }
  func.func @transform_3(%arg0: i32, %arg1: i32) -> (i32, i32) {
    %c0_i32 = arith.constant 0 : i32
    %c0_i32_0 = arith.constant 0 : i32
    %c0_i32_1 = arith.constant 0 : i32
    return %c0_i32, %c0_i32_0 : i32, i32
  }
  func.func @transform_4(%arg0: i32, %arg1: i32) -> (i32, i32, i32, i32) {
    %c0_i32 = arith.constant 0 : i32
    %c0_i32_0 = arith.constant 0 : i32
    %c0_i32_1 = arith.constant 0 : i32
    return %arg0, %arg1, %c0_i32, %c0_i32_0 : i32, i32, i32, i32
  }
}

</mosaic_0001>

<llo_original>
// kernel: timm_universal_encoder_forward.5
$region0: #{timm_universal_encoder_forward.5}
  #allocation0 [shape = 'u32[]', space=smem, size = 0x4, offset = 0x4, fixed_abs, tag = 'smem constant byte address 0x4 - core index']
  #allocation1 [shape = 'u32[144,128]{1,0:T(1,128)}', space=vmem, size = 0x12000, scoped, tag = 'internal scratch']
  %s0 = inlined_call_operand.vmem [shape: bf16[2,17,2,17,8], index: 0, kind: input, shape index: {}, may-alias: {0,1}]
  %s1 = inlined_call_operand.vmem [shape: bf16[2,17,2,17,8], index: 1, kind: input, shape index: {}, may-alias: {0,1}]
  %s2 = inlined_call_operand.vmem [shape: bf16[6,8,8], index: 2, kind: input, shape index: {}]
  %s3 = inlined_call_operand.vmem [shape: f32[1,8], index: 3, kind: input, shape index: {}]
  %s4 = inlined_call_operand.vmem [shape: bf16[2,16,16,8], index: 4, kind: output, shape index: {}]
  %s5 = sld [smem:[#allocation0]]
  $region49: #{timm_universal_encoder_forward.5} parent=0
    _
  %s7 = ssub.s32 1, %s5
  %s8 = scalar_select 0, %s7, %s5
  loop: start=0, step=1, limit=6
  $region2: #{timm_universal_encoder_forward.5} parent=0 // loop_pre_header
    _
  $region3: #{timm_universal_encoder_forward.5} parent=0 // loop_header
    %s10 = sphi 0, %s14
    %p11 = scmp.ge.s32.totalorder %s10, 6
    %s17 = sphi 0, %s29
    %s18 = sphi 0, %s25
    %s19 = sphi 0, %s17
    %s20 = sphi 0, %s18
    %s21 = sphi 0, %s19
    %s22 = sphi 0, %s20
    %s34 = sphi 0, %s36
    %s37 = sphi 0, %s34
    %s38 = sphi 0, %s37
    %s54 = sphi 0, %s38
    %s66 = sphi 0, %s68
    %s69 = sphi 0, %s66
    %s70 = sphi 0, %s69
    %s86 = sphi 0, %s70
    %s90 = sphi 0, %s90
    %s92 = sphi 0, %s90
    %s93 = sphi 0, %s92
    %s107 = sphi 0, %s93
    %s111 = sphi 0, %s111
    %s113 = sphi 0, %s111
    %s114 = sphi 0, %s113
    %s128 = sphi 0, %s114
    %s136 = sphi 0, %s138
    %s139 = sphi 0, %s136
    %s140 = sphi 0, %s139
    %s156 = sphi 0, %s140
  $region4: #{timm_universal_encoder_forward.5} parent=0 // loop_header_branch
    %13 = sbr.rel (%p11) target = $region8
  $region5: #{timm_universal_encoder_forward.5} parent=0 // loop_body
    %s15 = ssub.s32 %s10, 1
    %s16 = ssub.s32 %s10, 2
    %s23 = sadd.s32 1, %s18
    %p24 = scmp.ge.s32.totalorder %s23, 2
    %s25 = scalar_select %p24, 0, %s23
    %s26 = sadd.s32 1, %s17
    %s27 = scalar_select %p24, %s26, %s17
    %p28 = scmp.ge.s32.totalorder %s27, 2
    %s29 = scalar_select %p28, 0, %s27
    %s30 = ssub.s32 %s17, %s29
    %s31 = ssub.s32 %s18, %s25
    %s32 = sor.u32 %s30, %s31
    %p33 = scmp.eq.s32.totalorder %s32, 0
    %s35 = sadd.s32 %s34, 1
    %s36 = scalar_select %p33, %s34, %s35
    %p39 = pneg %p33
    %p40 = scmp.eq.s32.totalorder %s10, 3
    %p41 = por %p39, %p40
    %p42 = scmp.ne.s32.totalorder %s34, %s37
    %p43 = scmp.eq.s32.totalorder %s10, 0
    %p44 = por %p42, %p43
    %p45 = scmp.ne.s32.totalorder %s34, %s37
    %p46 = scmp.eq.s32.totalorder %s15, 3
    %p47 = por %p45, %p46
    %p48 = scmp.ne.s32.totalorder %s37, %s38
    %p49 = scmp.eq.s32.totalorder %s15, 0
    %p50 = por %p48, %p49
    %p51 = scmp.ne.s32.totalorder %s37, %s38
    %p52 = scmp.eq.s32.totalorder %s16, 3
    %p53 = por %p51, %p52
    %p55 = scmp.ne.s32.totalorder %s38, %s54
    %p56 = scmp.eq.s32.totalorder %s16, 0
    %p57 = por %p55, %p56
    %s58 = sadd.s32 %s18, 1
    %s59 = smul.u32 %s58, 8
    %s60 = sadd.s32 %s25, 1
    %s61 = smul.u32 %s60, 8
    %s62 = ssub.s32 %s17, %s29
    %s63 = ssub.s32 %s59, %s61
    %s64 = sor.u32 %s62, %s63
    %p65 = scmp.eq.s32.totalorder %s64, 0
    %s67 = sadd.s32 %s66, 1
    %s68 = scalar_select %p65, %s66, %s67
    %p71 = pneg %p65
    %p72 = scmp.eq.s32.totalorder %s10, 3
    %p73 = por %p71, %p72
    %p74 = scmp.ne.s32.totalorder %s66, %s69
    %p75 = scmp.eq.s32.totalorder %s10, 0
    %p76 = por %p74, %p75
    %p77 = scmp.ne.s32.totalorder %s66, %s69
    %p78 = scmp.eq.s32.totalorder %s15, 3
    %p79 = por %p77, %p78
    %p80 = scmp.ne.s32.totalorder %s69, %s70
    %p81 = scmp.eq.s32.totalorder %s15, 0
    %p82 = por %p80, %p81
    %p83 = scmp.ne.s32.totalorder %s69, %s70
    %p84 = scmp.eq.s32.totalorder %s16, 3
    %p85 = por %p83, %p84
    %p87 = scmp.ne.s32.totalorder %s70, %s86
    %p88 = scmp.eq.s32.totalorder %s16, 0
    %p89 = por %p87, %p88
    %s91 = sadd.s32 %s90, 1
    %p94 = scmp.eq.s32.totalorder %s10, 3
    %p95 = scmp.ne.s32.totalorder %s90, %s92
    %p96 = scmp.eq.s32.totalorder %s10, 0
    %p97 = por %p95, %p96
    %p98 = scmp.ne.s32.totalorder %s90, %s92
    %p99 = scmp.eq.s32.totalorder %s15, 3
    %p100 = por %p98, %p99
    %p101 = scmp.ne.s32.totalorder %s92, %s93
    %p102 = scmp.eq.s32.totalorder %s15, 0
    %p103 = por %p101, %p102
    %p104 = scmp.ne.s32.totalorder %s92, %s93
    %p105 = scmp.eq.s32.totalorder %s16, 3
    %p106 = por %p104, %p105
    %p108 = scmp.ne.s32.totalorder %s93, %s107
    %p109 = scmp.eq.s32.totalorder %s16, 0
    %p110 = por %p108, %p109
    %s112 = sadd.s32 %s111, 1
    %p115 = scmp.eq.s32.totalorder %s10, 3
    %p116 = scmp.ne.s32.totalorder %s111, %s113
    %p117 = scmp.eq.s32.totalorder %s10, 0
    %p118 = por %p116, %p117
    %p119 = scmp.ne.s32.totalorder %s111, %s113
    %p120 = scmp.eq.s32.totalorder %s15, 3
    %p121 = por %p119, %p120
    %p122 = scmp.ne.s32.totalorder %s113, %s114
    %p123 = scmp.eq.s32.totalorder %s15, 0
    %p124 = por %p122, %p123
    %p125 = scmp.ne.s32.totalorder %s113, %s114
    %p126 = scmp.eq.s32.totalorder %s16, 3
    %p127 = por %p125, %p126
    %p129 = scmp.ne.s32.totalorder %s114, %s128
    %p130 = scmp.eq.s32.totalorder %s16, 0
    %p131 = por %p129, %p130
    %s132 = ssub.s32 %s17, %s29
    %s133 = ssub.s32 %s18, %s25
    %s134 = sor.u32 %s132, %s133
    %p135 = scmp.eq.s32.totalorder %s134, 0
    %s137 = sadd.s32 %s136, 1
    %s138 = scalar_select %p135, %s136, %s137
    %p141 = pneg %p135
    %p142 = scmp.eq.s32.totalorder %s10, 3
    %p143 = por %p141, %p142
    %p144 = scmp.ne.s32.totalorder %s136, %s139
    %p145 = scmp.eq.s32.totalorder %s10, 0
    %p146 = por %p144, %p145
    %p147 = scmp.ne.s32.totalorder %s136, %s139
    %p148 = scmp.eq.s32.totalorder %s15, 3
    %p149 = por %p147, %p148
    %p150 = scmp.ne.s32.totalorder %s139, %s140
    %p151 = scmp.eq.s32.totalorder %s15, 0
    %p152 = por %p150, %p151
    %p153 = scmp.ne.s32.totalorder %s139, %s140
    %p154 = scmp.eq.s32.totalorder %s16, 3
    %p155 = por %p153, %p154
    %p157 = scmp.ne.s32.totalorder %s140, %s156
    %p158 = scmp.eq.s32.totalorder %s16, 0
    %p159 = por %p157, %p158
    %p160 = scmp.le.s32.totalorder 1, %s10
    %p161 = scmp.lt.s32.totalorder %s10, 5
    %p162 = pnand %p160, %p161
    %p163 = pneg %p162
    // Predicated region
    $region9: #{timm_universal_encoder_forward.5} parent=5 // pred_check
      _
    $region10: #{timm_universal_encoder_forward.5} parent=5 // pred_check_branch
      %165 = sbr.rel (%p162) target = $region12
    $region11: #{timm_universal_encoder_forward.5} parent=5 // pred_region
      %s166 = ssub.s32 %s10, 1
      // Predicated region
      $region13: #{timm_universal_encoder_forward.5} parent=11 // pred_check
        %p167 = pneg %p103
      $region14: #{timm_universal_encoder_forward.5} parent=11 // pred_check_branch
        %169 = sbr.rel (%p167) target = $region16
      $region15: #{timm_universal_encoder_forward.5} parent=11 // pred_region
        _
      $region16: #{timm_universal_encoder_forward.5} parent=11 // pred_fallthru
        _
      // Predicated region
      $region17: #{timm_universal_encoder_forward.5} parent=11 // pred_check
        %p170 = pneg %p124
      $region18: #{timm_universal_encoder_forward.5} parent=11 // pred_check_branch
        %172 = sbr.rel (%p170) target = $region20
      $region19: #{timm_universal_encoder_forward.5} parent=11 // pred_region
        _
      $region20: #{timm_universal_encoder_forward.5} parent=11 // pred_fallthru
        _
    $region12: #{timm_universal_encoder_forward.5} parent=5 // pred_fallthru
      _
    %p173 = scmp.lt.s32.totalorder %s10, 4
    // Predicated region
    $region21: #{timm_universal_encoder_forward.5} parent=5 // pred_check
      %p174 = pneg %p173
    $region22: #{timm_universal_encoder_forward.5} parent=5 // pred_check_branch
      %176 = sbr.rel (%p174) target = $region24
    $region23: #{timm_universal_encoder_forward.5} parent=5 // pred_region
      // Predicated region
      $region25: #{timm_universal_encoder_forward.5} parent=23 // pred_check
        %p177 = pneg %p44
      $region26: #{timm_universal_encoder_forward.5} parent=23 // pred_check_branch
        %179 = sbr.rel (%p177) target = $region28
      $region27: #{timm_universal_encoder_forward.5} parent=23 // pred_region
        %s180 = smul.u32 8, %s18
        %s181 = ssub.s32 17, %s180
        %p182 = scmp.lt.s32.totalorder %s181, 8
        %s183 = scalar_select %p182, %s181, 8
        %s184 = smul.u32 64, %s183
        %s185 = smul.u32 %s184, 2
        %s186 = smul.u32 %s185, 3
        %p187 = scmp.lt.s32.totalorder %s17, 1
        %s188 = scalar_select %p187, %s17, 1
        %p189 = scmp.lt.s32.totalorder %s180, 16
        %s190 = scalar_select %p189, %s180, 16
        %s191 = smul.addr %s190, 6
        %s192 = smul.addr %s188, 102
        %s193 = sadd.s32 %s191, %s192
        %s194 = smul.addr %s193, 4
        %s195 = scalar_lea.vmem %s0, %s194
        %s196 = smul.u32 8, %s18
        %s197 = ssub.s32 17, %s196
        %p198 = scmp.lt.s32.totalorder %s197, 8
        %s199 = scalar_select %p198, %s197, 8
        %s200 = smul.u32 64, %s199
        %s201 = smul.u32 %s200, 2
        %s202 = smul.u32 %s201, 3
      $region28: #{timm_universal_encoder_forward.5} parent=23 // pred_fallthru
        _
      // Predicated region
      $region29: #{timm_universal_encoder_forward.5} parent=23 // pred_check
        %p203 = pneg %p76
      $region30: #{timm_universal_encoder_forward.5} parent=23 // pred_check_branch
        %205 = sbr.rel (%p203) target = $region32
      $region31: #{timm_universal_encoder_forward.5} parent=23 // pred_region
        %s206 = sadd.s32 %s18, 1
        %s207 = smul.u32 %s206, 8
        %p208 = scmp.lt.s32.totalorder %s17, 1
        %s209 = scalar_select %p208, %s17, 1
        %p210 = scmp.lt.s32.totalorder %s207, 16
        %s211 = scalar_select %p210, %s207, 16
        %s212 = smul.addr %s211, 6
        %s213 = smul.addr %s209, 102
        %s214 = sadd.s32 %s212, %s213
        %s215 = smul.addr %s214, 4
        %s216 = scalar_lea.vmem %s1, %s215
        %s217 = sadd.s32 %s18, 1
        %s218 = smul.u32 %s217, 8
      $region32: #{timm_universal_encoder_forward.5} parent=23 // pred_fallthru
        _
    $region24: #{timm_universal_encoder_forward.5} parent=5 // pred_fallthru
      _
    %p219 = scmp.le.s32.totalorder 1, %s10
    %p220 = scmp.lt.s32.totalorder %s10, 5
    %p221 = pnand %p219, %p220
    %p222 = pneg %p221
    // Predicated region
    $region33: #{timm_universal_encoder_forward.5} parent=5 // pred_check
      _
    $region34: #{timm_universal_encoder_forward.5} parent=5 // pred_check_branch
      %224 = sbr.rel (%p221) target = $region36
    $region35: #{timm_universal_encoder_forward.5} parent=5 // pred_region
      %s225 = ssub.s32 %s10, 1
      %s226 = smul.u32 8, %s20
      %s227 = ssub.s32 17, %s226
      %p228 = scmp.lt.s32.totalorder %s227, 8
      %s229 = scalar_select %p228, %s227, 8
      %s230 = smul.u32 64, %s229
      %s231 = smul.u32 %s230, 2
      %s232 = smul.u32 %s231, 3
      %p233 = scmp.lt.s32.totalorder %s19, 1
      %s234 = scalar_select %p233, %s19, 1
      %p235 = scmp.lt.s32.totalorder %s226, 16
      %s236 = scalar_select %p235, %s226, 16
      %s237 = smul.addr %s236, 6
      %s238 = smul.addr %s234, 102
      %s239 = sadd.s32 %s237, %s238
      %s240 = smul.addr %s239, 4
      %s241 = scalar_lea.vmem %s0, %s240
      %p242 = pneg %p50
      %p243 = pneg %p47
      %s244 = sadd.s32 %s20, 1
      %s245 = smul.u32 %s244, 8
      %p246 = scmp.lt.s32.totalorder %s19, 1
      %s247 = scalar_select %p246, %s19, 1
      %p248 = scmp.lt.s32.totalorder %s245, 16
      %s249 = scalar_select %p248, %s245, 16
      %s250 = smul.addr %s249, 6
      %s251 = smul.addr %s247, 102
      %s252 = sadd.s32 %s250, %s251
      %s253 = smul.addr %s252, 4
      %s254 = scalar_lea.vmem %s1, %s253
      %p255 = pneg %p82
      %p256 = pneg %p79
      %p257 = pneg %p103
      %p258 = pneg %p100
      %p259 = pneg %p124
      %p260 = pneg %p121
      %p261 = pneg %p152
      %p262 = pneg %p149
      %s263 = smul.u32 8, %s20
      %p264 = scmp.lt.s32.totalorder %s19, 1
      %s265 = scalar_select %p264, %s19, 1
      %p266 = scmp.lt.s32.totalorder %s263, 15
      %s267 = scalar_select %p266, %s263, 15
      %s268 = smul.addr %s267, 2
      %s269 = smul.addr %s265, 32
      %s270 = sadd.s32 %s268, %s269
      %s271 = smul.addr %s270, 4
      %s272 = scalar_lea.vmem %s4, %s271
      %s273 = smul.u32 8, %s20
      %s274 = ssub.s32 17, %s273
      %p275 = scmp.lt.s32.totalorder %s274, 8
      %s276 = scalar_select %p275, %s274, 8
      %s277 = smul.u32 64, %s276
      %s278 = smul.u32 %s277, 2
      %s279 = smul.u32 %s278, 3
      %p280 = scmp.lt.s32.totalorder %s19, 1
      %s281 = scalar_select %p280, %s19, 1
      %p282 = scmp.lt.s32.totalorder %s273, 16
      %s283 = scalar_select %p282, %s273, 16
      %s284 = smul.addr %s283, 6
      %s285 = smul.addr %s281, 102
      %s286 = sadd.s32 %s284, %s285
      %s287 = smul.addr %s286, 4
      %s288 = scalar_lea.vmem %s0, %s287
      %s289 = smul.u32 8, %s20
      %s290 = ssub.s32 17, %s289
      %p291 = scmp.lt.s32.totalorder %s290, 8
      %s292 = scalar_select %p291, %s290, 8
      %s293 = smul.u32 64, %s292
      %s294 = smul.u32 %s293, 2
      %s295 = smul.u32 %s294, 3
      %s296 = sadd.s32 %s20, 1
      %s297 = smul.u32 %s296, 8
      %p298 = scmp.lt.s32.totalorder %s19, 1
      %s299 = scalar_select %p298, %s19, 1
      %p300 = scmp.lt.s32.totalorder %s297, 16
      %s301 = scalar_select %p300, %s297, 16
      %s302 = smul.addr %s301, 6
      %s303 = smul.addr %s299, 102
      %s304 = sadd.s32 %s302, %s303
      %s305 = smul.addr %s304, 4
      %s306 = scalar_lea.vmem %s1, %s305
      %s307 = sadd.s32 %s20, 1
      %s308 = smul.u32 %s307, 8
      %s309 = smul.u32 8, %s20
      %p310 = scmp.lt.s32.totalorder %s19, 1
      %s311 = scalar_select %p310, %s19, 1
      %p312 = scmp.lt.s32.totalorder %s309, 15
      %s313 = scalar_select %p312, %s309, 15
      %s314 = smul.addr %s313, 2
      %s315 = smul.addr %s311, 32
      %s316 = sadd.s32 %s314, %s315
      %s317 = smul.addr %s316, 4
      %s318 = scalar_lea.vmem %s4, %s317
      %s319 = smul.u32 8, %s20
      %v321 = vld [vmem:[%s288] sm:$0xf]
      %v322 = vld [vmem:[%s288 + $0x4] sm:$0xf]
      %v323 = vld [vmem:[%s288 + $0x18] sm:$0xf]
      %v324 = vld [vmem:[%s288 + $0x1c] sm:$0xf]
      %v325 = vld [vmem:[%s288 + $0x30] sm:$0xf]
      %v326 = vld [vmem:[%s288 + $0x34] sm:$0xf]
      %v327 = vld [vmem:[%s288 + $0x48] sm:$0xf]
      %v328 = vld [vmem:[%s288 + $0x4c] sm:$0xf]
      %v329 = vld [vmem:[%s288 + $0x60] sm:$0xf]
      %v330 = vld [vmem:[%s288 + $0x64] sm:$0xf]
      %v331 = vld [vmem:[%s288 + $0x78] sm:$0xf]
      %v332 = vld [vmem:[%s288 + $0x7c] sm:$0xf]
      %v333 = vld [vmem:[%s288 + $0x90] sm:$0xf]
      %v334 = vld [vmem:[%s288 + $0x94] sm:$0xf]
      %v335 = vld [vmem:[%s288 + $0xa8] sm:$0xf]
      %v336 = vld [vmem:[%s288 + $0xac] sm:$0xf]
      %v337 = vld [vmem:[%s2] sm:$0xf]
      %v338 = vld [vmem:[%s288 + $0x8] sm:$0x1]
      %v339 = vld [vmem:[%s288 + $0x20] sm:$0x1]
      %v340 = vld [vmem:[%s288 + $0x38] sm:$0x1]
      %v341 = vld [vmem:[%s288 + $0x50] sm:$0x1]
      %v342 = vld [vmem:[%s288 + $0x68] sm:$0x1]
      %v343 = vld [vmem:[%s288 + $0x80] sm:$0x1]
      %v344 = vld [vmem:[%s288 + $0x98] sm:$0x1]
      %v345 = vld [vmem:[%s288 + $0xb0] sm:$0x1]
      %vm346 = vsmask.f32 3328
      %vm347 = vsmask.f32 7440
      %vm348 = vmor %vm346, %vm347
      %v350 = vshrl.u32 %v321, 16
      %v352 = vrot.slane %v350, 4
      %v353 = vshll.u32 %v321, 16
      %v355 = vrot.slane %v353, 5
      %v356 = vor.u32 %v352, %v355
      %v357 = vrot.slane %v356, 4
      %v359 = vshll.u32 %v322, 16
      %v361 = vrot.slane %v359, 5
      %v362 = vsel %vm348, %v357, %v361
      %v363 = vshrl.u32 %v322, 16
      %v365 = vrot.slane %v363, 4
      %v366 = vor.u32 %v365, %v361
      %v367 = vrot.slane %v366, 4
      %v369 = vshll.u32 %v338, 16
      %v371 = vrot.slane %v369, 5
      %v372 = vsel %vm348, %v367, %v371
      %v374 = vshrl.u32 %v323, 16
      %v376 = vrot.slane %v374, 4
      %v377 = vshll.u32 %v323, 16
      %v379 = vrot.slane %v377, 5
      %v380 = vor.u32 %v376, %v379
      %v381 = vrot.slane %v380, 4
      %v383 = vshll.u32 %v324, 16
      %v385 = vrot.slane %v383, 5
      %v386 = vsel %vm348, %v381, %v385
      %v387 = vshrl.u32 %v324, 16
      %v389 = vrot.slane %v387, 4
      %v390 = vor.u32 %v389, %v385
      %v391 = vrot.slane %v390, 4
      %v393 = vshll.u32 %v339, 16
      %v395 = vrot.slane %v393, 5
      %v396 = vsel %vm348, %v391, %v395
      %v398 = vshrl.u32 %v325, 16
      %v400 = vrot.slane %v398, 4
      %v401 = vshll.u32 %v325, 16
      %v403 = vrot.slane %v401, 5
      %v404 = vor.u32 %v400, %v403
      %v405 = vrot.slane %v404, 4
      %v407 = vshll.u32 %v326, 16
      %v409 = vrot.slane %v407, 5
      %v410 = vsel %vm348, %v405, %v409
      %v411 = vshrl.u32 %v326, 16
      %v413 = vrot.slane %v411, 4
      %v414 = vor.u32 %v413, %v409
      %v415 = vrot.slane %v414, 4
      %v417 = vshll.u32 %v340, 16
      %v419 = vrot.slane %v417, 5
      %v420 = vsel %vm348, %v415, %v419
      %v422 = vshrl.u32 %v327, 16
      %v424 = vrot.slane %v422, 4
      %v425 = vshll.u32 %v327, 16
      %v427 = vrot.slane %v425, 5
      %v428 = vor.u32 %v424, %v427
      %v429 = vrot.slane %v428, 4
      %v431 = vshll.u32 %v328, 16
      %v433 = vrot.slane %v431, 5
      %v434 = vsel %vm348, %v429, %v433
      %v435 = vshrl.u32 %v328, 16
      %v437 = vrot.slane %v435, 4
      %v438 = vor.u32 %v437, %v433
      %v439 = vrot.slane %v438, 4
      %v441 = vshll.u32 %v341, 16
      %v443 = vrot.slane %v441, 5
      %v444 = vsel %vm348, %v439, %v443
      %v446 = vshrl.u32 %v329, 16
      %v448 = vrot.slane %v446, 4
      %v449 = vshll.u32 %v329, 16
      %v451 = vrot.slane %v449, 5
      %v452 = vor.u32 %v448, %v451
      %v453 = vrot.slane %v452, 4
      %v455 = vshll.u32 %v330, 16
      %v457 = vrot.slane %v455, 5
      %v458 = vsel %vm348, %v453, %v457
      %v459 = vshrl.u32 %v330, 16
      %v461 = vrot.slane %v459, 4
      %v462 = vor.u32 %v461, %v457
      %v463 = vrot.slane %v462, 4
      %v465 = vshll.u32 %v342, 16
      %v467 = vrot.slane %v465, 5
      %v468 = vsel %vm348, %v463, %v467
      %v470 = vshrl.u32 %v331, 16
      %v472 = vrot.slane %v470, 4
      %v473 = vshll.u32 %v331, 16
      %v475 = vrot.slane %v473, 5
      %v476 = vor.u32 %v472, %v475
      %v477 = vrot.slane %v476, 4
      %v479 = vshll.u32 %v332, 16
      %v481 = vrot.slane %v479, 5
      %v482 = vsel %vm348, %v477, %v481
      %v483 = vshrl.u32 %v332, 16
      %v485 = vrot.slane %v483, 4
      %v486 = vor.u32 %v485, %v481
      %v487 = vrot.slane %v486, 4
      %v489 = vshll.u32 %v343, 16
      %v491 = vrot.slane %v489, 5
      %v492 = vsel %vm348, %v487, %v491
      %v494 = vshrl.u32 %v333, 16
      %v496 = vrot.slane %v494, 4
      %v497 = vshll.u32 %v333, 16
      %v499 = vrot.slane %v497, 5
      %v500 = vor.u32 %v496, %v499
      %v501 = vrot.slane %v500, 4
      %v503 = vshll.u32 %v334, 16
      %v505 = vrot.slane %v503, 5
      %v506 = vsel %vm348, %v501, %v505
      %v507 = vshrl.u32 %v334, 16
      %v509 = vrot.slane %v507, 4
      %v510 = vor.u32 %v509, %v505
      %v511 = vrot.slane %v510, 4
      %v513 = vshll.u32 %v344, 16
      %v515 = vrot.slane %v513, 5
      %v516 = vsel %vm348, %v511, %v515
      %v518 = vshrl.u32 %v335, 16
      %v520 = vrot.slane %v518, 4
      %v521 = vshll.u32 %v335, 16
      %v523 = vrot.slane %v521, 5
      %v524 = vor.u32 %v520, %v523
      %v525 = vrot.slane %v524, 4
      %v527 = vshll.u32 %v336, 16
      %v529 = vrot.slane %v527, 5
      %v530 = vsel %vm348, %v525, %v529
      %v531 = vshrl.u32 %v336, 16
      %v533 = vrot.slane %v531, 4
      %v534 = vor.u32 %v533, %v529
      %v535 = vrot.slane %v534, 4
      %v537 = vshll.u32 %v345, 16
      %v539 = vrot.slane %v537, 5
      %v540 = vsel %vm348, %v535, %v539
      %s541 = scalar_lea.vmem %s2, 4
      %v542 = vld [vmem:[%s541] sm:$0xf]
      %v543 = vunpack.c.l.b16 %v362
      %v544 = vunpack.c.l.b16 %v372
      %v545 = vunpack.c.l.b16 %v386
      %v546 = vunpack.c.l.b16 %v396
      %v547 = vunpack.c.l.b16 %v410
      %v548 = vunpack.c.l.b16 %v420
      %v549 = vunpack.c.l.b16 %v434
      %v550 = vunpack.c.l.b16 %v444
      %v551 = vunpack.c.l.b16 %v458
      %v552 = vunpack.c.l.b16 %v468
      %v553 = vunpack.c.l.b16 %v482
      %v554 = vunpack.c.l.b16 %v492
      %v555 = vunpack.c.l.b16 %v506
      %v556 = vunpack.c.l.b16 %v516
      %v557 = vunpack.c.l.b16 %v530
      %v558 = vunpack.c.l.b16 %v540
      %v559 = vpack.c.b16 %v544, %v543
      %v560 = vpack.c.b16 %v546, %v545
      %v561 = vpack.c.b16 %v548, %v547
      %v562 = vpack.c.b16 %v550, %v549
      %v563 = vpack.c.b16 %v552, %v551
      %v564 = vpack.c.b16 %v554, %v553
      %v565 = vpack.c.b16 %v556, %v555
      %v566 = vpack.c.b16 %v558, %v557
      %vm567 = vcmask 64512
      %v569 = vsel %vm567, %v559, 0
      %v572 = vsel %vm567, %v560, 0
      %v575 = vsel %vm567, %v561, 0
      %v578 = vsel %vm567, %v562, 0
      %v581 = vsel %vm567, %v563, 0
      %v584 = vsel %vm567, %v564, 0
      %v587 = vsel %vm567, %v565, 0
      %v590 = vsel %vm567, %v566, 0
      %vm592 = vcmask 1043456
      %v594 = vsel %vm592, %v542, 0
      %596 = vmatprep.subr.bf16.mxu0 0
      %597 = vmatpush1.bf16.msra.mxu0 0
      %598 = vmatprep.subr.bf16.mxu0 0
      %599 = vmatpush1.bf16.msra.mxu0 0
      %600 = vmatprep.subr.bf16.mxu0 0
      %601 = vmatpush1.bf16.msra.mxu0 0
      %602 = vmatprep.subr.bf16.mxu0 0
      %603 = vmatpush1.bf16.msra.mxu0 0
      %604 = vmatprep.subr.bf16.mxu0 0
      %605 = vmatpush1.bf16.msra.mxu0 0
      %606 = vmatprep.subr.bf16.mxu0 0
      %607 = vmatpush1.bf16.msra.mxu0 0
      %608 = vmatprep.subr.bf16.mxu0 0
      %609 = vmatpush1.bf16.msra.mxu0 0
      %610 = vmatprep.subr.bf16.mxu0 0
      %611 = vmatpush1.bf16.msra.mxu0 %v594
      %612 = vmatprep.subr.bf16.mxu0 0
      %613 = vmatpush2.bf16.msra.mxu0 0
      %614 = vmatprep.subr.bf16.mxu0 0
      %615 = vmatpush2.bf16.msra.mxu0 0
      %616 = vmatprep.subr.bf16.mxu0 0
      %617 = vmatpush2.bf16.msra.mxu0 0
      %618 = vmatprep.subr.bf16.mxu0 0
      %619 = vmatpush2.bf16.msra.mxu0 0
      %620 = vmatprep.subr.bf16.mxu0 0
      %621 = vmatpush2.bf16.msra.mxu0 0
      %622 = vmatprep.subr.bf16.mxu0 0
      %623 = vmatpush2.bf16.msra.mxu0 0
      %624 = vmatprep.subr.bf16.mxu0 0
      %625 = vmatpush2.bf16.msra.mxu0 0
      %626 = vmatprep.subr.bf16.mxu0 0
      %627 = vmatpush2.bf16.msra.mxu0 0
      %628 = vmatprep.mubr.bf16.mxu0 0
      %629 = vmatmul.mubr.bf16.gmra.mxu0 %v569
      %v630 = vpop.f32.mrf.mxu0
      %v631 = vadd.f32 0.0, %v630
      %v632 = vpop.f32.mrf.mxu0
      %v633 = vpop.f32.mrf.mxu0
      %v634 = vadd.f32 0.0, %v633
      %v635 = vpop.f32.mrf.mxu0
      %636 = vmatprep.mubr.bf16.mxu0 0
      %637 = vmatmul.mubr.bf16.gmra.mxu0 %v572
      %v638 = vpop.f32.mrf.mxu0
      %v639 = vadd.f32 0.0, %v638
      %v640 = vpop.f32.mrf.mxu0
      %v641 = vpop.f32.mrf.mxu0
      %v642 = vadd.f32 0.0, %v641
      %v643 = vpop.f32.mrf.mxu0
      %644 = vmatprep.mubr.bf16.mxu0 0
      %645 = vmatmul.mubr.bf16.gmra.mxu0 %v575
      %v646 = vpop.f32.mrf.mxu0
      %v647 = vadd.f32 0.0, %v646
      %v648 = vpop.f32.mrf.mxu0
      %v649 = vpop.f32.mrf.mxu0
      %v650 = vadd.f32 0.0, %v649
      %v651 = vpop.f32.mrf.mxu0
      %652 = vmatprep.mubr.bf16.mxu0 0
      %653 = vmatmul.mubr.bf16.gmra.mxu0 %v578
      %v654 = vpop.f32.mrf.mxu0
      %v655 = vadd.f32 0.0, %v654
      %v656 = vpop.f32.mrf.mxu0
      %v657 = vpop.f32.mrf.mxu0
      %v658 = vadd.f32 0.0, %v657
      %v659 = vpop.f32.mrf.mxu0
      %660 = vmatprep.mubr.bf16.mxu0 0
      %661 = vmatmul.mubr.bf16.gmra.mxu0 %v581
      %v662 = vpop.f32.mrf.mxu0
      %v663 = vadd.f32 0.0, %v662
      %v664 = vpop.f32.mrf.mxu0
      %v665 = vpop.f32.mrf.mxu0
      %v666 = vadd.f32 0.0, %v665
      %v667 = vpop.f32.mrf.mxu0
      %668 = vmatprep.mubr.bf16.mxu0 0
      %669 = vmatmul.mubr.bf16.gmra.mxu0 %v584
      %v670 = vpop.f32.mrf.mxu0
      %v671 = vadd.f32 0.0, %v670
      %v672 = vpop.f32.mrf.mxu0
      %v673 = vpop.f32.mrf.mxu0
      %v674 = vadd.f32 0.0, %v673
      %v675 = vpop.f32.mrf.mxu0
      %676 = vmatprep.mubr.bf16.mxu0 0
      %677 = vmatmul.mubr.bf16.gmra.mxu0 %v587
      %v678 = vpop.f32.mrf.mxu0
      %v679 = vadd.f32 0.0, %v678
      %v680 = vpop.f32.mrf.mxu0
      %v681 = vpop.f32.mrf.mxu0
      %v682 = vadd.f32 0.0, %v681
      %v683 = vpop.f32.mrf.mxu0
      %684 = vmatprep.mubr.bf16.mxu0 0
      %685 = vmatmul.mubr.bf16.gmra.mxu0 %v590
      %v686 = vpop.f32.mrf.mxu0
      %v687 = vadd.f32 0.0, %v686
      %v688 = vpop.f32.mrf.mxu0
      %v689 = vpop.f32.mrf.mxu0
      %v690 = vadd.f32 0.0, %v689
      %v691 = vpop.f32.mrf.mxu0
      %692 = vdwg.mxu0
      %v709 = vunpack.c.l.b16 %v321
      %v710 = vunpack.c.l.b16 %v322
      %v711 = vunpack.c.l.b16 %v323
      %v712 = vunpack.c.l.b16 %v324
      %v713 = vunpack.c.l.b16 %v325
      %v714 = vunpack.c.l.b16 %v326
      %v715 = vunpack.c.l.b16 %v327
      %v716 = vunpack.c.l.b16 %v328
      %v717 = vunpack.c.l.b16 %v329
      %v718 = vunpack.c.l.b16 %v330
      %v719 = vunpack.c.l.b16 %v331
      %v720 = vunpack.c.l.b16 %v332
      %v721 = vunpack.c.l.b16 %v333
      %v722 = vunpack.c.l.b16 %v334
      %v723 = vunpack.c.l.b16 %v335
      %v724 = vunpack.c.l.b16 %v336
      %v725 = vpack.c.b16 %v710, %v709
      %v726 = vpack.c.b16 %v712, %v711
      %v727 = vpack.c.b16 %v714, %v713
      %v728 = vpack.c.b16 %v716, %v715
      %v729 = vpack.c.b16 %v718, %v717
      %v730 = vpack.c.b16 %v720, %v719
      %v731 = vpack.c.b16 %v722, %v721
      %v732 = vpack.c.b16 %v724, %v723
      %v734 = vsel %vm567, %v725, 0
      %v737 = vsel %vm567, %v726, 0
      %v740 = vsel %vm567, %v727, 0
      %v743 = vsel %vm567, %v728, 0
      %v746 = vsel %vm567, %v729, 0
      %v749 = vsel %vm567, %v730, 0
      %v752 = vsel %vm567, %v731, 0
      %v755 = vsel %vm567, %v732, 0
      %v758 = vsel %vm592, %v337, 0
      %760 = vmatprep.subr.bf16.mxu0 0
      %761 = vmatpush1.bf16.msra.mxu0 0
      %762 = vmatprep.subr.bf16.mxu0 0
      %763 = vmatpush1.bf16.msra.mxu0 0
      %764 = vmatprep.subr.bf16.mxu0 0
      %765 = vmatpush1.bf16.msra.mxu0 0
      %766 = vmatprep.subr.bf16.mxu0 0
      %767 = vmatpush1.bf16.msra.mxu0 0
      %768 = vmatprep.subr.bf16.mxu0 0
      %769 = vmatpush1.bf16.msra.mxu0 0
      %770 = vmatprep.subr.bf16.mxu0 0
      %771 = vmatpush1.bf16.msra.mxu0 0
      %772 = vmatprep.subr.bf16.mxu0 0
      %773 = vmatpush1.bf16.msra.mxu0 0
      %774 = vmatprep.subr.bf16.mxu0 0
      %775 = vmatpush1.bf16.msra.mxu0 %v758
      %776 = vmatprep.subr.bf16.mxu0 0
      %777 = vmatpush2.bf16.msra.mxu0 0
      %778 = vmatprep.subr.bf16.mxu0 0
      %779 = vmatpush2.bf16.msra.mxu0 0
      %780 = vmatprep.subr.bf16.mxu0 0
      %781 = vmatpush2.bf16.msra.mxu0 0
      %782 = vmatprep.subr.bf16.mxu0 0
      %783 = vmatpush2.bf16.msra.mxu0 0
      %784 = vmatprep.subr.bf16.mxu0 0
      %785 = vmatpush2.bf16.msra.mxu0 0
      %786 = vmatprep.subr.bf16.mxu0 0
      %787 = vmatpush2.bf16.msra.mxu0 0
      %788 = vmatprep.subr.bf16.mxu0 0
      %789 = vmatpush2.bf16.msra.mxu0 0
      %790 = vmatprep.subr.bf16.mxu0 0
      %791 = vmatpush2.bf16.msra.mxu0 0
      %792 = vmatprep.mubr.bf16.mxu0 0
      %793 = vmatmul.mubr.bf16.gmra.mxu0 %v734
      %v794 = vpop.f32.mrf.mxu0
      %v795 = vadd.f32 %v631, %v794
      %v796 = vpop.f32.mrf.mxu0
      %v797 = vpop.f32.mrf.mxu0
      %v798 = vadd.f32 %v634, %v797
      %v799 = vpop.f32.mrf.mxu0
      %800 = vmatprep.mubr.bf16.mxu0 0
      %801 = vmatmul.mubr.bf16.gmra.mxu0 %v737
      %v802 = vpop.f32.mrf.mxu0
      %v803 = vadd.f32 %v639, %v802
      %v804 = vpop.f32.mrf.mxu0
      %v805 = vpop.f32.mrf.mxu0
      %v806 = vadd.f32 %v642, %v805
      %v807 = vpop.f32.mrf.mxu0
      %808 = vmatprep.mubr.bf16.mxu0 0
      %809 = vmatmul.mubr.bf16.gmra.mxu0 %v740
      %v810 = vpop.f32.mrf.mxu0
      %v811 = vadd.f32 %v647, %v810
      %v812 = vpop.f32.mrf.mxu0
      %v813 = vpop.f32.mrf.mxu0
      %v814 = vadd.f32 %v650, %v813
      %v815 = vpop.f32.mrf.mxu0
      %816 = vmatprep.mubr.bf16.mxu0 0
      %817 = vmatmul.mubr.bf16.gmra.mxu0 %v743
      %v818 = vpop.f32.mrf.mxu0
      %v819 = vadd.f32 %v655, %v818
      %v820 = vpop.f32.mrf.mxu0
      %v821 = vpop.f32.mrf.mxu0
      %v822 = vadd.f32 %v658, %v821
      %v823 = vpop.f32.mrf.mxu0
      %824 = vmatprep.mubr.bf16.mxu0 0
      %825 = vmatmul.mubr.bf16.gmra.mxu0 %v746
      %v826 = vpop.f32.mrf.mxu0
      %v827 = vadd.f32 %v663, %v826
      %v828 = vpop.f32.mrf.mxu0
      %v829 = vpop.f32.mrf.mxu0
      %v830 = vadd.f32 %v666, %v829
      %v831 = vpop.f32.mrf.mxu0
      %832 = vmatprep.mubr.bf16.mxu0 0
      %833 = vmatmul.mubr.bf16.gmra.mxu0 %v749
      %v834 = vpop.f32.mrf.mxu0
      %v835 = vadd.f32 %v671, %v834
      %v836 = vpop.f32.mrf.mxu0
      %v837 = vpop.f32.mrf.mxu0
      %v838 = vadd.f32 %v674, %v837
      %v839 = vpop.f32.mrf.mxu0
      %840 = vmatprep.mubr.bf16.mxu0 0
      %841 = vmatmul.mubr.bf16.gmra.mxu0 %v752
      %v842 = vpop.f32.mrf.mxu0
      %v843 = vadd.f32 %v679, %v842
      %v844 = vpop.f32.mrf.mxu0
      %v845 = vpop.f32.mrf.mxu0
      %v846 = vadd.f32 %v682, %v845
      %v847 = vpop.f32.mrf.mxu0
      %848 = vmatprep.mubr.bf16.mxu0 0
      %849 = vmatmul.mubr.bf16.gmra.mxu0 %v755
      %v850 = vpop.f32.mrf.mxu0
      %v851 = vadd.f32 %v687, %v850
      %v852 = vpop.f32.mrf.mxu0
      %v853 = vpop.f32.mrf.mxu0
      %v854 = vadd.f32 %v690, %v853
      %v855 = vpop.f32.mrf.mxu0
      %856 = vdwg.mxu0
      %s857 = scalar_lea.vmem %s288, 12
      %v858 = vld [vmem:[%s857] sm:$0xf]
      %v859 = vld [vmem:[%s857 + $0x4] sm:$0xf]
      %v860 = vld [vmem:[%s857 + $0x18] sm:$0xf]
      %v861 = vld [vmem:[%s857 + $0x1c] sm:$0xf]
      %v862 = vld [vmem:[%s857 + $0x30] sm:$0xf]
      %v863 = vld [vmem:[%s857 + $0x34] sm:$0xf]
      %v864 = vld [vmem:[%s857 + $0x48] sm:$0xf]
      %v865 = vld [vmem:[%s857 + $0x4c] sm:$0xf]
      %v866 = vld [vmem:[%s857 + $0x60] sm:$0xf]
      %v867 = vld [vmem:[%s857 + $0x64] sm:$0xf]
      %v868 = vld [vmem:[%s857 + $0x78] sm:$0xf]
      %v869 = vld [vmem:[%s857 + $0x7c] sm:$0xf]
      %v870 = vld [vmem:[%s857 + $0x90] sm:$0xf]
      %v871 = vld [vmem:[%s857 + $0x94] sm:$0xf]
      %v872 = vld [vmem:[%s857 + $0xa8] sm:$0xf]
      %v873 = vld [vmem:[%s857 + $0xac] sm:$0xf]
      %s874 = scalar_lea.vmem %s2, 8
      %v875 = vld [vmem:[%s874] sm:$0xf]
      %v892 = vunpack.c.l.b16 %v858
      %v893 = vunpack.c.l.b16 %v859
      %v894 = vunpack.c.l.b16 %v860
      %v895 = vunpack.c.l.b16 %v861
      %v896 = vunpack.c.l.b16 %v862
      %v897 = vunpack.c.l.b16 %v863
      %v898 = vunpack.c.l.b16 %v864
      %v899 = vunpack.c.l.b16 %v865
      %v900 = vunpack.c.l.b16 %v866
      %v901 = vunpack.c.l.b16 %v867
      %v902 = vunpack.c.l.b16 %v868
      %v903 = vunpack.c.l.b16 %v869
      %v904 = vunpack.c.l.b16 %v870
      %v905 = vunpack.c.l.b16 %v871
      %v906 = vunpack.c.l.b16 %v872
      %v907 = vunpack.c.l.b16 %v873
      %v908 = vpack.c.b16 %v893, %v892
      %v909 = vpack.c.b16 %v895, %v894
      %v910 = vpack.c.b16 %v897, %v896
      %v911 = vpack.c.b16 %v899, %v898
      %v912 = vpack.c.b16 %v901, %v900
      %v913 = vpack.c.b16 %v903, %v902
      %v914 = vpack.c.b16 %v905, %v904
      %v915 = vpack.c.b16 %v907, %v906
      %v917 = vsel %vm567, %v908, 0
      %v920 = vsel %vm567, %v909, 0
      %v923 = vsel %vm567, %v910, 0
      %v926 = vsel %vm567, %v911, 0
      %v929 = vsel %vm567, %v912, 0
      %v932 = vsel %vm567, %v913, 0
      %v935 = vsel %vm567, %v914, 0
      %v938 = vsel %vm567, %v915, 0
      %v941 = vsel %vm592, %v875, 0
      %943 = vmatprep.subr.bf16.mxu0 0
      %944 = vmatpush1.bf16.msra.mxu0 0
      %945 = vmatprep.subr.bf16.mxu0 0
      %946 = vmatpush1.bf16.msra.mxu0 0
      %947 = vmatprep.subr.bf16.mxu0 0
      %948 = vmatpush1.bf16.msra.mxu0 0
      %949 = vmatprep.subr.bf16.mxu0 0
      %950 = vmatpush1.bf16.msra.mxu0 0
      %951 = vmatprep.subr.bf16.mxu0 0
      %952 = vmatpush1.bf16.msra.mxu0 0
      %953 = vmatprep.subr.bf16.mxu0 0
      %954 = vmatpush1.bf16.msra.mxu0 0
      %955 = vmatprep.subr.bf16.mxu0 0
      %956 = vmatpush1.bf16.msra.mxu0 0
      %957 = vmatprep.subr.bf16.mxu0 0
      %958 = vmatpush1.bf16.msra.mxu0 %v941
      %959 = vmatprep.subr.bf16.mxu0 0
      %960 = vmatpush2.bf16.msra.mxu0 0
      %961 = vmatprep.subr.bf16.mxu0 0
      %962 = vmatpush2.bf16.msra.mxu0 0
      %963 = vmatprep.subr.bf16.mxu0 0
      %964 = vmatpush2.bf16.msra.mxu0 0
      %965 = vmatprep.subr.bf16.mxu0 0
      %966 = vmatpush2.bf16.msra.mxu0 0
      %967 = vmatprep.subr.bf16.mxu0 0
      %968 = vmatpush2.bf16.msra.mxu0 0
      %969 = vmatprep.subr.bf16.mxu0 0
      %970 = vmatpush2.bf16.msra.mxu0 0
      %971 = vmatprep.subr.bf16.mxu0 0
      %972 = vmatpush2.bf16.msra.mxu0 0
      %973 = vmatprep.subr.bf16.mxu0 0
      %974 = vmatpush2.bf16.msra.mxu0 0
      %975 = vmatprep.mubr.bf16.mxu0 0
      %976 = vmatmul.mubr.bf16.gmra.mxu0 %v917
      %v977 = vpop.f32.mrf.mxu0
      %v978 = vadd.f32 0.0, %v977
      %v979 = vpop.f32.mrf.mxu0
      %v980 = vpop.f32.mrf.mxu0
      %v981 = vadd.f32 0.0, %v980
      %v982 = vpop.f32.mrf.mxu0
      %983 = vmatprep.mubr.bf16.mxu0 0
      %984 = vmatmul.mubr.bf16.gmra.mxu0 %v920
      %v985 = vpop.f32.mrf.mxu0
      %v986 = vadd.f32 0.0, %v985
      %v987 = vpop.f32.mrf.mxu0
      %v988 = vpop.f32.mrf.mxu0
      %v989 = vadd.f32 0.0, %v988
      %v990 = vpop.f32.mrf.mxu0
      %991 = vmatprep.mubr.bf16.mxu0 0
      %992 = vmatmul.mubr.bf16.gmra.mxu0 %v923
      %v993 = vpop.f32.mrf.mxu0
      %v994 = vadd.f32 0.0, %v993
      %v995 = vpop.f32.mrf.mxu0
      %v996 = vpop.f32.mrf.mxu0
      %v997 = vadd.f32 0.0, %v996
      %v998 = vpop.f32.mrf.mxu0
      %999 = vmatprep.mubr.bf16.mxu0 0
      %1000 = vmatmul.mubr.bf16.gmra.mxu0 %v926
      %v1001 = vpop.f32.mrf.mxu0
      %v1002 = vadd.f32 0.0, %v1001
      %v1003 = vpop.f32.mrf.mxu0
      %v1004 = vpop.f32.mrf.mxu0
      %v1005 = vadd.f32 0.0, %v1004
      %v1006 = vpop.f32.mrf.mxu0
      %1007 = vmatprep.mubr.bf16.mxu0 0
      %1008 = vmatmul.mubr.bf16.gmra.mxu0 %v929
      %v1009 = vpop.f32.mrf.mxu0
      %v1010 = vadd.f32 0.0, %v1009
      %v1011 = vpop.f32.mrf.mxu0
      %v1012 = vpop.f32.mrf.mxu0
      %v1013 = vadd.f32 0.0, %v1012
      %v1014 = vpop.f32.mrf.mxu0
      %1015 = vmatprep.mubr.bf16.mxu0 0
      %1016 = vmatmul.mubr.bf16.gmra.mxu0 %v932
      %v1017 = vpop.f32.mrf.mxu0
      %v1018 = vadd.f32 0.0, %v1017
      %v1019 = vpop.f32.mrf.mxu0
      %v1020 = vpop.f32.mrf.mxu0
      %v1021 = vadd.f32 0.0, %v1020
      %v1022 = vpop.f32.mrf.mxu0
      %1023 = vmatprep.mubr.bf16.mxu0 0
      %1024 = vmatmul.mubr.bf16.gmra.mxu0 %v935
      %v1025 = vpop.f32.mrf.mxu0
      %v1026 = vadd.f32 0.0, %v1025
      %v1027 = vpop.f32.mrf.mxu0
      %v1028 = vpop.f32.mrf.mxu0
      %v1029 = vadd.f32 0.0, %v1028
      %v1030 = vpop.f32.mrf.mxu0
      %1031 = vmatprep.mubr.bf16.mxu0 0
      %1032 = vmatmul.mubr.bf16.gmra.mxu0 %v938
      %v1033 = vpop.f32.mrf.mxu0
      %v1034 = vadd.f32 0.0, %v1033
      %v1035 = vpop.f32.mrf.mxu0
      %v1036 = vpop.f32.mrf.mxu0
      %v1037 = vadd.f32 0.0, %v1036
      %v1038 = vpop.f32.mrf.mxu0
      %1039 = vdwg.mxu0
      %v1040 = vadd.f32 %v795, %v978
      %v1041 = vadd.f32 %v798, %v981
      %v1042 = vadd.f32 %v803, %v986
      %v1043 = vadd.f32 %v806, %v989
      %v1044 = vadd.f32 %v811, %v994
      %v1045 = vadd.f32 %v814, %v997
      %v1046 = vadd.f32 %v819, %v1002
      %v1047 = vadd.f32 %v822, %v1005
      %v1048 = vadd.f32 %v827, %v1010
      %v1049 = vadd.f32 %v830, %v1013
      %v1050 = vadd.f32 %v835, %v1018
      %v1051 = vadd.f32 %v838, %v1021
      %v1052 = vadd.f32 %v843, %v1026
      %v1053 = vadd.f32 %v846, %v1029
      %v1054 = vadd.f32 %v851, %v1034
      %v1055 = vadd.f32 %v854, %v1037
      %v1056 = vld [vmem:[%s857] sm:$0xf]
      %v1057 = vld [vmem:[%s857 + $0x4] sm:$0xf]
      %v1058 = vld [vmem:[%s857 + $0x8] sm:$0x1]
      %v1059 = vld [vmem:[%s857 + $0x18] sm:$0xf]
      %v1060 = vld [vmem:[%s857 + $0x1c] sm:$0xf]
      %v1061 = vld [vmem:[%s857 + $0x20] sm:$0x1]
      %v1062 = vld [vmem:[%s857 + $0x30] sm:$0xf]
      %v1063 = vld [vmem:[%s857 + $0x34] sm:$0xf]
      %v1064 = vld [vmem:[%s857 + $0x38] sm:$0x1]
      %v1065 = vld [vmem:[%s857 + $0x48] sm:$0xf]
      %v1066 = vld [vmem:[%s857 + $0x4c] sm:$0xf]
      %v1067 = vld [vmem:[%s857 + $0x50] sm:$0x1]
      %v1068 = vld [vmem:[%s857 + $0x60] sm:$0xf]
      %v1069 = vld [vmem:[%s857 + $0x64] sm:$0xf]
      %v1070 = vld [vmem:[%s857 + $0x68] sm:$0x1]
      %v1071 = vld [vmem:[%s857 + $0x78] sm:$0xf]
      %v1072 = vld [vmem:[%s857 + $0x7c] sm:$0xf]
      %v1073 = vld [vmem:[%s857 + $0x80] sm:$0x1]
      %v1074 = vld [vmem:[%s857 + $0x90] sm:$0xf]
      %v1075 = vld [vmem:[%s857 + $0x94] sm:$0xf]
      %v1076 = vld [vmem:[%s857 + $0x98] sm:$0x1]
      %v1077 = vld [vmem:[%s857 + $0xa8] sm:$0xf]
      %v1078 = vld [vmem:[%s857 + $0xac] sm:$0xf]
      %v1079 = vld [vmem:[%s857 + $0xb0] sm:$0x1]
      %v1081 = vshrl.u32 %v1056, 16
      %v1083 = vrot.slane %v1081, 4
      %v1084 = vshll.u32 %v1056, 16
      %v1086 = vrot.slane %v1084, 5
      %v1087 = vor.u32 %v1083, %v1086
      %v1088 = vrot.slane %v1087, 4
      %v1090 = vshll.u32 %v1057, 16
      %v1092 = vrot.slane %v1090, 5
      %v1093 = vsel %vm348, %v1088, %v1092
      %v1094 = vshrl.u32 %v1057, 16
      %v1096 = vrot.slane %v1094, 4
      %v1097 = vor.u32 %v1096, %v1092
      %v1098 = vrot.slane %v1097, 4
      %v1100 = vshll.u32 %v1058, 16
      %v1102 = vrot.slane %v1100, 5
      %v1103 = vsel %vm348, %v1098, %v1102
      %v1105 = vshrl.u32 %v1059, 16
      %v1107 = vrot.slane %v1105, 4
      %v1108 = vshll.u32 %v1059, 16
      %v1110 = vrot.slane %v1108, 5
      %v1111 = vor.u32 %v1107, %v1110
      %v1112 = vrot.slane %v1111, 4
      %v1114 = vshll.u32 %v1060, 16
      %v1116 = vrot.slane %v1114, 5
      %v1117 = vsel %vm348, %v1112, %v1116
      %v1118 = vshrl.u32 %v1060, 16
      %v1120 = vrot.slane %v1118, 4
      %v1121 = vor.u32 %v1120, %v1116
      %v1122 = vrot.slane %v1121, 4
      %v1124 = vshll.u32 %v1061, 16
      %v1126 = vrot.slane %v1124, 5
      %v1127 = vsel %vm348, %v1122, %v1126
      %v1129 = vshrl.u32 %v1062, 16
      %v1131 = vrot.slane %v1129, 4
      %v1132 = vshll.u32 %v1062, 16
      %v1134 = vrot.slane %v1132, 5
      %v1135 = vor.u32 %v1131, %v1134
      %v1136 = vrot.slane %v1135, 4
      %v1138 = vshll.u32 %v1063, 16
      %v1140 = vrot.slane %v1138, 5
      %v1141 = vsel %vm348, %v1136, %v1140
      %v1142 = vshrl.u32 %v1063, 16
      %v1144 = vrot.slane %v1142, 4
      %v1145 = vor.u32 %v1144, %v1140
      %v1146 = vrot.slane %v1145, 4
      %v1148 = vshll.u32 %v1064, 16
      %v1150 = vrot.slane %v1148, 5
      %v1151 = vsel %vm348, %v1146, %v1150
      %v1153 = vshrl.u32 %v1065, 16
      %v1155 = vrot.slane %v1153, 4
      %v1156 = vshll.u32 %v1065, 16
      %v1158 = vrot.slane %v1156, 5
      %v1159 = vor.u32 %v1155, %v1158
      %v1160 = vrot.slane %v1159, 4
      %v1162 = vshll.u32 %v1066, 16
      %v1164 = vrot.slane %v1162, 5
      %v1165 = vsel %vm348, %v1160, %v1164
      %v1166 = vshrl.u32 %v1066, 16
      %v1168 = vrot.slane %v1166, 4
      %v1169 = vor.u32 %v1168, %v1164
      %v1170 = vrot.slane %v1169, 4
      %v1172 = vshll.u32 %v1067, 16
      %v1174 = vrot.slane %v1172, 5
      %v1175 = vsel %vm348, %v1170, %v1174
      %v1177 = vshrl.u32 %v1068, 16
      %v1179 = vrot.slane %v1177, 4
      %v1180 = vshll.u32 %v1068, 16
      %v1182 = vrot.slane %v1180, 5
      %v1183 = vor.u32 %v1179, %v1182
      %v1184 = vrot.slane %v1183, 4
      %v1186 = vshll.u32 %v1069, 16
      %v1188 = vrot.slane %v1186, 5
      %v1189 = vsel %vm348, %v1184, %v1188
      %v1190 = vshrl.u32 %v1069, 16
      %v1192 = vrot.slane %v1190, 4
      %v1193 = vor.u32 %v1192, %v1188
      %v1194 = vrot.slane %v1193, 4
      %v1196 = vshll.u32 %v1070, 16
      %v1198 = vrot.slane %v1196, 5
      %v1199 = vsel %vm348, %v1194, %v1198
      %v1201 = vshrl.u32 %v1071, 16
      %v1203 = vrot.slane %v1201, 4
      %v1204 = vshll.u32 %v1071, 16
      %v1206 = vrot.slane %v1204, 5
      %v1207 = vor.u32 %v1203, %v1206
      %v1208 = vrot.slane %v1207, 4
      %v1210 = vshll.u32 %v1072, 16
      %v1212 = vrot.slane %v1210, 5
      %v1213 = vsel %vm348, %v1208, %v1212
      %v1214 = vshrl.u32 %v1072, 16
      %v1216 = vrot.slane %v1214, 4
      %v1217 = vor.u32 %v1216, %v1212
      %v1218 = vrot.slane %v1217, 4
      %v1220 = vshll.u32 %v1073, 16
      %v1222 = vrot.slane %v1220, 5
      %v1223 = vsel %vm348, %v1218, %v1222
      %v1225 = vshrl.u32 %v1074, 16
      %v1227 = vrot.slane %v1225, 4
      %v1228 = vshll.u32 %v1074, 16
      %v1230 = vrot.slane %v1228, 5
      %v1231 = vor.u32 %v1227, %v1230
      %v1232 = vrot.slane %v1231, 4
      %v1234 = vshll.u32 %v1075, 16
      %v1236 = vrot.slane %v1234, 5
      %v1237 = vsel %vm348, %v1232, %v1236
      %v1238 = vshrl.u32 %v1075, 16
      %v1240 = vrot.slane %v1238, 4
      %v1241 = vor.u32 %v1240, %v1236
      %v1242 = vrot.slane %v1241, 4
      %v1244 = vshll.u32 %v1076, 16
      %v1246 = vrot.slane %v1244, 5
      %v1247 = vsel %vm348, %v1242, %v1246
      %v1249 = vshrl.u32 %v1077, 16
      %v1251 = vrot.slane %v1249, 4
      %v1252 = vshll.u32 %v1077, 16
      %v1254 = vrot.slane %v1252, 5
      %v1255 = vor.u32 %v1251, %v1254
      %v1256 = vrot.slane %v1255, 4
      %v1258 = vshll.u32 %v1078, 16
      %v1260 = vrot.slane %v1258, 5
      %v1261 = vsel %vm348, %v1256, %v1260
      %v1262 = vshrl.u32 %v1078, 16
      %v1264 = vrot.slane %v1262, 4
      %v1265 = vor.u32 %v1264, %v1260
      %v1266 = vrot.slane %v1265, 4
      %v1268 = vshll.u32 %v1079, 16
      %v1270 = vrot.slane %v1268, 5
      %v1271 = vsel %vm348, %v1266, %v1270
      %s1272 = scalar_lea.vmem %s2, 12
      %v1273 = vld [vmem:[%s1272] sm:$0xf]
      %v1274 = vunpack.c.l.b16 %v1093
      %v1275 = vunpack.c.l.b16 %v1103
      %v1276 = vunpack.c.l.b16 %v1117
      %v1277 = vunpack.c.l.b16 %v1127
      %v1278 = vunpack.c.l.b16 %v1141
      %v1279 = vunpack.c.l.b16 %v1151
      %v1280 = vunpack.c.l.b16 %v1165
      %v1281 = vunpack.c.l.b16 %v1175
      %v1282 = vunpack.c.l.b16 %v1189
      %v1283 = vunpack.c.l.b16 %v1199
      %v1284 = vunpack.c.l.b16 %v1213
      %v1285 = vunpack.c.l.b16 %v1223
      %v1286 = vunpack.c.l.b16 %v1237
      %v1287 = vunpack.c.l.b16 %v1247
      %v1288 = vunpack.c.l.b16 %v1261
      %v1289 = vunpack.c.l.b16 %v1271
      %v1290 = vpack.c.b16 %v1275, %v1274
      %v1291 = vpack.c.b16 %v1277, %v1276
      %v1292 = vpack.c.b16 %v1279, %v1278
      %v1293 = vpack.c.b16 %v1281, %v1280
      %v1294 = vpack.c.b16 %v1283, %v1282
      %v1295 = vpack.c.b16 %v1285, %v1284
      %v1296 = vpack.c.b16 %v1287, %v1286
      %v1297 = vpack.c.b16 %v1289, %v1288
      %v1299 = vsel %vm567, %v1290, 0
      %v1302 = vsel %vm567, %v1291, 0
      %v1305 = vsel %vm567, %v1292, 0
      %v1308 = vsel %vm567, %v1293, 0
      %v1311 = vsel %vm567, %v1294, 0
      %v1314 = vsel %vm567, %v1295, 0
      %v1317 = vsel %vm567, %v1296, 0
      %v1320 = vsel %vm567, %v1297, 0
      %v1323 = vsel %vm592, %v1273, 0
      %1325 = vmatprep.subr.bf16.mxu0 0
      %1326 = vmatpush1.bf16.msra.mxu0 0
      %1327 = vmatprep.subr.bf16.mxu0 0
      %1328 = vmatpush1.bf16.msra.mxu0 0
      %1329 = vmatprep.subr.bf16.mxu0 0
      %1330 = vmatpush1.bf16.msra.mxu0 0
      %1331 = vmatprep.subr.bf16.mxu0 0
      %1332 = vmatpush1.bf16.msra.mxu0 0
      %1333 = vmatprep.subr.bf16.mxu0 0
      %1334 = vmatpush1.bf16.msra.mxu0 0
      %1335 = vmatprep.subr.bf16.mxu0 0
      %1336 = vmatpush1.bf16.msra.mxu0 0
      %1337 = vmatprep.subr.bf16.mxu0 0
      %1338 = vmatpush1.bf16.msra.mxu0 0
      %1339 = vmatprep.subr.bf16.mxu0 0
      %1340 = vmatpush1.bf16.msra.mxu0 %v1323
      %1341 = vmatprep.subr.bf16.mxu0 0
      %1342 = vmatpush2.bf16.msra.mxu0 0
      %1343 = vmatprep.subr.bf16.mxu0 0
      %1344 = vmatpush2.bf16.msra.mxu0 0
      %1345 = vmatprep.subr.bf16.mxu0 0
      %1346 = vmatpush2.bf16.msra.mxu0 0
      %1347 = vmatprep.subr.bf16.mxu0 0
      %1348 = vmatpush2.bf16.msra.mxu0 0
      %1349 = vmatprep.subr.bf16.mxu0 0
      %1350 = vmatpush2.bf16.msra.mxu0 0
      %1351 = vmatprep.subr.bf16.mxu0 0
      %1352 = vmatpush2.bf16.msra.mxu0 0
      %1353 = vmatprep.subr.bf16.mxu0 0
      %1354 = vmatpush2.bf16.msra.mxu0 0
      %1355 = vmatprep.subr.bf16.mxu0 0
      %1356 = vmatpush2.bf16.msra.mxu0 0
      %1357 = vmatprep.mubr.bf16.mxu0 0
      %1358 = vmatmul.mubr.bf16.gmra.mxu0 %v1299
      %v1359 = vpop.f32.mrf.mxu0
      %v1360 = vadd.f32 0.0, %v1359
      %v1361 = vpop.f32.mrf.mxu0
      %v1362 = vpop.f32.mrf.mxu0
      %v1363 = vadd.f32 0.0, %v1362
      %v1364 = vpop.f32.mrf.mxu0
      %1365 = vmatprep.mubr.bf16.mxu0 0
      %1366 = vmatmul.mubr.bf16.gmra.mxu0 %v1302
      %v1367 = vpop.f32.mrf.mxu0
      %v1368 = vadd.f32 0.0, %v1367
      %v1369 = vpop.f32.mrf.mxu0
      %v1370 = vpop.f32.mrf.mxu0
      %v1371 = vadd.f32 0.0, %v1370
      %v1372 = vpop.f32.mrf.mxu0
      %1373 = vmatprep.mubr.bf16.mxu0 0
      %1374 = vmatmul.mubr.bf16.gmra.mxu0 %v1305
      %v1375 = vpop.f32.mrf.mxu0
      %v1376 = vadd.f32 0.0, %v1375
      %v1377 = vpop.f32.mrf.mxu0
      %v1378 = vpop.f32.mrf.mxu0
      %v1379 = vadd.f32 0.0, %v1378
      %v1380 = vpop.f32.mrf.mxu0
      %1381 = vmatprep.mubr.bf16.mxu0 0
      %1382 = vmatmul.mubr.bf16.gmra.mxu0 %v1308
      %v1383 = vpop.f32.mrf.mxu0
      %v1384 = vadd.f32 0.0, %v1383
      %v1385 = vpop.f32.mrf.mxu0
      %v1386 = vpop.f32.mrf.mxu0
      %v1387 = vadd.f32 0.0, %v1386
      %v1388 = vpop.f32.mrf.mxu0
      %1389 = vmatprep.mubr.bf16.mxu0 0
      %1390 = vmatmul.mubr.bf16.gmra.mxu0 %v1311
      %v1391 = vpop.f32.mrf.mxu0
      %v1392 = vadd.f32 0.0, %v1391
      %v1393 = vpop.f32.mrf.mxu0
      %v1394 = vpop.f32.mrf.mxu0
      %v1395 = vadd.f32 0.0, %v1394
      %v1396 = vpop.f32.mrf.mxu0
      %1397 = vmatprep.mubr.bf16.mxu0 0
      %1398 = vmatmul.mubr.bf16.gmra.mxu0 %v1314
      %v1399 = vpop.f32.mrf.mxu0
      %v1400 = vadd.f32 0.0, %v1399
      %v1401 = vpop.f32.mrf.mxu0
      %v1402 = vpop.f32.mrf.mxu0
      %v1403 = vadd.f32 0.0, %v1402
      %v1404 = vpop.f32.mrf.mxu0
      %1405 = vmatprep.mubr.bf16.mxu0 0
      %1406 = vmatmul.mubr.bf16.gmra.mxu0 %v1317
      %v1407 = vpop.f32.mrf.mxu0
      %v1408 = vadd.f32 0.0, %v1407
      %v1409 = vpop.f32.mrf.mxu0
      %v1410 = vpop.f32.mrf.mxu0
      %v1411 = vadd.f32 0.0, %v1410
      %v1412 = vpop.f32.mrf.mxu0
      %1413 = vmatprep.mubr.bf16.mxu0 0
      %1414 = vmatmul.mubr.bf16.gmra.mxu0 %v1320
      %v1415 = vpop.f32.mrf.mxu0
      %v1416 = vadd.f32 0.0, %v1415
      %v1417 = vpop.f32.mrf.mxu0
      %v1418 = vpop.f32.mrf.mxu0
      %v1419 = vadd.f32 0.0, %v1418
      %v1420 = vpop.f32.mrf.mxu0
      %1421 = vdwg.mxu0
      %v1422 = vadd.f32 %v1040, %v1360
      %v1423 = vadd.f32 %v1041, %v1363
      %v1424 = vadd.f32 %v1042, %v1368
      %v1425 = vadd.f32 %v1043, %v1371
      %v1426 = vadd.f32 %v1044, %v1376
      %v1427 = vadd.f32 %v1045, %v1379
      %v1428 = vadd.f32 %v1046, %v1384
      %v1429 = vadd.f32 %v1047, %v1387
      %v1430 = vadd.f32 %v1048, %v1392
      %v1431 = vadd.f32 %v1049, %v1395
      %v1432 = vadd.f32 %v1050, %v1400
      %v1433 = vadd.f32 %v1051, %v1403
      %v1434 = vadd.f32 %v1052, %v1408
      %v1435 = vadd.f32 %v1053, %v1411
      %v1436 = vadd.f32 %v1054, %v1416
      %v1437 = vadd.f32 %v1055, %v1419
      %v1438 = vld [vmem:[%s306] sm:$0xf]
      %v1439 = vld [vmem:[%s306 + $0x4] sm:$0xf]
      %s1440 = scalar_lea.vmem %s288, 24
      %v1441 = vld [vmem:[%s1440] sm:$0xf]
      %v1442 = vld [vmem:[%s1440 + $0x4] sm:$0xf]
      %v1443 = vld [vmem:[%s1440 + $0x18] sm:$0xf]
      %v1444 = vld [vmem:[%s1440 + $0x1c] sm:$0xf]
      %v1445 = vld [vmem:[%s1440 + $0x30] sm:$0xf]
      %v1446 = vld [vmem:[%s1440 + $0x34] sm:$0xf]
      %v1447 = vld [vmem:[%s1440 + $0x48] sm:$0xf]
      %v1448 = vld [vmem:[%s1440 + $0x4c] sm:$0xf]
      %v1449 = vld [vmem:[%s1440 + $0x60] sm:$0xf]
      %v1450 = vld [vmem:[%s1440 + $0x64] sm:$0xf]
      %v1451 = vld [vmem:[%s1440 + $0x78] sm:$0xf]
      %v1452 = vld [vmem:[%s1440 + $0x7c] sm:$0xf]
      %v1453 = vld [vmem:[%s1440 + $0x90] sm:$0xf]
      %v1454 = vld [vmem:[%s1440 + $0x94] sm:$0xf]
      %s1455 = scalar_lea.vmem %s2, 16
      %v1456 = vld [vmem:[%s1455] sm:$0xf]
      %v1473 = vunpack.c.l.b16 %v1441
      %v1474 = vunpack.c.l.b16 %v1442
      %v1475 = vunpack.c.l.b16 %v1443
      %v1476 = vunpack.c.l.b16 %v1444
      %v1477 = vunpack.c.l.b16 %v1445
      %v1478 = vunpack.c.l.b16 %v1446
      %v1479 = vunpack.c.l.b16 %v1447
      %v1480 = vunpack.c.l.b16 %v1448
      %v1481 = vunpack.c.l.b16 %v1449
      %v1482 = vunpack.c.l.b16 %v1450
      %v1483 = vunpack.c.l.b16 %v1451
      %v1484 = vunpack.c.l.b16 %v1452
      %v1485 = vunpack.c.l.b16 %v1453
      %v1486 = vunpack.c.l.b16 %v1454
      %v1487 = vunpack.c.l.b16 %v1438
      %v1488 = vunpack.c.l.b16 %v1439
      %v1489 = vpack.c.b16 %v1474, %v1473
      %v1490 = vpack.c.b16 %v1476, %v1475
      %v1491 = vpack.c.b16 %v1478, %v1477
      %v1492 = vpack.c.b16 %v1480, %v1479
      %v1493 = vpack.c.b16 %v1482, %v1481
      %v1494 = vpack.c.b16 %v1484, %v1483
      %v1495 = vpack.c.b16 %v1486, %v1485
      %v1496 = vpack.c.b16 %v1488, %v1487
      %v1498 = vsel %vm567, %v1489, 0
      %v1501 = vsel %vm567, %v1490, 0
      %v1504 = vsel %vm567, %v1491, 0
      %v1507 = vsel %vm567, %v1492, 0
      %v1510 = vsel %vm567, %v1493, 0
      %v1513 = vsel %vm567, %v1494, 0
      %v1516 = vsel %vm567, %v1495, 0
      %v1519 = vsel %vm567, %v1496, 0
      %v1522 = vsel %vm592, %v1456, 0
      %1524 = vmatprep.subr.bf16.mxu0 0
      %1525 = vmatpush1.bf16.msra.mxu0 0
      %1526 = vmatprep.subr.bf16.mxu0 0
      %1527 = vmatpush1.bf16.msra.mxu0 0
      %1528 = vmatprep.subr.bf16.mxu0 0
      %1529 = vmatpush1.bf16.msra.mxu0 0
      %1530 = vmatprep.subr.bf16.mxu0 0
      %1531 = vmatpush1.bf16.msra.mxu0 0
      %1532 = vmatprep.subr.bf16.mxu0 0
      %1533 = vmatpush1.bf16.msra.mxu0 0
      %1534 = vmatprep.subr.bf16.mxu0 0
      %1535 = vmatpush1.bf16.msra.mxu0 0
      %1536 = vmatprep.subr.bf16.mxu0 0
      %1537 = vmatpush1.bf16.msra.mxu0 0
      %1538 = vmatprep.subr.bf16.mxu0 0
      %1539 = vmatpush1.bf16.msra.mxu0 %v1522
      %1540 = vmatprep.subr.bf16.mxu0 0
      %1541 = vmatpush2.bf16.msra.mxu0 0
      %1542 = vmatprep.subr.bf16.mxu0 0
      %1543 = vmatpush2.bf16.msra.mxu0 0
      %1544 = vmatprep.subr.bf16.mxu0 0
      %1545 = vmatpush2.bf16.msra.mxu0 0
      %1546 = vmatprep.subr.bf16.mxu0 0
      %1547 = vmatpush2.bf16.msra.mxu0 0
      %1548 = vmatprep.subr.bf16.mxu0 0
      %1549 = vmatpush2.bf16.msra.mxu0 0
      %1550 = vmatprep.subr.bf16.mxu0 0
      %1551 = vmatpush2.bf16.msra.mxu0 0
      %1552 = vmatprep.subr.bf16.mxu0 0
      %1553 = vmatpush2.bf16.msra.mxu0 0
      %1554 = vmatprep.subr.bf16.mxu0 0
      %1555 = vmatpush2.bf16.msra.mxu0 0
      %1556 = vmatprep.mubr.bf16.mxu0 0
      %1557 = vmatmul.mubr.bf16.gmra.mxu0 %v1498
      %v1558 = vpop.f32.mrf.mxu0
      %v1559 = vadd.f32 0.0, %v1558
      %v1560 = vpop.f32.mrf.mxu0
      %v1561 = vpop.f32.mrf.mxu0
      %v1562 = vadd.f32 0.0, %v1561
      %v1563 = vpop.f32.mrf.mxu0
      %1564 = vmatprep.mubr.bf16.mxu0 0
      %1565 = vmatmul.mubr.bf16.gmra.mxu0 %v1501
      %v1566 = vpop.f32.mrf.mxu0
      %v1567 = vadd.f32 0.0, %v1566
      %v1568 = vpop.f32.mrf.mxu0
      %v1569 = vpop.f32.mrf.mxu0
      %v1570 = vadd.f32 0.0, %v1569
      %v1571 = vpop.f32.mrf.mxu0
      %1572 = vmatprep.mubr.bf16.mxu0 0
      %1573 = vmatmul.mubr.bf16.gmra.mxu0 %v1504
      %v1574 = vpop.f32.mrf.mxu0
      %v1575 = vadd.f32 0.0, %v1574
      %v1576 = vpop.f32.mrf.mxu0
      %v1577 = vpop.f32.mrf.mxu0
      %v1578 = vadd.f32 0.0, %v1577
      %v1579 = vpop.f32.mrf.mxu0
      %1580 = vmatprep.mubr.bf16.mxu0 0
      %1581 = vmatmul.mubr.bf16.gmra.mxu0 %v1507
      %v1582 = vpop.f32.mrf.mxu0
      %v1583 = vadd.f32 0.0, %v1582
      %v1584 = vpop.f32.mrf.mxu0
      %v1585 = vpop.f32.mrf.mxu0
      %v1586 = vadd.f32 0.0, %v1585
      %v1587 = vpop.f32.mrf.mxu0
      %1588 = vmatprep.mubr.bf16.mxu0 0
      %1589 = vmatmul.mubr.bf16.gmra.mxu0 %v1510
      %v1590 = vpop.f32.mrf.mxu0
      %v1591 = vadd.f32 0.0, %v1590
      %v1592 = vpop.f32.mrf.mxu0
      %v1593 = vpop.f32.mrf.mxu0
      %v1594 = vadd.f32 0.0, %v1593
      %v1595 = vpop.f32.mrf.mxu0
      %1596 = vmatprep.mubr.bf16.mxu0 0
      %1597 = vmatmul.mubr.bf16.gmra.mxu0 %v1513
      %v1598 = vpop.f32.mrf.mxu0
      %v1599 = vadd.f32 0.0, %v1598
      %v1600 = vpop.f32.mrf.mxu0
      %v1601 = vpop.f32.mrf.mxu0
      %v1602 = vadd.f32 0.0, %v1601
      %v1603 = vpop.f32.mrf.mxu0
      %1604 = vmatprep.mubr.bf16.mxu0 0
      %1605 = vmatmul.mubr.bf16.gmra.mxu0 %v1516
      %v1606 = vpop.f32.mrf.mxu0
      %v1607 = vadd.f32 0.0, %v1606
      %v1608 = vpop.f32.mrf.mxu0
      %v1609 = vpop.f32.mrf.mxu0
      %v1610 = vadd.f32 0.0, %v1609
      %v1611 = vpop.f32.mrf.mxu0
      %1612 = vmatprep.mubr.bf16.mxu0 0
      %1613 = vmatmul.mubr.bf16.gmra.mxu0 %v1519
      %v1614 = vpop.f32.mrf.mxu0
      %v1615 = vadd.f32 0.0, %v1614
      %v1616 = vpop.f32.mrf.mxu0
      %v1617 = vpop.f32.mrf.mxu0
      %v1618 = vadd.f32 0.0, %v1617
      %v1619 = vpop.f32.mrf.mxu0
      %1620 = vdwg.mxu0
      %v1621 = vadd.f32 %v1422, %v1559
      %v1622 = vadd.f32 %v1423, %v1562
      %v1623 = vadd.f32 %v1424, %v1567
      %v1624 = vadd.f32 %v1425, %v1570
      %v1625 = vadd.f32 %v1426, %v1575
      %v1626 = vadd.f32 %v1427, %v1578
      %v1627 = vadd.f32 %v1428, %v1583
      %v1628 = vadd.f32 %v1429, %v1586
      %v1629 = vadd.f32 %v1430, %v1591
      %v1630 = vadd.f32 %v1431, %v1594
      %v1631 = vadd.f32 %v1432, %v1599
      %v1632 = vadd.f32 %v1433, %v1602
      %v1633 = vadd.f32 %v1434, %v1607
      %v1634 = vadd.f32 %v1435, %v1610
      %v1635 = vadd.f32 %v1436, %v1615
      %v1636 = vadd.f32 %v1437, %v1618
      %v1637 = vld [vmem:[%s306] sm:$0xf]
      %v1638 = vld [vmem:[%s306 + $0x4] sm:$0xf]
      %v1639 = vld [vmem:[%s306 + $0x8] sm:$0x1]
      %v1640 = vld [vmem:[%s1440] sm:$0xf]
      %v1641 = vld [vmem:[%s1440 + $0x4] sm:$0xf]
      %v1642 = vld [vmem:[%s1440 + $0x8] sm:$0x1]
      %v1643 = vld [vmem:[%s1440 + $0x18] sm:$0xf]
      %v1644 = vld [vmem:[%s1440 + $0x1c] sm:$0xf]
      %v1645 = vld [vmem:[%s1440 + $0x20] sm:$0x1]
      %v1646 = vld [vmem:[%s1440 + $0x30] sm:$0xf]
      %v1647 = vld [vmem:[%s1440 + $0x34] sm:$0xf]
      %v1648 = vld [vmem:[%s1440 + $0x38] sm:$0x1]
      %v1649 = vld [vmem:[%s1440 + $0x48] sm:$0xf]
      %v1650 = vld [vmem:[%s1440 + $0x4c] sm:$0xf]
      %v1651 = vld [vmem:[%s1440 + $0x50] sm:$0x1]
      %v1652 = vld [vmem:[%s1440 + $0x60] sm:$0xf]
      %v1653 = vld [vmem:[%s1440 + $0x64] sm:$0xf]
      %v1654 = vld [vmem:[%s1440 + $0x68] sm:$0x1]
      %v1655 = vld [vmem:[%s1440 + $0x78] sm:$0xf]
      %v1656 = vld [vmem:[%s1440 + $0x7c] sm:$0xf]
      %v1657 = vld [vmem:[%s1440 + $0x80] sm:$0x1]
      %v1658 = vld [vmem:[%s1440 + $0x90] sm:$0xf]
      %v1659 = vld [vmem:[%s1440 + $0x94] sm:$0xf]
      %v1660 = vld [vmem:[%s1440 + $0x98] sm:$0x1]
      %v1662 = vshrl.u32 %v1640, 16
      %v1664 = vrot.slane %v1662, 4
      %v1665 = vshll.u32 %v1640, 16
      %v1667 = vrot.slane %v1665, 5
      %v1668 = vor.u32 %v1664, %v1667
      %v1669 = vrot.slane %v1668, 4
      %v1671 = vshll.u32 %v1641, 16
      %v1673 = vrot.slane %v1671, 5
      %v1674 = vsel %vm348, %v1669, %v1673
      %v1675 = vshrl.u32 %v1641, 16
      %v1677 = vrot.slane %v1675, 4
      %v1678 = vor.u32 %v1677, %v1673
      %v1679 = vrot.slane %v1678, 4
      %v1681 = vshll.u32 %v1642, 16
      %v1683 = vrot.slane %v1681, 5
      %v1684 = vsel %vm348, %v1679, %v1683
      %v1686 = vshrl.u32 %v1643, 16
      %v1688 = vrot.slane %v1686, 4
      %v1689 = vshll.u32 %v1643, 16
      %v1691 = vrot.slane %v1689, 5
      %v1692 = vor.u32 %v1688, %v1691
      %v1693 = vrot.slane %v1692, 4
      %v1695 = vshll.u32 %v1644, 16
      %v1697 = vrot.slane %v1695, 5
      %v1698 = vsel %vm348, %v1693, %v1697
      %v1699 = vshrl.u32 %v1644, 16
      %v1701 = vrot.slane %v1699, 4
      %v1702 = vor.u32 %v1701, %v1697
      %v1703 = vrot.slane %v1702, 4
      %v1705 = vshll.u32 %v1645, 16
      %v1707 = vrot.slane %v1705, 5
      %v1708 = vsel %vm348, %v1703, %v1707
      %v1710 = vshrl.u32 %v1646, 16
      %v1712 = vrot.slane %v1710, 4
      %v1713 = vshll.u32 %v1646, 16
      %v1715 = vrot.slane %v1713, 5
      %v1716 = vor.u32 %v1712, %v1715
      %v1717 = vrot.slane %v1716, 4
      %v1719 = vshll.u32 %v1647, 16
      %v1721 = vrot.slane %v1719, 5
      %v1722 = vsel %vm348, %v1717, %v1721
      %v1723 = vshrl.u32 %v1647, 16
      %v1725 = vrot.slane %v1723, 4
      %v1726 = vor.u32 %v1725, %v1721
      %v1727 = vrot.slane %v1726, 4
      %v1729 = vshll.u32 %v1648, 16
      %v1731 = vrot.slane %v1729, 5
      %v1732 = vsel %vm348, %v1727, %v1731
      %v1734 = vshrl.u32 %v1649, 16
      %v1736 = vrot.slane %v1734, 4
      %v1737 = vshll.u32 %v1649, 16
      %v1739 = vrot.slane %v1737, 5
      %v1740 = vor.u32 %v1736, %v1739
      %v1741 = vrot.slane %v1740, 4
      %v1743 = vshll.u32 %v1650, 16
      %v1745 = vrot.slane %v1743, 5
      %v1746 = vsel %vm348, %v1741, %v1745
      %v1747 = vshrl.u32 %v1650, 16
      %v1749 = vrot.slane %v1747, 4
      %v1750 = vor.u32 %v1749, %v1745
      %v1751 = vrot.slane %v1750, 4
      %v1753 = vshll.u32 %v1651, 16
      %v1755 = vrot.slane %v1753, 5
      %v1756 = vsel %vm348, %v1751, %v1755
      %v1758 = vshrl.u32 %v1652, 16
      %v1760 = vrot.slane %v1758, 4
      %v1761 = vshll.u32 %v1652, 16
      %v1763 = vrot.slane %v1761, 5
      %v1764 = vor.u32 %v1760, %v1763
      %v1765 = vrot.slane %v1764, 4
      %v1767 = vshll.u32 %v1653, 16
      %v1769 = vrot.slane %v1767, 5
      %v1770 = vsel %vm348, %v1765, %v1769
      %v1771 = vshrl.u32 %v1653, 16
      %v1773 = vrot.slane %v1771, 4
      %v1774 = vor.u32 %v1773, %v1769
      %v1775 = vrot.slane %v1774, 4
      %v1777 = vshll.u32 %v1654, 16
      %v1779 = vrot.slane %v1777, 5
      %v1780 = vsel %vm348, %v1775, %v1779
      %v1782 = vshrl.u32 %v1655, 16
      %v1784 = vrot.slane %v1782, 4
      %v1785 = vshll.u32 %v1655, 16
      %v1787 = vrot.slane %v1785, 5
      %v1788 = vor.u32 %v1784, %v1787
      %v1789 = vrot.slane %v1788, 4
      %v1791 = vshll.u32 %v1656, 16
      %v1793 = vrot.slane %v1791, 5
      %v1794 = vsel %vm348, %v1789, %v1793
      %v1795 = vshrl.u32 %v1656, 16
      %v1797 = vrot.slane %v1795, 4
      %v1798 = vor.u32 %v1797, %v1793
      %v1799 = vrot.slane %v1798, 4
      %v1801 = vshll.u32 %v1657, 16
      %v1803 = vrot.slane %v1801, 5
      %v1804 = vsel %vm348, %v1799, %v1803
      %v1806 = vshrl.u32 %v1658, 16
      %v1808 = vrot.slane %v1806, 4
      %v1809 = vshll.u32 %v1658, 16
      %v1811 = vrot.slane %v1809, 5
      %v1812 = vor.u32 %v1808, %v1811
      %v1813 = vrot.slane %v1812, 4
      %v1815 = vshll.u32 %v1659, 16
      %v1817 = vrot.slane %v1815, 5
      %v1818 = vsel %vm348, %v1813, %v1817
      %v1819 = vshrl.u32 %v1659, 16
      %v1821 = vrot.slane %v1819, 4
      %v1822 = vor.u32 %v1821, %v1817
      %v1823 = vrot.slane %v1822, 4
      %v1825 = vshll.u32 %v1660, 16
      %v1827 = vrot.slane %v1825, 5
      %v1828 = vsel %vm348, %v1823, %v1827
      %v1830 = vshrl.u32 %v1637, 16
      %v1832 = vrot.slane %v1830, 4
      %v1833 = vshll.u32 %v1637, 16
      %v1835 = vrot.slane %v1833, 5
      %v1836 = vor.u32 %v1832, %v1835
      %v1837 = vrot.slane %v1836, 4
      %v1839 = vshll.u32 %v1638, 16
      %v1841 = vrot.slane %v1839, 5
      %v1842 = vsel %vm348, %v1837, %v1841
      %v1843 = vshrl.u32 %v1638, 16
      %v1845 = vrot.slane %v1843, 4
      %v1846 = vor.u32 %v1845, %v1841
      %v1847 = vrot.slane %v1846, 4
      %v1849 = vshll.u32 %v1639, 16
      %v1851 = vrot.slane %v1849, 5
      %v1852 = vsel %vm348, %v1847, %v1851
      %s1853 = scalar_lea.vmem %s2, 20
      %v1854 = vld [vmem:[%s1853] sm:$0xf]
      %v1855 = vunpack.c.l.b16 %v1674
      %v1856 = vunpack.c.l.b16 %v1684
      %v1857 = vunpack.c.l.b16 %v1698
      %v1858 = vunpack.c.l.b16 %v1708
      %v1859 = vunpack.c.l.b16 %v1722
      %v1860 = vunpack.c.l.b16 %v1732
      %v1861 = vunpack.c.l.b16 %v1746
      %v1862 = vunpack.c.l.b16 %v1756
      %v1863 = vunpack.c.l.b16 %v1770
      %v1864 = vunpack.c.l.b16 %v1780
      %v1865 = vunpack.c.l.b16 %v1794
      %v1866 = vunpack.c.l.b16 %v1804
      %v1867 = vunpack.c.l.b16 %v1818
      %v1868 = vunpack.c.l.b16 %v1828
      %v1869 = vunpack.c.l.b16 %v1842
      %v1870 = vunpack.c.l.b16 %v1852
      %v1871 = vpack.c.b16 %v1856, %v1855
      %v1872 = vpack.c.b16 %v1858, %v1857
      %v1873 = vpack.c.b16 %v1860, %v1859
      %v1874 = vpack.c.b16 %v1862, %v1861
      %v1875 = vpack.c.b16 %v1864, %v1863
      %v1876 = vpack.c.b16 %v1866, %v1865
      %v1877 = vpack.c.b16 %v1868, %v1867
      %v1878 = vpack.c.b16 %v1870, %v1869
      %v1880 = vsel %vm567, %v1871, 0
      %v1883 = vsel %vm567, %v1872, 0
      %v1886 = vsel %vm567, %v1873, 0
      %v1889 = vsel %vm567, %v1874, 0
      %v1892 = vsel %vm567, %v1875, 0
      %v1895 = vsel %vm567, %v1876, 0
      %v1898 = vsel %vm567, %v1877, 0
      %v1901 = vsel %vm567, %v1878, 0
      %v1904 = vsel %vm592, %v1854, 0
      %1906 = vmatprep.subr.bf16.mxu0 0
      %1907 = vmatpush1.bf16.msra.mxu0 0
      %1908 = vmatprep.subr.bf16.mxu0 0
      %1909 = vmatpush1.bf16.msra.mxu0 0
      %1910 = vmatprep.subr.bf16.mxu0 0
      %1911 = vmatpush1.bf16.msra.mxu0 0
      %1912 = vmatprep.subr.bf16.mxu0 0
      %1913 = vmatpush1.bf16.msra.mxu0 0
      %1914 = vmatprep.subr.bf16.mxu0 0
      %1915 = vmatpush1.bf16.msra.mxu0 0
      %1916 = vmatprep.subr.bf16.mxu0 0
      %1917 = vmatpush1.bf16.msra.mxu0 0
      %1918 = vmatprep.subr.bf16.mxu0 0
      %1919 = vmatpush1.bf16.msra.mxu0 0
      %1920 = vmatprep.subr.bf16.mxu0 0
      %1921 = vmatpush1.bf16.msra.mxu0 %v1904
      %1922 = vmatprep.subr.bf16.mxu0 0
      %1923 = vmatpush2.bf16.msra.mxu0 0
      %1924 = vmatprep.subr.bf16.mxu0 0
      %1925 = vmatpush2.bf16.msra.mxu0 0
      %1926 = vmatprep.subr.bf16.mxu0 0
      %1927 = vmatpush2.bf16.msra.mxu0 0
      %1928 = vmatprep.subr.bf16.mxu0 0
      %1929 = vmatpush2.bf16.msra.mxu0 0
      %1930 = vmatprep.subr.bf16.mxu0 0
      %1931 = vmatpush2.bf16.msra.mxu0 0
      %1932 = vmatprep.subr.bf16.mxu0 0
      %1933 = vmatpush2.bf16.msra.mxu0 0
      %1934 = vmatprep.subr.bf16.mxu0 0
      %1935 = vmatpush2.bf16.msra.mxu0 0
      %1936 = vmatprep.subr.bf16.mxu0 0
      %1937 = vmatpush2.bf16.msra.mxu0 0
      %1938 = vmatprep.mubr.bf16.mxu0 0
      %1939 = vmatmul.mubr.bf16.gmra.mxu0 %v1880
      %v1940 = vpop.f32.mrf.mxu0
      %v1941 = vadd.f32 0.0, %v1940
      %v1942 = vpop.f32.mrf.mxu0
      %v1943 = vpop.f32.mrf.mxu0
      %v1944 = vadd.f32 0.0, %v1943
      %v1945 = vpop.f32.mrf.mxu0
      %1946 = vmatprep.mubr.bf16.mxu0 0
      %1947 = vmatmul.mubr.bf16.gmra.mxu0 %v1883
      %v1948 = vpop.f32.mrf.mxu0
      %v1949 = vadd.f32 0.0, %v1948
      %v1950 = vpop.f32.mrf.mxu0
      %v1951 = vpop.f32.mrf.mxu0
      %v1952 = vadd.f32 0.0, %v1951
      %v1953 = vpop.f32.mrf.mxu0
      %1954 = vmatprep.mubr.bf16.mxu0 0
      %1955 = vmatmul.mubr.bf16.gmra.mxu0 %v1886
      %v1956 = vpop.f32.mrf.mxu0
      %v1957 = vadd.f32 0.0, %v1956
      %v1958 = vpop.f32.mrf.mxu0
      %v1959 = vpop.f32.mrf.mxu0
      %v1960 = vadd.f32 0.0, %v1959
      %v1961 = vpop.f32.mrf.mxu0
      %1962 = vmatprep.mubr.bf16.mxu0 0
      %1963 = vmatmul.mubr.bf16.gmra.mxu0 %v1889
      %v1964 = vpop.f32.mrf.mxu0
      %v1965 = vadd.f32 0.0, %v1964
      %v1966 = vpop.f32.mrf.mxu0
      %v1967 = vpop.f32.mrf.mxu0
      %v1968 = vadd.f32 0.0, %v1967
      %v1969 = vpop.f32.mrf.mxu0
      %1970 = vmatprep.mubr.bf16.mxu0 0
      %1971 = vmatmul.mubr.bf16.gmra.mxu0 %v1892
      %v1972 = vpop.f32.mrf.mxu0
      %v1973 = vadd.f32 0.0, %v1972
      %v1974 = vpop.f32.mrf.mxu0
      %v1975 = vpop.f32.mrf.mxu0
      %v1976 = vadd.f32 0.0, %v1975
      %v1977 = vpop.f32.mrf.mxu0
      %1978 = vmatprep.mubr.bf16.mxu0 0
      %1979 = vmatmul.mubr.bf16.gmra.mxu0 %v1895
      %v1980 = vpop.f32.mrf.mxu0
      %v1981 = vadd.f32 0.0, %v1980
      %v1982 = vpop.f32.mrf.mxu0
      %v1983 = vpop.f32.mrf.mxu0
      %v1984 = vadd.f32 0.0, %v1983
      %v1985 = vpop.f32.mrf.mxu0
      %1986 = vmatprep.mubr.bf16.mxu0 0
      %1987 = vmatmul.mubr.bf16.gmra.mxu0 %v1898
      %v1988 = vpop.f32.mrf.mxu0
      %v1989 = vadd.f32 0.0, %v1988
      %v1990 = vpop.f32.mrf.mxu0
      %v1991 = vpop.f32.mrf.mxu0
      %v1992 = vadd.f32 0.0, %v1991
      %v1993 = vpop.f32.mrf.mxu0
      %1994 = vmatprep.mubr.bf16.mxu0 0
      %1995 = vmatmul.mubr.bf16.gmra.mxu0 %v1901
      %v1996 = vpop.f32.mrf.mxu0
      %v1997 = vadd.f32 0.0, %v1996
      %v1998 = vpop.f32.mrf.mxu0
      %v1999 = vpop.f32.mrf.mxu0
      %v2000 = vadd.f32 0.0, %v1999
      %v2001 = vpop.f32.mrf.mxu0
      %2002 = vdwg.mxu0
      %v2003 = vadd.f32 %v1621, %v1941
      %v2004 = vadd.f32 %v1622, %v1944
      %v2005 = vadd.f32 %v1623, %v1949
      %v2006 = vadd.f32 %v1624, %v1952
      %v2007 = vadd.f32 %v1625, %v1957
      %v2008 = vadd.f32 %v1626, %v1960
      %v2009 = vadd.f32 %v1627, %v1965
      %v2010 = vadd.f32 %v1628, %v1968
      %v2011 = vadd.f32 %v1629, %v1973
      %v2012 = vadd.f32 %v1630, %v1976
      %v2013 = vadd.f32 %v1631, %v1981
      %v2014 = vadd.f32 %v1632, %v1984
      %v2015 = vadd.f32 %v1633, %v1989
      %v2016 = vadd.f32 %v1634, %v1992
      %v2017 = vadd.f32 %v1635, %v1997
      %v2018 = vadd.f32 %v1636, %v2000
      %v2019 = vld [vmem:[%s3] sm:$0x1]
      %v2021 = vlaneseq
      %v2022 = vshrl.u32 %v2021, 7
      %v2023 = vsub.s32 0, %v2022
      %v2024 = vrot.slane %v2019, %v2023
      %v2026 = vadd.f32 %v2003, %v2024
      %v2027 = vadd.f32 %v2004, %v2024
      %v2028 = vadd.f32 %v2005, %v2024
      %v2029 = vadd.f32 %v2006, %v2024
      %v2030 = vadd.f32 %v2007, %v2024
      %v2031 = vadd.f32 %v2008, %v2024
      %v2032 = vadd.f32 %v2009, %v2024
      %v2033 = vadd.f32 %v2010, %v2024
      %v2034 = vadd.f32 %v2011, %v2024
      %v2035 = vadd.f32 %v2012, %v2024
      %v2036 = vadd.f32 %v2013, %v2024
      %v2037 = vadd.f32 %v2014, %v2024
      %v2038 = vadd.f32 %v2015, %v2024
      %v2039 = vadd.f32 %v2016, %v2024
      %v2040 = vadd.f32 %v2017, %v2024
      %v2041 = vadd.f32 %v2018, %v2024
      %v2042 = vmax.f32 %v2026, 0.0
      %v2043 = vmax.f32 %v2027, 0.0
      %v2044 = vmax.f32 %v2028, 0.0
      %v2045 = vmax.f32 %v2029, 0.0
      %v2046 = vmax.f32 %v2030, 0.0
      %v2047 = vmax.f32 %v2031, 0.0
      %v2048 = vmax.f32 %v2032, 0.0
      %v2049 = vmax.f32 %v2033, 0.0
      %v2050 = vmax.f32 %v2034, 0.0
      %v2051 = vmax.f32 %v2035, 0.0
      %v2052 = vmax.f32 %v2036, 0.0
      %v2053 = vmax.f32 %v2037, 0.0
      %v2054 = vmax.f32 %v2038, 0.0
      %v2055 = vmax.f32 %v2039, 0.0
      %v2056 = vmax.f32 %v2040, 0.0
      %v2057 = vmax.f32 %v2041, 0.0
      %v2058 = vpack.c.bf16 %v2043, %v2042
      %v2059 = vpack.c.bf16 %v2045, %v2044
      %v2060 = vpack.c.bf16 %v2047, %v2046
      %v2061 = vpack.c.bf16 %v2049, %v2048
      %v2062 = vpack.c.bf16 %v2051, %v2050
      %v2063 = vpack.c.bf16 %v2053, %v2052
      %v2064 = vpack.c.bf16 %v2055, %v2054
      %v2065 = vpack.c.bf16 %v2057, %v2056
      %v2074 = vunpack.c.l.b16 %v2058
      %v2075 = vunpack.c.h.b16 %v2058
      %v2076 = vunpack.c.l.b16 %v2059
      %v2077 = vunpack.c.h.b16 %v2059
      %v2078 = vunpack.c.l.b16 %v2060
      %v2079 = vunpack.c.h.b16 %v2060
      %v2080 = vunpack.c.l.b16 %v2061
      %v2081 = vunpack.c.h.b16 %v2061
      %v2082 = vunpack.c.l.b16 %v2062
      %v2083 = vunpack.c.h.b16 %v2062
      %v2084 = vunpack.c.l.b16 %v2063
      %v2085 = vunpack.c.h.b16 %v2063
      %v2086 = vunpack.c.l.b16 %v2064
      %v2087 = vunpack.c.h.b16 %v2064
      %v2088 = vunpack.c.l.b16 %v2065
      %v2089 = vunpack.c.h.b16 %v2065
      %v2090 = vpack.c.b16 %v2074, %v2074
      %v2091 = vpack.c.b16 %v2075, %v2075
      %v2092 = vpack.c.b16 %v2076, %v2076
      %v2093 = vpack.c.b16 %v2077, %v2077
      %v2094 = vpack.c.b16 %v2078, %v2078
      %v2095 = vpack.c.b16 %v2079, %v2079
      %v2096 = vpack.c.b16 %v2080, %v2080
      %v2097 = vpack.c.b16 %v2081, %v2081
      %v2098 = vpack.c.b16 %v2082, %v2082
      %v2099 = vpack.c.b16 %v2083, %v2083
      %v2100 = vpack.c.b16 %v2084, %v2084
      %v2101 = vpack.c.b16 %v2085, %v2085
      %v2102 = vpack.c.b16 %v2086, %v2086
      %v2103 = vpack.c.b16 %v2087, %v2087
      %v2104 = vpack.c.b16 %v2088, %v2088
      %v2105 = vpack.c.b16 %v2089, %v2089
      %vm2122 = vcmask 60416
      %2123 = vst.msk [vmem:[%s318] sm:$0xf] %vm2122, %v2090
      %2124 = vst.msk [vmem:[%s318 + $0x4] sm:$0xf] %vm2122, %v2091
      %2125 = vst.msk [vmem:[%s318 + $0x8] sm:$0xf] %vm2122, %v2092
      %2126 = vst.msk [vmem:[%s318 + $0xc] sm:$0xf] %vm2122, %v2093
      %2127 = vst.msk [vmem:[%s318 + $0x10] sm:$0xf] %vm2122, %v2094
      %2128 = vst.msk [vmem:[%s318 + $0x14] sm:$0xf] %vm2122, %v2095
      %2129 = vst.msk [vmem:[%s318 + $0x18] sm:$0xf] %vm2122, %v2096
      %2130 = vst.msk [vmem:[%s318 + $0x1c] sm:$0xf] %vm2122, %v2097
      %2131 = vst.msk [vmem:[%s318 + $0x20] sm:$0xf] %vm2122, %v2098
      %2132 = vst.msk [vmem:[%s318 + $0x24] sm:$0xf] %vm2122, %v2099
      %2133 = vst.msk [vmem:[%s318 + $0x28] sm:$0xf] %vm2122, %v2100
      %2134 = vst.msk [vmem:[%s318 + $0x2c] sm:$0xf] %vm2122, %v2101
      %2135 = vst.msk [vmem:[%s318 + $0x30] sm:$0xf] %vm2122, %v2102
      %2136 = vst.msk [vmem:[%s318 + $0x34] sm:$0xf] %vm2122, %v2103
      %2137 = vst.msk [vmem:[%s318 + $0x38] sm:$0xf] %vm2122, %v2104
      %2138 = vst.msk [vmem:[%s318 + $0x3c] sm:$0xf] %vm2122, %v2105
      %s2139 = smul.u32 8, %s20
      %p2140 = scmp.lt.s32.totalorder %s19, 1
      %s2141 = scalar_select %p2140, %s19, 1
      %p2142 = scmp.lt.s32.totalorder %s2139, 15
      %s2143 = scalar_select %p2142, %s2139, 15
      %s2144 = smul.addr %s2143, 2
      %s2145 = smul.addr %s2141, 32
      %s2146 = sadd.s32 %s2144, %s2145
      %s2147 = smul.addr %s2146, 4
      %s2148 = scalar_lea.vmem %s4, %s2147
      // Predicated region
      $region37: #{timm_universal_encoder_forward.5} parent=35 // pred_check
        %p2149 = pneg %p149
      $region38: #{timm_universal_encoder_forward.5} parent=35 // pred_check_branch
        %2151 = sbr.rel (%p2149) target = $region40
      $region39: #{timm_universal_encoder_forward.5} parent=35 // pred_region
        %s2152 = smul.u32 8, %s20
      $region40: #{timm_universal_encoder_forward.5} parent=35 // pred_fallthru
        _
    $region36: #{timm_universal_encoder_forward.5} parent=5 // pred_fallthru
      _
    %p2153 = scmp.le.s32.totalorder 2, %s10
    // Predicated region
    $region41: #{timm_universal_encoder_forward.5} parent=5 // pred_check
      %p2154 = pneg %p2153
    $region42: #{timm_universal_encoder_forward.5} parent=5 // pred_check_branch
      %2156 = sbr.rel (%p2154) target = $region44
    $region43: #{timm_universal_encoder_forward.5} parent=5 // pred_region
      %s2157 = ssub.s32 %s10, 2
      // Predicated region
      $region45: #{timm_universal_encoder_forward.5} parent=43 // pred_check
        %p2158 = pneg %p155
      $region46: #{timm_universal_encoder_forward.5} parent=43 // pred_check_branch
        %2160 = sbr.rel (%p2158) target = $region48
      $region47: #{timm_universal_encoder_forward.5} parent=43 // pred_region
        %s2161 = smul.u32 8, %s22
        %p2162 = scmp.lt.s32.totalorder %s21, 1
        %s2163 = scalar_select %p2162, %s21, 1
        %p2164 = scmp.lt.s32.totalorder %s2161, 15
        %s2165 = scalar_select %p2164, %s2161, 15
        %s2166 = smul.addr %s2165, 2
        %s2167 = smul.addr %s2163, 32
        %s2168 = sadd.s32 %s2166, %s2167
        %s2169 = smul.addr %s2168, 4
        %s2170 = scalar_lea.vmem %s4, %s2169
      $region48: #{timm_universal_encoder_forward.5} parent=43 // pred_fallthru
        _
    $region44: #{timm_universal_encoder_forward.5} parent=5 // pred_fallthru
      _
  $region6: #{timm_universal_encoder_forward.5} parent=0 // loop_footer
    %s14 = sadd.s32 1, %s10
  $region7: #{timm_universal_encoder_forward.5} parent=0 // loop_footer_branch
    %9 = sbr.rel target = $region3
  $region8: #{timm_universal_encoder_forward.5} parent=0 // loop_exit
    _

// kernel: timm_universal_encoder_forward.6
$region0: #{timm_universal_encoder_forward.6}
  #allocation0 [shape = 'u32[]', space=smem, size = 0x4, offset = 0x4, fixed_abs, tag = 'smem constant byte address 0x4 - core index']
  #allocation1 [shape = 'u32[144,128]{1,0:T(1,128)}', space=vmem, size = 0x12000, scoped, tag = 'internal scratch']
  %s0 = inlined_call_operand.vmem [shape: bf16[2,9,2,9,16], index: 0, kind: input, shape index: {}, may-alias: {0,1}]
  %s1 = inlined_call_operand.vmem [shape: bf16[2,9,2,9,16], index: 1, kind: input, shape index: {}, may-alias: {0,1}]
  %s2 = inlined_call_operand.vmem [shape: bf16[6,16,16], index: 2, kind: input, shape index: {}]
  %s3 = inlined_call_operand.vmem [shape: f32[1,16], index: 3, kind: input, shape index: {}]
  %s4 = inlined_call_operand.vmem [shape: bf16[2,8,8,16], index: 4, kind: output, shape index: {}]
  %s5 = sld [smem:[#allocation0]]
  $region49: #{timm_universal_encoder_forward.6} parent=0
    _
  %s7 = ssub.s32 1, %s5
  %s8 = scalar_select 0, %s7, %s5
  loop: start=0, step=1, limit=6
  $region2: #{timm_universal_encoder_forward.6} parent=0 // loop_pre_header
    _
  $region3: #{timm_universal_encoder_forward.6} parent=0 // loop_header
    %s10 = sphi 0, %s14
    %p11 = scmp.ge.s32.totalorder %s10, 6
    %s17 = sphi 0, %s29
    %s18 = sphi 0, %s25
    %s19 = sphi 0, %s17
    %s20 = sphi 0, %s18
    %s21 = sphi 0, %s19
    %s22 = sphi 0, %s20
    %s34 = sphi 0, %s36
    %s37 = sphi 0, %s34
    %s38 = sphi 0, %s37
    %s54 = sphi 0, %s38
    %s66 = sphi 0, %s68
    %s69 = sphi 0, %s66
    %s70 = sphi 0, %s69
    %s86 = sphi 0, %s70
    %s90 = sphi 0, %s90
    %s92 = sphi 0, %s90
    %s93 = sphi 0, %s92
    %s107 = sphi 0, %s93
    %s111 = sphi 0, %s111
    %s113 = sphi 0, %s111
    %s114 = sphi 0, %s113
    %s128 = sphi 0, %s114
    %s136 = sphi 0, %s138
    %s139 = sphi 0, %s136
    %s140 = sphi 0, %s139
    %s156 = sphi 0, %s140
  $region4: #{timm_universal_encoder_forward.6} parent=0 // loop_header_branch
    %13 = sbr.rel (%p11) target = $region8
  $region5: #{timm_universal_encoder_forward.6} parent=0 // loop_body
    %s15 = ssub.s32 %s10, 1
    %s16 = ssub.s32 %s10, 2
    %s23 = sadd.s32 1, %s18
    %p24 = scmp.ge.s32.totalorder %s23, 2
    %s25 = scalar_select %p24, 0, %s23
    %s26 = sadd.s32 1, %s17
    %s27 = scalar_select %p24, %s26, %s17
    %p28 = scmp.ge.s32.totalorder %s27, 2
    %s29 = scalar_select %p28, 0, %s27
    %s30 = ssub.s32 %s17, %s29
    %s31 = ssub.s32 %s18, %s25
    %s32 = sor.u32 %s30, %s31
    %p33 = scmp.eq.s32.totalorder %s32, 0
    %s35 = sadd.s32 %s34, 1
    %s36 = scalar_select %p33, %s34, %s35
    %p39 = pneg %p33
    %p40 = scmp.eq.s32.totalorder %s10, 3
    %p41 = por %p39, %p40
    %p42 = scmp.ne.s32.totalorder %s34, %s37
    %p43 = scmp.eq.s32.totalorder %s10, 0
    %p44 = por %p42, %p43
    %p45 = scmp.ne.s32.totalorder %s34, %s37
    %p46 = scmp.eq.s32.totalorder %s15, 3
    %p47 = por %p45, %p46
    %p48 = scmp.ne.s32.totalorder %s37, %s38
    %p49 = scmp.eq.s32.totalorder %s15, 0
    %p50 = por %p48, %p49
    %p51 = scmp.ne.s32.totalorder %s37, %s38
    %p52 = scmp.eq.s32.totalorder %s16, 3
    %p53 = por %p51, %p52
    %p55 = scmp.ne.s32.totalorder %s38, %s54
    %p56 = scmp.eq.s32.totalorder %s16, 0
    %p57 = por %p55, %p56
    %s58 = sadd.s32 %s18, 1
    %s59 = smul.u32 %s58, 4
    %s60 = sadd.s32 %s25, 1
    %s61 = smul.u32 %s60, 4
    %s62 = ssub.s32 %s17, %s29
    %s63 = ssub.s32 %s59, %s61
    %s64 = sor.u32 %s62, %s63
    %p65 = scmp.eq.s32.totalorder %s64, 0
    %s67 = sadd.s32 %s66, 1
    %s68 = scalar_select %p65, %s66, %s67
    %p71 = pneg %p65
    %p72 = scmp.eq.s32.totalorder %s10, 3
    %p73 = por %p71, %p72
    %p74 = scmp.ne.s32.totalorder %s66, %s69
    %p75 = scmp.eq.s32.totalorder %s10, 0
    %p76 = por %p74, %p75
    %p77 = scmp.ne.s32.totalorder %s66, %s69
    %p78 = scmp.eq.s32.totalorder %s15, 3
    %p79 = por %p77, %p78
    %p80 = scmp.ne.s32.totalorder %s69, %s70
    %p81 = scmp.eq.s32.totalorder %s15, 0
    %p82 = por %p80, %p81
    %p83 = scmp.ne.s32.totalorder %s69, %s70
    %p84 = scmp.eq.s32.totalorder %s16, 3
    %p85 = por %p83, %p84
    %p87 = scmp.ne.s32.totalorder %s70, %s86
    %p88 = scmp.eq.s32.totalorder %s16, 0
    %p89 = por %p87, %p88
    %s91 = sadd.s32 %s90, 1
    %p94 = scmp.eq.s32.totalorder %s10, 3
    %p95 = scmp.ne.s32.totalorder %s90, %s92
    %p96 = scmp.eq.s32.totalorder %s10, 0
    %p97 = por %p95, %p96
    %p98 = scmp.ne.s32.totalorder %s90, %s92
    %p99 = scmp.eq.s32.totalorder %s15, 3
    %p100 = por %p98, %p99
    %p101 = scmp.ne.s32.totalorder %s92, %s93
    %p102 = scmp.eq.s32.totalorder %s15, 0
    %p103 = por %p101, %p102
    %p104 = scmp.ne.s32.totalorder %s92, %s93
    %p105 = scmp.eq.s32.totalorder %s16, 3
    %p106 = por %p104, %p105
    %p108 = scmp.ne.s32.totalorder %s93, %s107
    %p109 = scmp.eq.s32.totalorder %s16, 0
    %p110 = por %p108, %p109
    %s112 = sadd.s32 %s111, 1
    %p115 = scmp.eq.s32.totalorder %s10, 3
    %p116 = scmp.ne.s32.totalorder %s111, %s113
    %p117 = scmp.eq.s32.totalorder %s10, 0
    %p118 = por %p116, %p117
    %p119 = scmp.ne.s32.totalorder %s111, %s113
    %p120 = scmp.eq.s32.totalorder %s15, 3
    %p121 = por %p119, %p120
    %p122 = scmp.ne.s32.totalorder %s113, %s114
    %p123 = scmp.eq.s32.totalorder %s15, 0
    %p124 = por %p122, %p123
    %p125 = scmp.ne.s32.totalorder %s113, %s114
    %p126 = scmp.eq.s32.totalorder %s16, 3
    %p127 = por %p125, %p126
    %p129 = scmp.ne.s32.totalorder %s114, %s128
    %p130 = scmp.eq.s32.totalorder %s16, 0
    %p131 = por %p129, %p130
    %s132 = ssub.s32 %s17, %s29
    %s133 = ssub.s32 %s18, %s25
    %s134 = sor.u32 %s132, %s133
    %p135 = scmp.eq.s32.totalorder %s134, 0
    %s137 = sadd.s32 %s136, 1
    %s138 = scalar_select %p135, %s136, %s137
    %p141 = pneg %p135
    %p142 = scmp.eq.s32.totalorder %s10, 3
    %p143 = por %p141, %p142
    %p144 = scmp.ne.s32.totalorder %s136, %s139
    %p145 = scmp.eq.s32.totalorder %s10, 0
    %p146 = por %p144, %p145
    %p147 = scmp.ne.s32.totalorder %s136, %s139
    %p148 = scmp.eq.s32.totalorder %s15, 3
    %p149 = por %p147, %p148
    %p150 = scmp.ne.s32.totalorder %s139, %s140
    %p151 = scmp.eq.s32.totalorder %s15, 0
    %p152 = por %p150, %p151
    %p153 = scmp.ne.s32.totalorder %s139, %s140
    %p154 = scmp.eq.s32.totalorder %s16, 3
    %p155 = por %p153, %p154
    %p157 = scmp.ne.s32.totalorder %s140, %s156
    %p158 = scmp.eq.s32.totalorder %s16, 0
    %p159 = por %p157, %p158
    %p160 = scmp.le.s32.totalorder 1, %s10
    %p161 = scmp.lt.s32.totalorder %s10, 5
    %p162 = pnand %p160, %p161
    %p163 = pneg %p162
    // Predicated region
    $region9: #{timm_universal_encoder_forward.6} parent=5 // pred_check
      _
    $region10: #{timm_universal_encoder_forward.6} parent=5 // pred_check_branch
      %165 = sbr.rel (%p162) target = $region12
    $region11: #{timm_universal_encoder_forward.6} parent=5 // pred_region
      %s166 = ssub.s32 %s10, 1
      // Predicated region
      $region13: #{timm_universal_encoder_forward.6} parent=11 // pred_check
        %p167 = pneg %p103
      $region14: #{timm_universal_encoder_forward.6} parent=11 // pred_check_branch
        %169 = sbr.rel (%p167) target = $region16
      $region15: #{timm_universal_encoder_forward.6} parent=11 // pred_region
        _
      $region16: #{timm_universal_encoder_forward.6} parent=11 // pred_fallthru
        _
      // Predicated region
      $region17: #{timm_universal_encoder_forward.6} parent=11 // pred_check
        %p170 = pneg %p124
      $region18: #{timm_universal_encoder_forward.6} parent=11 // pred_check_branch
        %172 = sbr.rel (%p170) target = $region20
      $region19: #{timm_universal_encoder_forward.6} parent=11 // pred_region
        _
      $region20: #{timm_universal_encoder_forward.6} parent=11 // pred_fallthru
        _
    $region12: #{timm_universal_encoder_forward.6} parent=5 // pred_fallthru
      _
    %p173 = scmp.lt.s32.totalorder %s10, 4
    // Predicated region
    $region21: #{timm_universal_encoder_forward.6} parent=5 // pred_check
      %p174 = pneg %p173
    $region22: #{timm_universal_encoder_forward.6} parent=5 // pred_check_branch
      %176 = sbr.rel (%p174) target = $region24
    $region23: #{timm_universal_encoder_forward.6} parent=5 // pred_region
      // Predicated region
      $region25: #{timm_universal_encoder_forward.6} parent=23 // pred_check
        %p177 = pneg %p44
      $region26: #{timm_universal_encoder_forward.6} parent=23 // pred_check_branch
        %179 = sbr.rel (%p177) target = $region28
      $region27: #{timm_universal_encoder_forward.6} parent=23 // pred_region
        %s180 = smul.u32 4, %s18
        %s181 = ssub.s32 9, %s180
        %p182 = scmp.lt.s32.totalorder %s181, 4
        %s183 = scalar_select %p182, %s181, 4
        %s184 = smul.u32 64, %s183
        %s185 = smul.u32 %s184, 2
        %s186 = smul.u32 %s185, 2
        %p187 = scmp.lt.s32.totalorder %s17, 1
        %s188 = scalar_select %p187, %s17, 1
        %p189 = scmp.lt.s32.totalorder %s180, 8
        %s190 = scalar_select %p189, %s180, 8
        %s191 = smul.addr %s190, 4
        %s192 = smul.addr %s188, 36
        %s193 = sadd.s32 %s191, %s192
        %s194 = smul.addr %s193, 4
        %s195 = scalar_lea.vmem %s0, %s194
        %s196 = smul.u32 4, %s18
        %s197 = ssub.s32 9, %s196
        %p198 = scmp.lt.s32.totalorder %s197, 4
        %s199 = scalar_select %p198, %s197, 4
        %s200 = smul.u32 64, %s199
        %s201 = smul.u32 %s200, 2
        %s202 = smul.u32 %s201, 2
      $region28: #{timm_universal_encoder_forward.6} parent=23 // pred_fallthru
        _
      // Predicated region
      $region29: #{timm_universal_encoder_forward.6} parent=23 // pred_check
        %p203 = pneg %p76
      $region30: #{timm_universal_encoder_forward.6} parent=23 // pred_check_branch
        %205 = sbr.rel (%p203) target = $region32
      $region31: #{timm_universal_encoder_forward.6} parent=23 // pred_region
        %s206 = sadd.s32 %s18, 1
        %s207 = smul.u32 %s206, 4
        %p208 = scmp.lt.s32.totalorder %s17, 1
        %s209 = scalar_select %p208, %s17, 1
        %p210 = scmp.lt.s32.totalorder %s207, 8
        %s211 = scalar_select %p210, %s207, 8
        %s212 = smul.addr %s211, 4
        %s213 = smul.addr %s209, 36
        %s214 = sadd.s32 %s212, %s213
        %s215 = smul.addr %s214, 4
        %s216 = scalar_lea.vmem %s1, %s215
        %s217 = sadd.s32 %s18, 1
        %s218 = smul.u32 %s217, 4
      $region32: #{timm_universal_encoder_forward.6} parent=23 // pred_fallthru
        _
    $region24: #{timm_universal_encoder_forward.6} parent=5 // pred_fallthru
      _
    %p219 = scmp.le.s32.totalorder 1, %s10
    %p220 = scmp.lt.s32.totalorder %s10, 5
    %p221 = pnand %p219, %p220
    %p222 = pneg %p221
    // Predicated region
    $region33: #{timm_universal_encoder_forward.6} parent=5 // pred_check
      _
    $region34: #{timm_universal_encoder_forward.6} parent=5 // pred_check_branch
      %224 = sbr.rel (%p221) target = $region36
    $region35: #{timm_universal_encoder_forward.6} parent=5 // pred_region
      %s225 = ssub.s32 %s10, 1
      %s226 = smul.u32 4, %s20
      %s227 = ssub.s32 9, %s226
      %p228 = scmp.lt.s32.totalorder %s227, 4
      %s229 = scalar_select %p228, %s227, 4
      %s230 = smul.u32 64, %s229
      %s231 = smul.u32 %s230, 2
      %s232 = smul.u32 %s231, 2
      %p233 = scmp.lt.s32.totalorder %s19, 1
      %s234 = scalar_select %p233, %s19, 1
      %p235 = scmp.lt.s32.totalorder %s226, 8
      %s236 = scalar_select %p235, %s226, 8
      %s237 = smul.addr %s236, 4
      %s238 = smul.addr %s234, 36
      %s239 = sadd.s32 %s237, %s238
      %s240 = smul.addr %s239, 4
      %s241 = scalar_lea.vmem %s0, %s240
      %p242 = pneg %p50
      %p243 = pneg %p47
      %s244 = sadd.s32 %s20, 1
      %s245 = smul.u32 %s244, 4
      %p246 = scmp.lt.s32.totalorder %s19, 1
      %s247 = scalar_select %p246, %s19, 1
      %p248 = scmp.lt.s32.totalorder %s245, 8
      %s249 = scalar_select %p248, %s245, 8
      %s250 = smul.addr %s249, 4
      %s251 = smul.addr %s247, 36
      %s252 = sadd.s32 %s250, %s251
      %s253 = smul.addr %s252, 4
      %s254 = scalar_lea.vmem %s1, %s253
      %p255 = pneg %p82
      %p256 = pneg %p79
      %p257 = pneg %p103
      %p258 = pneg %p100
      %p259 = pneg %p124
      %p260 = pneg %p121
      %p261 = pneg %p152
      %p262 = pneg %p149
      %s263 = smul.u32 4, %s20
      %p264 = scmp.lt.s32.totalorder %s19, 1
      %s265 = scalar_select %p264, %s19, 1
      %p266 = scmp.lt.s32.totalorder %s263, 7
      %s267 = scalar_select %p266, %s263, 7
      %s268 = smul.addr %s265, 8
      %s269 = sadd.s32 %s267, %s268
      %s270 = smul.addr %s269, 4
      %s271 = scalar_lea.vmem %s4, %s270
      %s272 = smul.u32 4, %s20
      %s273 = ssub.s32 9, %s272
      %p274 = scmp.lt.s32.totalorder %s273, 4
      %s275 = scalar_select %p274, %s273, 4
      %s276 = smul.u32 64, %s275
      %s277 = smul.u32 %s276, 2
      %s278 = smul.u32 %s277, 2
      %p279 = scmp.lt.s32.totalorder %s19, 1
      %s280 = scalar_select %p279, %s19, 1
      %p281 = scmp.lt.s32.totalorder %s272, 8
      %s282 = scalar_select %p281, %s272, 8
      %s283 = smul.addr %s282, 4
      %s284 = smul.addr %s280, 36
      %s285 = sadd.s32 %s283, %s284
      %s286 = smul.addr %s285, 4
      %s287 = scalar_lea.vmem %s0, %s286
      %s288 = smul.u32 4, %s20
      %s289 = ssub.s32 9, %s288
      %p290 = scmp.lt.s32.totalorder %s289, 4
      %s291 = scalar_select %p290, %s289, 4
      %s292 = smul.u32 64, %s291
      %s293 = smul.u32 %s292, 2
      %s294 = smul.u32 %s293, 2
      %s295 = sadd.s32 %s20, 1
      %s296 = smul.u32 %s295, 4
      %p297 = scmp.lt.s32.totalorder %s19, 1
      %s298 = scalar_select %p297, %s19, 1
      %p299 = scmp.lt.s32.totalorder %s296, 8
      %s300 = scalar_select %p299, %s296, 8
      %s301 = smul.addr %s300, 4
      %s302 = smul.addr %s298, 36
      %s303 = sadd.s32 %s301, %s302
      %s304 = smul.addr %s303, 4
      %s305 = scalar_lea.vmem %s1, %s304
      %s306 = sadd.s32 %s20, 1
      %s307 = smul.u32 %s306, 4
      %s308 = smul.u32 4, %s20
      %p309 = scmp.lt.s32.totalorder %s19, 1
      %s310 = scalar_select %p309, %s19, 1
      %p311 = scmp.lt.s32.totalorder %s308, 7
      %s312 = scalar_select %p311, %s308, 7
      %s313 = smul.addr %s310, 8
      %s314 = sadd.s32 %s312, %s313
      %s315 = smul.addr %s314, 4
      %s316 = scalar_lea.vmem %s4, %s315
      %s317 = smul.u32 4, %s20
      %v319 = vld [vmem:[%s287] sm:$0xf]
      %v320 = vld [vmem:[%s287 + $0x10] sm:$0xf]
      %v321 = vld [vmem:[%s287 + $0x20] sm:$0xf]
      %v322 = vld [vmem:[%s287 + $0x30] sm:$0xf]
      %v323 = vld [vmem:[%s2] sm:$0xf]
      %v324 = vld [vmem:[%s2 + $0x4] sm:$0xf]
      %v325 = vld [vmem:[%s287 + $0x4] sm:$0x1]
      %v326 = vld [vmem:[%s287 + $0x14] sm:$0x1]
      %v327 = vld [vmem:[%s287 + $0x24] sm:$0x1]
      %v328 = vld [vmem:[%s287 + $0x34] sm:$0x1]
      %vm329 = vsmask.f32 3328
      %vm330 = vsmask.f32 7440
      %vm331 = vmor %vm329, %vm330
      %v333 = vshrl.u32 %v319, 16
      %v335 = vrot.slane %v333, 4
      %v336 = vshll.u32 %v319, 16
      %v338 = vrot.slane %v336, 5
      %v339 = vor.u32 %v335, %v338
      %v340 = vrot.slane %v339, 4
      %v342 = vshll.u32 %v325, 16
      %v344 = vrot.slane %v342, 5
      %v345 = vsel %vm331, %v340, %v344
      %v347 = vshrl.u32 %v320, 16
      %v349 = vrot.slane %v347, 4
      %v350 = vshll.u32 %v320, 16
      %v352 = vrot.slane %v350, 5
      %v353 = vor.u32 %v349, %v352
      %v354 = vrot.slane %v353, 4
      %v356 = vshll.u32 %v326, 16
      %v358 = vrot.slane %v356, 5
      %v359 = vsel %vm331, %v354, %v358
      %v361 = vshrl.u32 %v321, 16
      %v363 = vrot.slane %v361, 4
      %v364 = vshll.u32 %v321, 16
      %v366 = vrot.slane %v364, 5
      %v367 = vor.u32 %v363, %v366
      %v368 = vrot.slane %v367, 4
      %v370 = vshll.u32 %v327, 16
      %v372 = vrot.slane %v370, 5
      %v373 = vsel %vm331, %v368, %v372
      %v375 = vshrl.u32 %v322, 16
      %v377 = vrot.slane %v375, 4
      %v378 = vshll.u32 %v322, 16
      %v380 = vrot.slane %v378, 5
      %v381 = vor.u32 %v377, %v380
      %v382 = vrot.slane %v381, 4
      %v384 = vshll.u32 %v328, 16
      %v386 = vrot.slane %v384, 5
      %v387 = vsel %vm331, %v382, %v386
      %s388 = scalar_lea.vmem %s2, 8
      %v389 = vld [vmem:[%s388] sm:$0xf]
      %v390 = vld [vmem:[%s388 + $0x4] sm:$0xf]
      %v391 = vunpack.c.l.b16 %v345
      %v392 = vunpack.c.l.b16 %v359
      %v393 = vunpack.c.l.b16 %v373
      %v394 = vunpack.c.l.b16 %v387
      %v395 = vpack.c.b16 %v392, %v391
      %v396 = vpack.c.b16 %v394, %v393
      %v399 = vunpack.c.l.b16 %v389
      %v400 = vunpack.c.l.b16 %v390
      %v401 = vpack.c.b16 %v400, %v399
      %vm403 = vcmask 130048
      %v405 = vsel %vm403, %v395, 0
      %v408 = vsel %vm403, %v396, 0
      %410 = vmatprep.subr.bf16.mxu0 0
      %411 = vmatpush1.bf16.msra.mxu0 0
      %412 = vmatprep.subr.bf16.mxu0 0
      %413 = vmatpush1.bf16.msra.mxu0 0
      %414 = vmatprep.subr.bf16.mxu0 0
      %415 = vmatpush1.bf16.msra.mxu0 0
      %416 = vmatprep.subr.bf16.mxu0 0
      %417 = vmatpush1.bf16.msra.mxu0 0
      %418 = vmatprep.subr.bf16.mxu0 0
      %419 = vmatpush1.bf16.msra.mxu0 0
      %420 = vmatprep.subr.bf16.mxu0 0
      %421 = vmatpush1.bf16.msra.mxu0 0
      %422 = vmatprep.subr.bf16.mxu0 0
      %423 = vmatpush1.bf16.msra.mxu0 0
      %424 = vmatprep.subr.bf16.mxu0 0
      %425 = vmatpush1.bf16.msra.mxu0 %v401
      %426 = vmatprep.subr.bf16.mxu0 0
      %427 = vmatpush2.bf16.msra.mxu0 0
      %428 = vmatprep.subr.bf16.mxu0 0
      %429 = vmatpush2.bf16.msra.mxu0 0
      %430 = vmatprep.subr.bf16.mxu0 0
      %431 = vmatpush2.bf16.msra.mxu0 0
      %432 = vmatprep.subr.bf16.mxu0 0
      %433 = vmatpush2.bf16.msra.mxu0 0
      %434 = vmatprep.subr.bf16.mxu0 0
      %435 = vmatpush2.bf16.msra.mxu0 0
      %436 = vmatprep.subr.bf16.mxu0 0
      %437 = vmatpush2.bf16.msra.mxu0 0
      %438 = vmatprep.subr.bf16.mxu0 0
      %439 = vmatpush2.bf16.msra.mxu0 0
      %440 = vmatprep.subr.bf16.mxu0 0
      %441 = vmatpush2.bf16.msra.mxu0 0
      %442 = vmatprep.mubr.bf16.mxu0 0
      %443 = vmatmul.mubr.bf16.gmra.mxu0 %v405
      %v444 = vpop.f32.mrf.mxu0
      %v445 = vadd.f32 0.0, %v444
      %v446 = vpop.f32.mrf.mxu0
      %v447 = vpop.f32.mrf.mxu0
      %v448 = vadd.f32 0.0, %v447
      %v449 = vpop.f32.mrf.mxu0
      %450 = vmatprep.mubr.bf16.mxu0 0
      %451 = vmatmul.mubr.bf16.gmra.mxu0 %v408
      %v452 = vpop.f32.mrf.mxu0
      %v453 = vadd.f32 0.0, %v452
      %v454 = vpop.f32.mrf.mxu0
      %v455 = vpop.f32.mrf.mxu0
      %v456 = vadd.f32 0.0, %v455
      %v457 = vpop.f32.mrf.mxu0
      %458 = vdwg.mxu0
      %v463 = vunpack.c.l.b16 %v319
      %v464 = vunpack.c.l.b16 %v320
      %v465 = vunpack.c.l.b16 %v321
      %v466 = vunpack.c.l.b16 %v322
      %v467 = vpack.c.b16 %v464, %v463
      %v468 = vpack.c.b16 %v466, %v465
      %v471 = vunpack.c.l.b16 %v323
      %v472 = vunpack.c.l.b16 %v324
      %v473 = vpack.c.b16 %v472, %v471
      %v476 = vsel %vm403, %v467, 0
      %v479 = vsel %vm403, %v468, 0
      %481 = vmatprep.subr.bf16.mxu0 0
      %482 = vmatpush1.bf16.msra.mxu0 0
      %483 = vmatprep.subr.bf16.mxu0 0
      %484 = vmatpush1.bf16.msra.mxu0 0
      %485 = vmatprep.subr.bf16.mxu0 0
      %486 = vmatpush1.bf16.msra.mxu0 0
      %487 = vmatprep.subr.bf16.mxu0 0
      %488 = vmatpush1.bf16.msra.mxu0 0
      %489 = vmatprep.subr.bf16.mxu0 0
      %490 = vmatpush1.bf16.msra.mxu0 0
      %491 = vmatprep.subr.bf16.mxu0 0
      %492 = vmatpush1.bf16.msra.mxu0 0
      %493 = vmatprep.subr.bf16.mxu0 0
      %494 = vmatpush1.bf16.msra.mxu0 0
      %495 = vmatprep.subr.bf16.mxu0 0
      %496 = vmatpush1.bf16.msra.mxu0 %v473
      %497 = vmatprep.subr.bf16.mxu0 0
      %498 = vmatpush2.bf16.msra.mxu0 0
      %499 = vmatprep.subr.bf16.mxu0 0
      %500 = vmatpush2.bf16.msra.mxu0 0
      %501 = vmatprep.subr.bf16.mxu0 0
      %502 = vmatpush2.bf16.msra.mxu0 0
      %503 = vmatprep.subr.bf16.mxu0 0
      %504 = vmatpush2.bf16.msra.mxu0 0
      %505 = vmatprep.subr.bf16.mxu0 0
      %506 = vmatpush2.bf16.msra.mxu0 0
      %507 = vmatprep.subr.bf16.mxu0 0
      %508 = vmatpush2.bf16.msra.mxu0 0
      %509 = vmatprep.subr.bf16.mxu0 0
      %510 = vmatpush2.bf16.msra.mxu0 0
      %511 = vmatprep.subr.bf16.mxu0 0
      %512 = vmatpush2.bf16.msra.mxu0 0
      %513 = vmatprep.mubr.bf16.mxu0 0
      %514 = vmatmul.mubr.bf16.gmra.mxu0 %v476
      %v515 = vpop.f32.mrf.mxu0
      %v516 = vadd.f32 %v445, %v515
      %v517 = vpop.f32.mrf.mxu0
      %v518 = vpop.f32.mrf.mxu0
      %v519 = vadd.f32 %v448, %v518
      %v520 = vpop.f32.mrf.mxu0
      %521 = vmatprep.mubr.bf16.mxu0 0
      %522 = vmatmul.mubr.bf16.gmra.mxu0 %v479
      %v523 = vpop.f32.mrf.mxu0
      %v524 = vadd.f32 %v453, %v523
      %v525 = vpop.f32.mrf.mxu0
      %v526 = vpop.f32.mrf.mxu0
      %v527 = vadd.f32 %v456, %v526
      %v528 = vpop.f32.mrf.mxu0
      %529 = vdwg.mxu0
      %s530 = scalar_lea.vmem %s287, 8
      %v531 = vld [vmem:[%s530] sm:$0xf]
      %v532 = vld [vmem:[%s530 + $0x10] sm:$0xf]
      %v533 = vld [vmem:[%s530 + $0x20] sm:$0xf]
      %v534 = vld [vmem:[%s530 + $0x30] sm:$0xf]
      %s535 = scalar_lea.vmem %s2, 16
      %v536 = vld [vmem:[%s535] sm:$0xf]
      %v537 = vld [vmem:[%s535 + $0x4] sm:$0xf]
      %v542 = vunpack.c.l.b16 %v531
      %v543 = vunpack.c.l.b16 %v532
      %v544 = vunpack.c.l.b16 %v533
      %v545 = vunpack.c.l.b16 %v534
      %v546 = vpack.c.b16 %v543, %v542
      %v547 = vpack.c.b16 %v545, %v544
      %v550 = vunpack.c.l.b16 %v536
      %v551 = vunpack.c.l.b16 %v537
      %v552 = vpack.c.b16 %v551, %v550
      %v555 = vsel %vm403, %v546, 0
      %v558 = vsel %vm403, %v547, 0
      %560 = vmatprep.subr.bf16.mxu0 0
      %561 = vmatpush1.bf16.msra.mxu0 0
      %562 = vmatprep.subr.bf16.mxu0 0
      %563 = vmatpush1.bf16.msra.mxu0 0
      %564 = vmatprep.subr.bf16.mxu0 0
      %565 = vmatpush1.bf16.msra.mxu0 0
      %566 = vmatprep.subr.bf16.mxu0 0
      %567 = vmatpush1.bf16.msra.mxu0 0
      %568 = vmatprep.subr.bf16.mxu0 0
      %569 = vmatpush1.bf16.msra.mxu0 0
      %570 = vmatprep.subr.bf16.mxu0 0
      %571 = vmatpush1.bf16.msra.mxu0 0
      %572 = vmatprep.subr.bf16.mxu0 0
      %573 = vmatpush1.bf16.msra.mxu0 0
      %574 = vmatprep.subr.bf16.mxu0 0
      %575 = vmatpush1.bf16.msra.mxu0 %v552
      %576 = vmatprep.subr.bf16.mxu0 0
      %577 = vmatpush2.bf16.msra.mxu0 0
      %578 = vmatprep.subr.bf16.mxu0 0
      %579 = vmatpush2.bf16.msra.mxu0 0
      %580 = vmatprep.subr.bf16.mxu0 0
      %581 = vmatpush2.bf16.msra.mxu0 0
      %582 = vmatprep.subr.bf16.mxu0 0
      %583 = vmatpush2.bf16.msra.mxu0 0
      %584 = vmatprep.subr.bf16.mxu0 0
      %585 = vmatpush2.bf16.msra.mxu0 0
      %586 = vmatprep.subr.bf16.mxu0 0
      %587 = vmatpush2.bf16.msra.mxu0 0
      %588 = vmatprep.subr.bf16.mxu0 0
      %589 = vmatpush2.bf16.msra.mxu0 0
      %590 = vmatprep.subr.bf16.mxu0 0
      %591 = vmatpush2.bf16.msra.mxu0 0
      %592 = vmatprep.mubr.bf16.mxu0 0
      %593 = vmatmul.mubr.bf16.gmra.mxu0 %v555
      %v594 = vpop.f32.mrf.mxu0
      %v595 = vadd.f32 0.0, %v594
      %v596 = vpop.f32.mrf.mxu0
      %v597 = vpop.f32.mrf.mxu0
      %v598 = vadd.f32 0.0, %v597
      %v599 = vpop.f32.mrf.mxu0
      %600 = vmatprep.mubr.bf16.mxu0 0
      %601 = vmatmul.mubr.bf16.gmra.mxu0 %v558
      %v602 = vpop.f32.mrf.mxu0
      %v603 = vadd.f32 0.0, %v602
      %v604 = vpop.f32.mrf.mxu0
      %v605 = vpop.f32.mrf.mxu0
      %v606 = vadd.f32 0.0, %v605
      %v607 = vpop.f32.mrf.mxu0
      %608 = vdwg.mxu0
      %v609 = vadd.f32 %v516, %v595
      %v610 = vadd.f32 %v519, %v598
      %v611 = vadd.f32 %v524, %v603
      %v612 = vadd.f32 %v527, %v606
      %v613 = vld [vmem:[%s530] sm:$0xf]
      %v614 = vld [vmem:[%s530 + $0x4] sm:$0x1]
      %v615 = vld [vmem:[%s530 + $0x10] sm:$0xf]
      %v616 = vld [vmem:[%s530 + $0x14] sm:$0x1]
      %v617 = vld [vmem:[%s530 + $0x20] sm:$0xf]
      %v618 = vld [vmem:[%s530 + $0x24] sm:$0x1]
      %v619 = vld [vmem:[%s530 + $0x30] sm:$0xf]
      %v620 = vld [vmem:[%s530 + $0x34] sm:$0x1]
      %v622 = vshrl.u32 %v613, 16
      %v624 = vrot.slane %v622, 4
      %v625 = vshll.u32 %v613, 16
      %v627 = vrot.slane %v625, 5
      %v628 = vor.u32 %v624, %v627
      %v629 = vrot.slane %v628, 4
      %v631 = vshll.u32 %v614, 16
      %v633 = vrot.slane %v631, 5
      %v634 = vsel %vm331, %v629, %v633
      %v636 = vshrl.u32 %v615, 16
      %v638 = vrot.slane %v636, 4
      %v639 = vshll.u32 %v615, 16
      %v641 = vrot.slane %v639, 5
      %v642 = vor.u32 %v638, %v641
      %v643 = vrot.slane %v642, 4
      %v645 = vshll.u32 %v616, 16
      %v647 = vrot.slane %v645, 5
      %v648 = vsel %vm331, %v643, %v647
      %v650 = vshrl.u32 %v617, 16
      %v652 = vrot.slane %v650, 4
      %v653 = vshll.u32 %v617, 16
      %v655 = vrot.slane %v653, 5
      %v656 = vor.u32 %v652, %v655
      %v657 = vrot.slane %v656, 4
      %v659 = vshll.u32 %v618, 16
      %v661 = vrot.slane %v659, 5
      %v662 = vsel %vm331, %v657, %v661
      %v664 = vshrl.u32 %v619, 16
      %v666 = vrot.slane %v664, 4
      %v667 = vshll.u32 %v619, 16
      %v669 = vrot.slane %v667, 5
      %v670 = vor.u32 %v666, %v669
      %v671 = vrot.slane %v670, 4
      %v673 = vshll.u32 %v620, 16
      %v675 = vrot.slane %v673, 5
      %v676 = vsel %vm331, %v671, %v675
      %s677 = scalar_lea.vmem %s2, 24
      %v678 = vld [vmem:[%s677] sm:$0xf]
      %v679 = vld [vmem:[%s677 + $0x4] sm:$0xf]
      %v680 = vunpack.c.l.b16 %v634
      %v681 = vunpack.c.l.b16 %v648
      %v682 = vunpack.c.l.b16 %v662
      %v683 = vunpack.c.l.b16 %v676
      %v684 = vpack.c.b16 %v681, %v680
      %v685 = vpack.c.b16 %v683, %v682
      %v688 = vunpack.c.l.b16 %v678
      %v689 = vunpack.c.l.b16 %v679
      %v690 = vpack.c.b16 %v689, %v688
      %v693 = vsel %vm403, %v684, 0
      %v696 = vsel %vm403, %v685, 0
      %698 = vmatprep.subr.bf16.mxu0 0
      %699 = vmatpush1.bf16.msra.mxu0 0
      %700 = vmatprep.subr.bf16.mxu0 0
      %701 = vmatpush1.bf16.msra.mxu0 0
      %702 = vmatprep.subr.bf16.mxu0 0
      %703 = vmatpush1.bf16.msra.mxu0 0
      %704 = vmatprep.subr.bf16.mxu0 0
      %705 = vmatpush1.bf16.msra.mxu0 0
      %706 = vmatprep.subr.bf16.mxu0 0
      %707 = vmatpush1.bf16.msra.mxu0 0
      %708 = vmatprep.subr.bf16.mxu0 0
      %709 = vmatpush1.bf16.msra.mxu0 0
      %710 = vmatprep.subr.bf16.mxu0 0
      %711 = vmatpush1.bf16.msra.mxu0 0
      %712 = vmatprep.subr.bf16.mxu0 0
      %713 = vmatpush1.bf16.msra.mxu0 %v690
      %714 = vmatprep.subr.bf16.mxu0 0
      %715 = vmatpush2.bf16.msra.mxu0 0
      %716 = vmatprep.subr.bf16.mxu0 0
      %717 = vmatpush2.bf16.msra.mxu0 0
      %718 = vmatprep.subr.bf16.mxu0 0
      %719 = vmatpush2.bf16.msra.mxu0 0
      %720 = vmatprep.subr.bf16.mxu0 0
      %721 = vmatpush2.bf16.msra.mxu0 0
      %722 = vmatprep.subr.bf16.mxu0 0
      %723 = vmatpush2.bf16.msra.mxu0 0
      %724 = vmatprep.subr.bf16.mxu0 0
      %725 = vmatpush2.bf16.msra.mxu0 0
      %726 = vmatprep.subr.bf16.mxu0 0
      %727 = vmatpush2.bf16.msra.mxu0 0
      %728 = vmatprep.subr.bf16.mxu0 0
      %729 = vmatpush2.bf16.msra.mxu0 0
      %730 = vmatprep.mubr.bf16.mxu0 0
      %731 = vmatmul.mubr.bf16.gmra.mxu0 %v693
      %v732 = vpop.f32.mrf.mxu0
      %v733 = vadd.f32 0.0, %v732
      %v734 = vpop.f32.mrf.mxu0
      %v735 = vpop.f32.mrf.mxu0
      %v736 = vadd.f32 0.0, %v735
      %v737 = vpop.f32.mrf.mxu0
      %738 = vmatprep.mubr.bf16.mxu0 0
      %739 = vmatmul.mubr.bf16.gmra.mxu0 %v696
      %v740 = vpop.f32.mrf.mxu0
      %v741 = vadd.f32 0.0, %v740
      %v742 = vpop.f32.mrf.mxu0
      %v743 = vpop.f32.mrf.mxu0
      %v744 = vadd.f32 0.0, %v743
      %v745 = vpop.f32.mrf.mxu0
      %746 = vdwg.mxu0
      %v747 = vadd.f32 %v609, %v733
      %v748 = vadd.f32 %v610, %v736
      %v749 = vadd.f32 %v611, %v741
      %v750 = vadd.f32 %v612, %v744
      %v751 = vld [vmem:[%s305] sm:$0xf]
      %s752 = scalar_lea.vmem %s287, 16
      %v753 = vld [vmem:[%s752] sm:$0xf]
      %v754 = vld [vmem:[%s752 + $0x10] sm:$0xf]
      %v755 = vld [vmem:[%s752 + $0x20] sm:$0xf]
      %s756 = scalar_lea.vmem %s2, 32
      %v757 = vld [vmem:[%s756] sm:$0xf]
      %v758 = vld [vmem:[%s756 + $0x4] sm:$0xf]
      %v763 = vunpack.c.l.b16 %v753
      %v764 = vunpack.c.l.b16 %v754
      %v765 = vunpack.c.l.b16 %v755
      %v766 = vunpack.c.l.b16 %v751
      %v767 = vpack.c.b16 %v764, %v763
      %v768 = vpack.c.b16 %v766, %v765
      %v771 = vunpack.c.l.b16 %v757
      %v772 = vunpack.c.l.b16 %v758
      %v773 = vpack.c.b16 %v772, %v771
      %v776 = vsel %vm403, %v767, 0
      %v779 = vsel %vm403, %v768, 0
      %781 = vmatprep.subr.bf16.mxu0 0
      %782 = vmatpush1.bf16.msra.mxu0 0
      %783 = vmatprep.subr.bf16.mxu0 0
      %784 = vmatpush1.bf16.msra.mxu0 0
      %785 = vmatprep.subr.bf16.mxu0 0
      %786 = vmatpush1.bf16.msra.mxu0 0
      %787 = vmatprep.subr.bf16.mxu0 0
      %788 = vmatpush1.bf16.msra.mxu0 0
      %789 = vmatprep.subr.bf16.mxu0 0
      %790 = vmatpush1.bf16.msra.mxu0 0
      %791 = vmatprep.subr.bf16.mxu0 0
      %792 = vmatpush1.bf16.msra.mxu0 0
      %793 = vmatprep.subr.bf16.mxu0 0
      %794 = vmatpush1.bf16.msra.mxu0 0
      %795 = vmatprep.subr.bf16.mxu0 0
      %796 = vmatpush1.bf16.msra.mxu0 %v773
      %797 = vmatprep.subr.bf16.mxu0 0
      %798 = vmatpush2.bf16.msra.mxu0 0
      %799 = vmatprep.subr.bf16.mxu0 0
      %800 = vmatpush2.bf16.msra.mxu0 0
      %801 = vmatprep.subr.bf16.mxu0 0
      %802 = vmatpush2.bf16.msra.mxu0 0
      %803 = vmatprep.subr.bf16.mxu0 0
      %804 = vmatpush2.bf16.msra.mxu0 0
      %805 = vmatprep.subr.bf16.mxu0 0
      %806 = vmatpush2.bf16.msra.mxu0 0
      %807 = vmatprep.subr.bf16.mxu0 0
      %808 = vmatpush2.bf16.msra.mxu0 0
      %809 = vmatprep.subr.bf16.mxu0 0
      %810 = vmatpush2.bf16.msra.mxu0 0
      %811 = vmatprep.subr.bf16.mxu0 0
      %812 = vmatpush2.bf16.msra.mxu0 0
      %813 = vmatprep.mubr.bf16.mxu0 0
      %814 = vmatmul.mubr.bf16.gmra.mxu0 %v776
      %v815 = vpop.f32.mrf.mxu0
      %v816 = vadd.f32 0.0, %v815
      %v817 = vpop.f32.mrf.mxu0
      %v818 = vpop.f32.mrf.mxu0
      %v819 = vadd.f32 0.0, %v818
      %v820 = vpop.f32.mrf.mxu0
      %821 = vmatprep.mubr.bf16.mxu0 0
      %822 = vmatmul.mubr.bf16.gmra.mxu0 %v779
      %v823 = vpop.f32.mrf.mxu0
      %v824 = vadd.f32 0.0, %v823
      %v825 = vpop.f32.mrf.mxu0
      %v826 = vpop.f32.mrf.mxu0
      %v827 = vadd.f32 0.0, %v826
      %v828 = vpop.f32.mrf.mxu0
      %829 = vdwg.mxu0
      %v830 = vadd.f32 %v747, %v816
      %v831 = vadd.f32 %v748, %v819
      %v832 = vadd.f32 %v749, %v824
      %v833 = vadd.f32 %v750, %v827
      %v834 = vld [vmem:[%s305] sm:$0xf]
      %v835 = vld [vmem:[%s305 + $0x4] sm:$0x1]
      %v836 = vld [vmem:[%s752] sm:$0xf]
      %v837 = vld [vmem:[%s752 + $0x4] sm:$0x1]
      %v838 = vld [vmem:[%s752 + $0x10] sm:$0xf]
      %v839 = vld [vmem:[%s752 + $0x14] sm:$0x1]
      %v840 = vld [vmem:[%s752 + $0x20] sm:$0xf]
      %v841 = vld [vmem:[%s752 + $0x24] sm:$0x1]
      %v843 = vshrl.u32 %v836, 16
      %v845 = vrot.slane %v843, 4
      %v846 = vshll.u32 %v836, 16
      %v848 = vrot.slane %v846, 5
      %v849 = vor.u32 %v845, %v848
      %v850 = vrot.slane %v849, 4
      %v852 = vshll.u32 %v837, 16
      %v854 = vrot.slane %v852, 5
      %v855 = vsel %vm331, %v850, %v854
      %v857 = vshrl.u32 %v838, 16
      %v859 = vrot.slane %v857, 4
      %v860 = vshll.u32 %v838, 16
      %v862 = vrot.slane %v860, 5
      %v863 = vor.u32 %v859, %v862
      %v864 = vrot.slane %v863, 4
      %v866 = vshll.u32 %v839, 16
      %v868 = vrot.slane %v866, 5
      %v869 = vsel %vm331, %v864, %v868
      %v871 = vshrl.u32 %v840, 16
      %v873 = vrot.slane %v871, 4
      %v874 = vshll.u32 %v840, 16
      %v876 = vrot.slane %v874, 5
      %v877 = vor.u32 %v873, %v876
      %v878 = vrot.slane %v877, 4
      %v880 = vshll.u32 %v841, 16
      %v882 = vrot.slane %v880, 5
      %v883 = vsel %vm331, %v878, %v882
      %v885 = vshrl.u32 %v834, 16
      %v887 = vrot.slane %v885, 4
      %v888 = vshll.u32 %v834, 16
      %v890 = vrot.slane %v888, 5
      %v891 = vor.u32 %v887, %v890
      %v892 = vrot.slane %v891, 4
      %v894 = vshll.u32 %v835, 16
      %v896 = vrot.slane %v894, 5
      %v897 = vsel %vm331, %v892, %v896
      %s898 = scalar_lea.vmem %s2, 40
      %v899 = vld [vmem:[%s898] sm:$0xf]
      %v900 = vld [vmem:[%s898 + $0x4] sm:$0xf]
      %v901 = vunpack.c.l.b16 %v855
      %v902 = vunpack.c.l.b16 %v869
      %v903 = vunpack.c.l.b16 %v883
      %v904 = vunpack.c.l.b16 %v897
      %v905 = vpack.c.b16 %v902, %v901
      %v906 = vpack.c.b16 %v904, %v903
      %v909 = vunpack.c.l.b16 %v899
      %v910 = vunpack.c.l.b16 %v900
      %v911 = vpack.c.b16 %v910, %v909
      %v914 = vsel %vm403, %v905, 0
      %v917 = vsel %vm403, %v906, 0
      %919 = vmatprep.subr.bf16.mxu0 0
      %920 = vmatpush1.bf16.msra.mxu0 0
      %921 = vmatprep.subr.bf16.mxu0 0
      %922 = vmatpush1.bf16.msra.mxu0 0
      %923 = vmatprep.subr.bf16.mxu0 0
      %924 = vmatpush1.bf16.msra.mxu0 0
      %925 = vmatprep.subr.bf16.mxu0 0
      %926 = vmatpush1.bf16.msra.mxu0 0
      %927 = vmatprep.subr.bf16.mxu0 0
      %928 = vmatpush1.bf16.msra.mxu0 0
      %929 = vmatprep.subr.bf16.mxu0 0
      %930 = vmatpush1.bf16.msra.mxu0 0
      %931 = vmatprep.subr.bf16.mxu0 0
      %932 = vmatpush1.bf16.msra.mxu0 0
      %933 = vmatprep.subr.bf16.mxu0 0
      %934 = vmatpush1.bf16.msra.mxu0 %v911
      %935 = vmatprep.subr.bf16.mxu0 0
      %936 = vmatpush2.bf16.msra.mxu0 0
      %937 = vmatprep.subr.bf16.mxu0 0
      %938 = vmatpush2.bf16.msra.mxu0 0
      %939 = vmatprep.subr.bf16.mxu0 0
      %940 = vmatpush2.bf16.msra.mxu0 0
      %941 = vmatprep.subr.bf16.mxu0 0
      %942 = vmatpush2.bf16.msra.mxu0 0
      %943 = vmatprep.subr.bf16.mxu0 0
      %944 = vmatpush2.bf16.msra.mxu0 0
      %945 = vmatprep.subr.bf16.mxu0 0
      %946 = vmatpush2.bf16.msra.mxu0 0
      %947 = vmatprep.subr.bf16.mxu0 0
      %948 = vmatpush2.bf16.msra.mxu0 0
      %949 = vmatprep.subr.bf16.mxu0 0
      %950 = vmatpush2.bf16.msra.mxu0 0
      %951 = vmatprep.mubr.bf16.mxu0 0
      %952 = vmatmul.mubr.bf16.gmra.mxu0 %v914
      %v953 = vpop.f32.mrf.mxu0
      %v954 = vadd.f32 0.0, %v953
      %v955 = vpop.f32.mrf.mxu0
      %v956 = vpop.f32.mrf.mxu0
      %v957 = vadd.f32 0.0, %v956
      %v958 = vpop.f32.mrf.mxu0
      %959 = vmatprep.mubr.bf16.mxu0 0
      %960 = vmatmul.mubr.bf16.gmra.mxu0 %v917
      %v961 = vpop.f32.mrf.mxu0
      %v962 = vadd.f32 0.0, %v961
      %v963 = vpop.f32.mrf.mxu0
      %v964 = vpop.f32.mrf.mxu0
      %v965 = vadd.f32 0.0, %v964
      %v966 = vpop.f32.mrf.mxu0
      %967 = vdwg.mxu0
      %v968 = vadd.f32 %v830, %v954
      %v969 = vadd.f32 %v831, %v957
      %v970 = vadd.f32 %v832, %v962
      %v971 = vadd.f32 %v833, %v965
      %v972 = vld [vmem:[%s3] sm:$0x1]
      %v974 = vlaneseq
      %v975 = vshrl.u32 %v974, 7
      %v976 = vsub.s32 0, %v975
      %v977 = vrot.slane %v972, %v976
      %v979 = vadd.f32 %v968, %v977
      %v980 = vadd.f32 %v969, %v977
      %v981 = vadd.f32 %v970, %v977
      %v982 = vadd.f32 %v971, %v977
      %v983 = vmax.f32 %v979, 0.0
      %v984 = vmax.f32 %v980, 0.0
      %v985 = vmax.f32 %v981, 0.0
      %v986 = vmax.f32 %v982, 0.0
      %v987 = vpack.c.bf16 %v983, %v983
      %v988 = vpack.c.bf16 %v984, %v984
      %v989 = vpack.c.bf16 %v985, %v985
      %v990 = vpack.c.bf16 %v986, %v986
      %vm991 = vcmask 125952
      %992 = vst.msk [vmem:[%s316] sm:$0xf] %vm991, %v987
      %993 = vst.msk [vmem:[%s316 + $0x4] sm:$0xf] %vm991, %v988
      %994 = vst.msk [vmem:[%s316 + $0x8] sm:$0xf] %vm991, %v989
      %995 = vst.msk [vmem:[%s316 + $0xc] sm:$0xf] %vm991, %v990
      %s996 = smul.u32 4, %s20
      %p997 = scmp.lt.s32.totalorder %s19, 1
      %s998 = scalar_select %p997, %s19, 1
      %p999 = scmp.lt.s32.totalorder %s996, 7
      %s1000 = scalar_select %p999, %s996, 7
      %s1001 = smul.addr %s998, 8
      %s1002 = sadd.s32 %s1000, %s1001
      %s1003 = smul.addr %s1002, 4
      %s1004 = scalar_lea.vmem %s4, %s1003
      // Predicated region
      $region37: #{timm_universal_encoder_forward.6} parent=35 // pred_check
        %p1005 = pneg %p149
      $region38: #{timm_universal_encoder_forward.6} parent=35 // pred_check_branch
        %1007 = sbr.rel (%p1005) target = $region40
      $region39: #{timm_universal_encoder_forward.6} parent=35 // pred_region
        %s1008 = smul.u32 4, %s20
      $region40: #{timm_universal_encoder_forward.6} parent=35 // pred_fallthru
        _
    $region36: #{timm_universal_encoder_forward.6} parent=5 // pred_fallthru
      _
    %p1009 = scmp.le.s32.totalorder 2, %s10
    // Predicated region
    $region41: #{timm_universal_encoder_forward.6} parent=5 // pred_check
      %p1010 = pneg %p1009
    $region42: #{timm_universal_encoder_forward.6} parent=5 // pred_check_branch
      %1012 = sbr.rel (%p1010) target = $region44
    $region43: #{timm_universal_encoder_forward.6} parent=5 // pred_region
      %s1013 = ssub.s32 %s10, 2
      // Predicated region
      $region45: #{timm_universal_encoder_forward.6} parent=43 // pred_check
        %p1014 = pneg %p155
      $region46: #{timm_universal_encoder_forward.6} parent=43 // pred_check_branch
        %1016 = sbr.rel (%p1014) target = $region48
      $region47: #{timm_universal_encoder_forward.6} parent=43 // pred_region
        %s1017 = smul.u32 4, %s22
        %p1018 = scmp.lt.s32.totalorder %s21, 1
        %s1019 = scalar_select %p1018, %s21, 1
        %p1020 = scmp.lt.s32.totalorder %s1017, 7
        %s1021 = scalar_select %p1020, %s1017, 7
        %s1022 = smul.addr %s1019, 8
        %s1023 = sadd.s32 %s1021, %s1022
        %s1024 = smul.addr %s1023, 4
        %s1025 = scalar_lea.vmem %s4, %s1024
      $region48: #{timm_universal_encoder_forward.6} parent=43 // pred_fallthru
        _
    $region44: #{timm_universal_encoder_forward.6} parent=5 // pred_fallthru
      _
  $region6: #{timm_universal_encoder_forward.6} parent=0 // loop_footer
    %s14 = sadd.s32 1, %s10
  $region7: #{timm_universal_encoder_forward.6} parent=0 // loop_footer_branch
    %9 = sbr.rel target = $region3
  $region8: #{timm_universal_encoder_forward.6} parent=0 // loop_exit
    _

// kernel: timm_universal_encoder_forward.7
$region0: #{timm_universal_encoder_forward.7}
  #allocation0 [shape = 'u32[]', space=smem, size = 0x4, offset = 0x4, fixed_abs, tag = 'smem constant byte address 0x4 - core index']
  #allocation1 [shape = 'u32[144,128]{1,0:T(1,128)}', space=vmem, size = 0x12000, scoped, tag = 'internal scratch']
  %s0 = inlined_call_operand.vmem [shape: bf16[2,5,2,5,32], index: 0, kind: input, shape index: {}, may-alias: {0,1}]
  %s1 = inlined_call_operand.vmem [shape: bf16[2,5,2,5,32], index: 1, kind: input, shape index: {}, may-alias: {0,1}]
  %s2 = inlined_call_operand.vmem [shape: bf16[6,32,32], index: 2, kind: input, shape index: {}]
  %s3 = inlined_call_operand.vmem [shape: f32[1,32], index: 3, kind: input, shape index: {}]
  %s4 = inlined_call_operand.vmem [shape: bf16[2,4,4,32], index: 4, kind: output, shape index: {}]
  %s5 = sld [smem:[#allocation0]]
  $region49: #{timm_universal_encoder_forward.7} parent=0
    _
  %s7 = ssub.s32 1, %s5
  %s8 = scalar_select 0, %s7, %s5
  loop: start=0, step=1, limit=6
  $region2: #{timm_universal_encoder_forward.7} parent=0 // loop_pre_header
    _
  $region3: #{timm_universal_encoder_forward.7} parent=0 // loop_header
    %s10 = sphi 0, %s14
    %p11 = scmp.ge.s32.totalorder %s10, 6
    %s17 = sphi 0, %s29
    %s18 = sphi 0, %s25
    %s19 = sphi 0, %s17
    %s20 = sphi 0, %s18
    %s21 = sphi 0, %s19
    %s22 = sphi 0, %s20
    %s34 = sphi 0, %s36
    %s37 = sphi 0, %s34
    %s38 = sphi 0, %s37
    %s54 = sphi 0, %s38
    %s66 = sphi 0, %s68
    %s69 = sphi 0, %s66
    %s70 = sphi 0, %s69
    %s86 = sphi 0, %s70
    %s90 = sphi 0, %s90
    %s92 = sphi 0, %s90
    %s93 = sphi 0, %s92
    %s107 = sphi 0, %s93
    %s111 = sphi 0, %s111
    %s113 = sphi 0, %s111
    %s114 = sphi 0, %s113
    %s128 = sphi 0, %s114
    %s136 = sphi 0, %s138
    %s139 = sphi 0, %s136
    %s140 = sphi 0, %s139
    %s156 = sphi 0, %s140
  $region4: #{timm_universal_encoder_forward.7} parent=0 // loop_header_branch
    %13 = sbr.rel (%p11) target = $region8
  $region5: #{timm_universal_encoder_forward.7} parent=0 // loop_body
    %s15 = ssub.s32 %s10, 1
    %s16 = ssub.s32 %s10, 2
    %s23 = sadd.s32 1, %s18
    %p24 = scmp.ge.s32.totalorder %s23, 2
    %s25 = scalar_select %p24, 0, %s23
    %s26 = sadd.s32 1, %s17
    %s27 = scalar_select %p24, %s26, %s17
    %p28 = scmp.ge.s32.totalorder %s27, 2
    %s29 = scalar_select %p28, 0, %s27
    %s30 = ssub.s32 %s17, %s29
    %s31 = ssub.s32 %s18, %s25
    %s32 = sor.u32 %s30, %s31
    %p33 = scmp.eq.s32.totalorder %s32, 0
    %s35 = sadd.s32 %s34, 1
    %s36 = scalar_select %p33, %s34, %s35
    %p39 = pneg %p33
    %p40 = scmp.eq.s32.totalorder %s10, 3
    %p41 = por %p39, %p40
    %p42 = scmp.ne.s32.totalorder %s34, %s37
    %p43 = scmp.eq.s32.totalorder %s10, 0
    %p44 = por %p42, %p43
    %p45 = scmp.ne.s32.totalorder %s34, %s37
    %p46 = scmp.eq.s32.totalorder %s15, 3
    %p47 = por %p45, %p46
    %p48 = scmp.ne.s32.totalorder %s37, %s38
    %p49 = scmp.eq.s32.totalorder %s15, 0
    %p50 = por %p48, %p49
    %p51 = scmp.ne.s32.totalorder %s37, %s38
    %p52 = scmp.eq.s32.totalorder %s16, 3
    %p53 = por %p51, %p52
    %p55 = scmp.ne.s32.totalorder %s38, %s54
    %p56 = scmp.eq.s32.totalorder %s16, 0
    %p57 = por %p55, %p56
    %s58 = sadd.s32 %s18, 1
    %s59 = smul.u32 %s58, 2
    %s60 = sadd.s32 %s25, 1
    %s61 = smul.u32 %s60, 2
    %s62 = ssub.s32 %s17, %s29
    %s63 = ssub.s32 %s59, %s61
    %s64 = sor.u32 %s62, %s63
    %p65 = scmp.eq.s32.totalorder %s64, 0
    %s67 = sadd.s32 %s66, 1
    %s68 = scalar_select %p65, %s66, %s67
    %p71 = pneg %p65
    %p72 = scmp.eq.s32.totalorder %s10, 3
    %p73 = por %p71, %p72
    %p74 = scmp.ne.s32.totalorder %s66, %s69
    %p75 = scmp.eq.s32.totalorder %s10, 0
    %p76 = por %p74, %p75
    %p77 = scmp.ne.s32.totalorder %s66, %s69
    %p78 = scmp.eq.s32.totalorder %s15, 3
    %p79 = por %p77, %p78
    %p80 = scmp.ne.s32.totalorder %s69, %s70
    %p81 = scmp.eq.s32.totalorder %s15, 0
    %p82 = por %p80, %p81
    %p83 = scmp.ne.s32.totalorder %s69, %s70
    %p84 = scmp.eq.s32.totalorder %s16, 3
    %p85 = por %p83, %p84
    %p87 = scmp.ne.s32.totalorder %s70, %s86
    %p88 = scmp.eq.s32.totalorder %s16, 0
    %p89 = por %p87, %p88
    %s91 = sadd.s32 %s90, 1
    %p94 = scmp.eq.s32.totalorder %s10, 3
    %p95 = scmp.ne.s32.totalorder %s90, %s92
    %p96 = scmp.eq.s32.totalorder %s10, 0
    %p97 = por %p95, %p96
    %p98 = scmp.ne.s32.totalorder %s90, %s92
    %p99 = scmp.eq.s32.totalorder %s15, 3
    %p100 = por %p98, %p99
    %p101 = scmp.ne.s32.totalorder %s92, %s93
    %p102 = scmp.eq.s32.totalorder %s15, 0
    %p103 = por %p101, %p102
    %p104 = scmp.ne.s32.totalorder %s92, %s93
    %p105 = scmp.eq.s32.totalorder %s16, 3
    %p106 = por %p104, %p105
    %p108 = scmp.ne.s32.totalorder %s93, %s107
    %p109 = scmp.eq.s32.totalorder %s16, 0
    %p110 = por %p108, %p109
    %s112 = sadd.s32 %s111, 1
    %p115 = scmp.eq.s32.totalorder %s10, 3
    %p116 = scmp.ne.s32.totalorder %s111, %s113
    %p117 = scmp.eq.s32.totalorder %s10, 0
    %p118 = por %p116, %p117
    %p119 = scmp.ne.s32.totalorder %s111, %s113
    %p120 = scmp.eq.s32.totalorder %s15, 3
    %p121 = por %p119, %p120
    %p122 = scmp.ne.s32.totalorder %s113, %s114
    %p123 = scmp.eq.s32.totalorder %s15, 0
    %p124 = por %p122, %p123
    %p125 = scmp.ne.s32.totalorder %s113, %s114
    %p126 = scmp.eq.s32.totalorder %s16, 3
    %p127 = por %p125, %p126
    %p129 = scmp.ne.s32.totalorder %s114, %s128
    %p130 = scmp.eq.s32.totalorder %s16, 0
    %p131 = por %p129, %p130
    %s132 = ssub.s32 %s17, %s29
    %s133 = ssub.s32 %s18, %s25
    %s134 = sor.u32 %s132, %s133
    %p135 = scmp.eq.s32.totalorder %s134, 0
    %s137 = sadd.s32 %s136, 1
    %s138 = scalar_select %p135, %s136, %s137
    %p141 = pneg %p135
    %p142 = scmp.eq.s32.totalorder %s10, 3
    %p143 = por %p141, %p142
    %p144 = scmp.ne.s32.totalorder %s136, %s139
    %p145 = scmp.eq.s32.totalorder %s10, 0
    %p146 = por %p144, %p145
    %p147 = scmp.ne.s32.totalorder %s136, %s139
    %p148 = scmp.eq.s32.totalorder %s15, 3
    %p149 = por %p147, %p148
    %p150 = scmp.ne.s32.totalorder %s139, %s140
    %p151 = scmp.eq.s32.totalorder %s15, 0
    %p152 = por %p150, %p151
    %p153 = scmp.ne.s32.totalorder %s139, %s140
    %p154 = scmp.eq.s32.totalorder %s16, 3
    %p155 = por %p153, %p154
    %p157 = scmp.ne.s32.totalorder %s140, %s156
    %p158 = scmp.eq.s32.totalorder %s16, 0
    %p159 = por %p157, %p158
    %p160 = scmp.le.s32.totalorder 1, %s10
    %p161 = scmp.lt.s32.totalorder %s10, 5
    %p162 = pnand %p160, %p161
    %p163 = pneg %p162
    // Predicated region
    $region9: #{timm_universal_encoder_forward.7} parent=5 // pred_check
      _
    $region10: #{timm_universal_encoder_forward.7} parent=5 // pred_check_branch
      %165 = sbr.rel (%p162) target = $region12
    $region11: #{timm_universal_encoder_forward.7} parent=5 // pred_region
      %s166 = ssub.s32 %s10, 1
      // Predicated region
      $region13: #{timm_universal_encoder_forward.7} parent=11 // pred_check
        %p167 = pneg %p103
      $region14: #{timm_universal_encoder_forward.7} parent=11 // pred_check_branch
        %169 = sbr.rel (%p167) target = $region16
      $region15: #{timm_universal_encoder_forward.7} parent=11 // pred_region
        _
      $region16: #{timm_universal_encoder_forward.7} parent=11 // pred_fallthru
        _
      // Predicated region
      $region17: #{timm_universal_encoder_forward.7} parent=11 // pred_check
        %p170 = pneg %p124
      $region18: #{timm_universal_encoder_forward.7} parent=11 // pred_check_branch
        %172 = sbr.rel (%p170) target = $region20
      $region19: #{timm_universal_encoder_forward.7} parent=11 // pred_region
        _
      $region20: #{timm_universal_encoder_forward.7} parent=11 // pred_fallthru
        _
    $region12: #{timm_universal_encoder_forward.7} parent=5 // pred_fallthru
      _
    %p173 = scmp.lt.s32.totalorder %s10, 4
    // Predicated region
    $region21: #{timm_universal_encoder_forward.7} parent=5 // pred_check
      %p174 = pneg %p173
    $region22: #{timm_universal_encoder_forward.7} parent=5 // pred_check_branch
      %176 = sbr.rel (%p174) target = $region24
    $region23: #{timm_universal_encoder_forward.7} parent=5 // pred_region
      // Predicated region
      $region25: #{timm_universal_encoder_forward.7} parent=23 // pred_check
        %p177 = pneg %p44
      $region26: #{timm_universal_encoder_forward.7} parent=23 // pred_check_branch
        %179 = sbr.rel (%p177) target = $region28
      $region27: #{timm_universal_encoder_forward.7} parent=23 // pred_region
        %s180 = smul.u32 2, %s18
        %s181 = ssub.s32 5, %s180
        %p182 = scmp.lt.s32.totalorder %s181, 2
        %s183 = scalar_select %p182, %s181, 2
        %s184 = smul.u32 64, %s183
        %s185 = smul.u32 %s184, 2
        %p186 = scmp.lt.s32.totalorder %s17, 1
        %s187 = scalar_select %p186, %s17, 1
        %p188 = scmp.lt.s32.totalorder %s180, 4
        %s189 = scalar_select %p188, %s180, 4
        %s190 = smul.addr %s189, 2
        %s191 = smul.addr %s187, 10
        %s192 = sadd.s32 %s190, %s191
        %s193 = smul.addr %s192, 4
        %s194 = scalar_lea.vmem %s0, %s193
        %s195 = smul.u32 2, %s18
        %s196 = ssub.s32 5, %s195
        %p197 = scmp.lt.s32.totalorder %s196, 2
        %s198 = scalar_select %p197, %s196, 2
        %s199 = smul.u32 64, %s198
        %s200 = smul.u32 %s199, 2
      $region28: #{timm_universal_encoder_forward.7} parent=23 // pred_fallthru
        _
      // Predicated region
      $region29: #{timm_universal_encoder_forward.7} parent=23 // pred_check
        %p201 = pneg %p76
      $region30: #{timm_universal_encoder_forward.7} parent=23 // pred_check_branch
        %203 = sbr.rel (%p201) target = $region32
      $region31: #{timm_universal_encoder_forward.7} parent=23 // pred_region
        %s204 = sadd.s32 %s18, 1
        %s205 = smul.u32 %s204, 2
        %p206 = scmp.lt.s32.totalorder %s17, 1
        %s207 = scalar_select %p206, %s17, 1
        %p208 = scmp.lt.s32.totalorder %s205, 4
        %s209 = scalar_select %p208, %s205, 4
        %s210 = smul.addr %s209, 2
        %s211 = smul.addr %s207, 10
        %s212 = sadd.s32 %s210, %s211
        %s213 = smul.addr %s212, 4
        %s214 = scalar_lea.vmem %s1, %s213
        %s215 = sadd.s32 %s18, 1
        %s216 = smul.u32 %s215, 2
      $region32: #{timm_universal_encoder_forward.7} parent=23 // pred_fallthru
        _
    $region24: #{timm_universal_encoder_forward.7} parent=5 // pred_fallthru
      _
    %p217 = scmp.le.s32.totalorder 1, %s10
    %p218 = scmp.lt.s32.totalorder %s10, 5
    %p219 = pnand %p217, %p218
    %p220 = pneg %p219
    // Predicated region
    $region33: #{timm_universal_encoder_forward.7} parent=5 // pred_check
      _
    $region34: #{timm_universal_encoder_forward.7} parent=5 // pred_check_branch
      %222 = sbr.rel (%p219) target = $region36
    $region35: #{timm_universal_encoder_forward.7} parent=5 // pred_region
      %s223 = ssub.s32 %s10, 1
      %s224 = smul.u32 2, %s20
      %s225 = ssub.s32 5, %s224
      %p226 = scmp.lt.s32.totalorder %s225, 2
      %s227 = scalar_select %p226, %s225, 2
      %s228 = smul.u32 64, %s227
      %s229 = smul.u32 %s228, 2
      %p230 = scmp.lt.s32.totalorder %s19, 1
      %s231 = scalar_select %p230, %s19, 1
      %p232 = scmp.lt.s32.totalorder %s224, 4
      %s233 = scalar_select %p232, %s224, 4
      %s234 = smul.addr %s233, 2
      %s235 = smul.addr %s231, 10
      %s236 = sadd.s32 %s234, %s235
      %s237 = smul.addr %s236, 4
      %s238 = scalar_lea.vmem %s0, %s237
      %p239 = pneg %p50
      %p240 = pneg %p47
      %s241 = sadd.s32 %s20, 1
      %s242 = smul.u32 %s241, 2
      %p243 = scmp.lt.s32.totalorder %s19, 1
      %s244 = scalar_select %p243, %s19, 1
      %p245 = scmp.lt.s32.totalorder %s242, 4
      %s246 = scalar_select %p245, %s242, 4
      %s247 = smul.addr %s246, 2
      %s248 = smul.addr %s244, 10
      %s249 = sadd.s32 %s247, %s248
      %s250 = smul.addr %s249, 4
      %s251 = scalar_lea.vmem %s1, %s250
      %p252 = pneg %p82
      %p253 = pneg %p79
      %p254 = pneg %p103
      %p255 = pneg %p100
      %p256 = pneg %p124
      %p257 = pneg %p121
      %p258 = pneg %p152
      %p259 = pneg %p149
      %s260 = smul.u32 2, %s20
      %p261 = scmp.lt.s32.totalorder %s19, 1
      %s262 = scalar_select %p261, %s19, 1
      %p263 = scmp.lt.s32.totalorder %s260, 3
      %s264 = scalar_select %p263, %s260, 3
      %s265 = smul.addr %s262, 4
      %s266 = sadd.s32 %s264, %s265
      %s267 = smul.addr %s266, 2
      %s268 = scalar_lea.vmem %s4, %s267
      %s269 = smul.u32 2, %s20
      %s270 = ssub.s32 5, %s269
      %p271 = scmp.lt.s32.totalorder %s270, 2
      %s272 = scalar_select %p271, %s270, 2
      %s273 = smul.u32 64, %s272
      %s274 = smul.u32 %s273, 2
      %p275 = scmp.lt.s32.totalorder %s19, 1
      %s276 = scalar_select %p275, %s19, 1
      %p277 = scmp.lt.s32.totalorder %s269, 4
      %s278 = scalar_select %p277, %s269, 4
      %s279 = smul.addr %s278, 2
      %s280 = smul.addr %s276, 10
      %s281 = sadd.s32 %s279, %s280
      %s282 = smul.addr %s281, 4
      %s283 = scalar_lea.vmem %s0, %s282
      %s284 = smul.u32 2, %s20
      %s285 = ssub.s32 5, %s284
      %p286 = scmp.lt.s32.totalorder %s285, 2
      %s287 = scalar_select %p286, %s285, 2
      %s288 = smul.u32 64, %s287
      %s289 = smul.u32 %s288, 2
      %s290 = sadd.s32 %s20, 1
      %s291 = smul.u32 %s290, 2
      %p292 = scmp.lt.s32.totalorder %s19, 1
      %s293 = scalar_select %p292, %s19, 1
      %p294 = scmp.lt.s32.totalorder %s291, 4
      %s295 = scalar_select %p294, %s291, 4
      %s296 = smul.addr %s295, 2
      %s297 = smul.addr %s293, 10
      %s298 = sadd.s32 %s296, %s297
      %s299 = smul.addr %s298, 4
      %s300 = scalar_lea.vmem %s1, %s299
      %s301 = sadd.s32 %s20, 1
      %s302 = smul.u32 %s301, 2
      %s303 = smul.u32 2, %s20
      %p304 = scmp.lt.s32.totalorder %s19, 1
      %s305 = scalar_select %p304, %s19, 1
      %p306 = scmp.lt.s32.totalorder %s303, 3
      %s307 = scalar_select %p306, %s303, 3
      %s308 = smul.addr %s305, 4
      %s309 = sadd.s32 %s307, %s308
      %s310 = smul.addr %s309, 2
      %s311 = scalar_lea.vmem %s4, %s310
      %s312 = smul.u32 2, %s20
      %v314 = vld [vmem:[%s283] sm:$0x3]
      %v315 = vld [vmem:[%s283 + $0x8] sm:$0x3]
      %v316 = vld [vmem:[%s2] sm:$0xf]
      %v317 = vld [vmem:[%s2 + $0x4] sm:$0xf]
      %v318 = vld [vmem:[%s2 + $0x8] sm:$0xf]
      %v319 = vld [vmem:[%s2 + $0xc] sm:$0xf]
      %v320 = vld [vmem:[%s283] sm:$0x7]
      %v321 = vld [vmem:[%s283 + $0x8] sm:$0x7]
      %v325 = vunpack.c.l.s4 1983009808
      %v326 = vunpack.c.0.s8 %v325
      %v327 = vlaneseq
      %v328 = vshrl.u32 %v327, 7
      %v329 = vsub.s32 %v326, %v328
      %v330 = vrot.slane %v320, %v329
      %v331 = vcombine.high %v330, %v330
      %v333 = vunpack.c.l.s4 1983009808
      %v334 = vunpack.c.0.s8 %v333
      %v335 = vlaneseq
      %v336 = vshrl.u32 %v335, 7
      %v337 = vsub.s32 %v334, %v336
      %v338 = vrot.slane %v321, %v337
      %v339 = vcombine.high %v338, %v338
      %vm340 = vsmask.f32 1280
      %vm341 = vsmask.f32 3336
      %vm342 = vmor %vm340, %vm341
      %vm343 = vsmask.f32 5392
      %vm344 = vmor %vm342, %vm343
      %vm345 = vsmask.f32 7448
      %vm346 = vmor %vm344, %vm345
      %v348 = vshrl.u32 %v330, 16
      %v350 = vrot.slane %v348, 6
      %v351 = vshll.u32 %v330, 16
      %v353 = vrot.slane %v351, 7
      %v354 = vor.u32 %v350, %v353
      %v355 = vrot.slane %v354, 2
      %v357 = vshll.u32 %v331, 16
      %v359 = vrot.slane %v357, 7
      %v360 = vsel %vm346, %v355, %v359
      %v362 = vshrl.u32 %v338, 16
      %v364 = vrot.slane %v362, 6
      %v365 = vshll.u32 %v338, 16
      %v367 = vrot.slane %v365, 7
      %v368 = vor.u32 %v364, %v367
      %v369 = vrot.slane %v368, 2
      %v371 = vshll.u32 %v339, 16
      %v373 = vrot.slane %v371, 7
      %v374 = vsel %vm346, %v369, %v373
      %s375 = scalar_lea.vmem %s2, 16
      %v376 = vld [vmem:[%s375] sm:$0xf]
      %v377 = vld [vmem:[%s375 + $0x4] sm:$0xf]
      %v378 = vld [vmem:[%s375 + $0x8] sm:$0xf]
      %v379 = vld [vmem:[%s375 + $0xc] sm:$0xf]
      %v380 = vcombine.low %v360, %v374
      %v382 = vunpack.c.l.s4 1983009808
      %v383 = vunpack.c.0.s8 %v382
      %v384 = vlaneseq
      %v385 = vshrl.u32 %v384, 7
      %v386 = vsub.s32 %v383, %v385
      %v387 = vrot.slane %v380, %v386
      %v392 = vunpack.c.l.b16 %v376
      %v393 = vunpack.c.l.b16 %v377
      %v394 = vunpack.c.l.b16 %v378
      %v395 = vunpack.c.l.b16 %v379
      %v396 = vpack.c.b16 %v393, %v392
      %v397 = vpack.c.b16 %v395, %v394
      %vm400 = vcmask 261120
      %v402 = vsel %vm400, %v387, 0
      %404 = vmatprep.subr.bf16.mxu0 0
      %405 = vmatpush1.bf16.msra.mxu0 0
      %406 = vmatprep.subr.bf16.mxu0 0
      %407 = vmatpush1.bf16.msra.mxu0 0
      %408 = vmatprep.subr.bf16.mxu0 0
      %409 = vmatpush1.bf16.msra.mxu0 0
      %410 = vmatprep.subr.bf16.mxu0 0
      %411 = vmatpush1.bf16.msra.mxu0 0
      %412 = vmatprep.subr.bf16.mxu0 0
      %413 = vmatpush1.bf16.msra.mxu0 0
      %414 = vmatprep.subr.bf16.mxu0 0
      %415 = vmatpush1.bf16.msra.mxu0 0
      %416 = vmatprep.subr.bf16.mxu0 0
      %417 = vmatpush1.bf16.msra.mxu0 %v397
      %418 = vmatprep.subr.bf16.mxu0 0
      %419 = vmatpush1.bf16.msra.mxu0 %v396
      %420 = vmatprep.subr.bf16.mxu0 0
      %421 = vmatpush2.bf16.msra.mxu0 0
      %422 = vmatprep.subr.bf16.mxu0 0
      %423 = vmatpush2.bf16.msra.mxu0 0
      %424 = vmatprep.subr.bf16.mxu0 0
      %425 = vmatpush2.bf16.msra.mxu0 0
      %426 = vmatprep.subr.bf16.mxu0 0
      %427 = vmatpush2.bf16.msra.mxu0 0
      %428 = vmatprep.subr.bf16.mxu0 0
      %429 = vmatpush2.bf16.msra.mxu0 0
      %430 = vmatprep.subr.bf16.mxu0 0
      %431 = vmatpush2.bf16.msra.mxu0 0
      %432 = vmatprep.subr.bf16.mxu0 0
      %433 = vmatpush2.bf16.msra.mxu0 0
      %434 = vmatprep.subr.bf16.mxu0 0
      %435 = vmatpush2.bf16.msra.mxu0 0
      %436 = vmatprep.mubr.bf16.mxu0 0
      %437 = vmatmul.mubr.bf16.gmra.mxu0 %v402
      %v438 = vpop.f32.mrf.mxu0
      %v439 = vadd.f32 0.0, %v438
      %v440 = vpop.f32.mrf.mxu0
      %v441 = vpop.f32.mrf.mxu0
      %v442 = vpop.f32.mrf.mxu0
      %443 = vdwg.mxu0
      %v446 = vcombine.low %v314, %v315
      %v448 = vunpack.c.l.s4 1983009808
      %v449 = vunpack.c.0.s8 %v448
      %v450 = vlaneseq
      %v451 = vshrl.u32 %v450, 7
      %v452 = vsub.s32 %v449, %v451
      %v453 = vrot.slane %v446, %v452
      %v458 = vunpack.c.l.b16 %v316
      %v459 = vunpack.c.l.b16 %v317
      %v460 = vunpack.c.l.b16 %v318
      %v461 = vunpack.c.l.b16 %v319
      %v462 = vpack.c.b16 %v459, %v458
      %v463 = vpack.c.b16 %v461, %v460
      %v467 = vsel %vm400, %v453, 0
      %469 = vmatprep.subr.bf16.mxu0 0
      %470 = vmatpush1.bf16.msra.mxu0 0
      %471 = vmatprep.subr.bf16.mxu0 0
      %472 = vmatpush1.bf16.msra.mxu0 0
      %473 = vmatprep.subr.bf16.mxu0 0
      %474 = vmatpush1.bf16.msra.mxu0 0
      %475 = vmatprep.subr.bf16.mxu0 0
      %476 = vmatpush1.bf16.msra.mxu0 0
      %477 = vmatprep.subr.bf16.mxu0 0
      %478 = vmatpush1.bf16.msra.mxu0 0
      %479 = vmatprep.subr.bf16.mxu0 0
      %480 = vmatpush1.bf16.msra.mxu0 0
      %481 = vmatprep.subr.bf16.mxu0 0
      %482 = vmatpush1.bf16.msra.mxu0 %v463
      %483 = vmatprep.subr.bf16.mxu0 0
      %484 = vmatpush1.bf16.msra.mxu0 %v462
      %485 = vmatprep.subr.bf16.mxu0 0
      %486 = vmatpush2.bf16.msra.mxu0 0
      %487 = vmatprep.subr.bf16.mxu0 0
      %488 = vmatpush2.bf16.msra.mxu0 0
      %489 = vmatprep.subr.bf16.mxu0 0
      %490 = vmatpush2.bf16.msra.mxu0 0
      %491 = vmatprep.subr.bf16.mxu0 0
      %492 = vmatpush2.bf16.msra.mxu0 0
      %493 = vmatprep.subr.bf16.mxu0 0
      %494 = vmatpush2.bf16.msra.mxu0 0
      %495 = vmatprep.subr.bf16.mxu0 0
      %496 = vmatpush2.bf16.msra.mxu0 0
      %497 = vmatprep.subr.bf16.mxu0 0
      %498 = vmatpush2.bf16.msra.mxu0 0
      %499 = vmatprep.subr.bf16.mxu0 0
      %500 = vmatpush2.bf16.msra.mxu0 0
      %501 = vmatprep.mubr.bf16.mxu0 0
      %502 = vmatmul.mubr.bf16.gmra.mxu0 %v467
      %v503 = vpop.f32.mrf.mxu0
      %v504 = vadd.f32 %v439, %v503
      %v505 = vpop.f32.mrf.mxu0
      %v506 = vpop.f32.mrf.mxu0
      %v507 = vpop.f32.mrf.mxu0
      %508 = vdwg.mxu0
      %s509 = scalar_lea.vmem %s283, 4
      %v510 = vld [vmem:[%s509] sm:$0x3]
      %v511 = vld [vmem:[%s509 + $0x8] sm:$0x3]
      %s512 = scalar_lea.vmem %s2, 32
      %v513 = vld [vmem:[%s512] sm:$0xf]
      %v514 = vld [vmem:[%s512 + $0x4] sm:$0xf]
      %v515 = vld [vmem:[%s512 + $0x8] sm:$0xf]
      %v516 = vld [vmem:[%s512 + $0xc] sm:$0xf]
      %v519 = vcombine.low %v510, %v511
      %v521 = vunpack.c.l.s4 1983009808
      %v522 = vunpack.c.0.s8 %v521
      %v523 = vlaneseq
      %v524 = vshrl.u32 %v523, 7
      %v525 = vsub.s32 %v522, %v524
      %v526 = vrot.slane %v519, %v525
      %v531 = vunpack.c.l.b16 %v513
      %v532 = vunpack.c.l.b16 %v514
      %v533 = vunpack.c.l.b16 %v515
      %v534 = vunpack.c.l.b16 %v516
      %v535 = vpack.c.b16 %v532, %v531
      %v536 = vpack.c.b16 %v534, %v533
      %v540 = vsel %vm400, %v526, 0
      %542 = vmatprep.subr.bf16.mxu0 0
      %543 = vmatpush1.bf16.msra.mxu0 0
      %544 = vmatprep.subr.bf16.mxu0 0
      %545 = vmatpush1.bf16.msra.mxu0 0
      %546 = vmatprep.subr.bf16.mxu0 0
      %547 = vmatpush1.bf16.msra.mxu0 0
      %548 = vmatprep.subr.bf16.mxu0 0
      %549 = vmatpush1.bf16.msra.mxu0 0
      %550 = vmatprep.subr.bf16.mxu0 0
      %551 = vmatpush1.bf16.msra.mxu0 0
      %552 = vmatprep.subr.bf16.mxu0 0
      %553 = vmatpush1.bf16.msra.mxu0 0
      %554 = vmatprep.subr.bf16.mxu0 0
      %555 = vmatpush1.bf16.msra.mxu0 %v536
      %556 = vmatprep.subr.bf16.mxu0 0
      %557 = vmatpush1.bf16.msra.mxu0 %v535
      %558 = vmatprep.subr.bf16.mxu0 0
      %559 = vmatpush2.bf16.msra.mxu0 0
      %560 = vmatprep.subr.bf16.mxu0 0
      %561 = vmatpush2.bf16.msra.mxu0 0
      %562 = vmatprep.subr.bf16.mxu0 0
      %563 = vmatpush2.bf16.msra.mxu0 0
      %564 = vmatprep.subr.bf16.mxu0 0
      %565 = vmatpush2.bf16.msra.mxu0 0
      %566 = vmatprep.subr.bf16.mxu0 0
      %567 = vmatpush2.bf16.msra.mxu0 0
      %568 = vmatprep.subr.bf16.mxu0 0
      %569 = vmatpush2.bf16.msra.mxu0 0
      %570 = vmatprep.subr.bf16.mxu0 0
      %571 = vmatpush2.bf16.msra.mxu0 0
      %572 = vmatprep.subr.bf16.mxu0 0
      %573 = vmatpush2.bf16.msra.mxu0 0
      %574 = vmatprep.mubr.bf16.mxu0 0
      %575 = vmatmul.mubr.bf16.gmra.mxu0 %v540
      %v576 = vpop.f32.mrf.mxu0
      %v577 = vadd.f32 0.0, %v576
      %v578 = vpop.f32.mrf.mxu0
      %v579 = vpop.f32.mrf.mxu0
      %v580 = vpop.f32.mrf.mxu0
      %581 = vdwg.mxu0
      %v582 = vadd.f32 %v504, %v577
      %v583 = vld [vmem:[%s509] sm:$0x7]
      %v584 = vld [vmem:[%s509 + $0x8] sm:$0x7]
      %v588 = vunpack.c.l.s4 1983009808
      %v589 = vunpack.c.0.s8 %v588
      %v590 = vlaneseq
      %v591 = vshrl.u32 %v590, 7
      %v592 = vsub.s32 %v589, %v591
      %v593 = vrot.slane %v583, %v592
      %v594 = vcombine.high %v593, %v593
      %v596 = vunpack.c.l.s4 1983009808
      %v597 = vunpack.c.0.s8 %v596
      %v598 = vlaneseq
      %v599 = vshrl.u32 %v598, 7
      %v600 = vsub.s32 %v597, %v599
      %v601 = vrot.slane %v584, %v600
      %v602 = vcombine.high %v601, %v601
      %v604 = vshrl.u32 %v593, 16
      %v606 = vrot.slane %v604, 6
      %v607 = vshll.u32 %v593, 16
      %v609 = vrot.slane %v607, 7
      %v610 = vor.u32 %v606, %v609
      %v611 = vrot.slane %v610, 2
      %v613 = vshll.u32 %v594, 16
      %v615 = vrot.slane %v613, 7
      %v616 = vsel %vm346, %v611, %v615
      %v618 = vshrl.u32 %v601, 16
      %v620 = vrot.slane %v618, 6
      %v621 = vshll.u32 %v601, 16
      %v623 = vrot.slane %v621, 7
      %v624 = vor.u32 %v620, %v623
      %v625 = vrot.slane %v624, 2
      %v627 = vshll.u32 %v602, 16
      %v629 = vrot.slane %v627, 7
      %v630 = vsel %vm346, %v625, %v629
      %s631 = scalar_lea.vmem %s2, 48
      %v632 = vld [vmem:[%s631] sm:$0xf]
      %v633 = vld [vmem:[%s631 + $0x4] sm:$0xf]
      %v634 = vld [vmem:[%s631 + $0x8] sm:$0xf]
      %v635 = vld [vmem:[%s631 + $0xc] sm:$0xf]
      %v636 = vcombine.low %v616, %v630
      %v638 = vunpack.c.l.s4 1983009808
      %v639 = vunpack.c.0.s8 %v638
      %v640 = vlaneseq
      %v641 = vshrl.u32 %v640, 7
      %v642 = vsub.s32 %v639, %v641
      %v643 = vrot.slane %v636, %v642
      %v648 = vunpack.c.l.b16 %v632
      %v649 = vunpack.c.l.b16 %v633
      %v650 = vunpack.c.l.b16 %v634
      %v651 = vunpack.c.l.b16 %v635
      %v652 = vpack.c.b16 %v649, %v648
      %v653 = vpack.c.b16 %v651, %v650
      %v657 = vsel %vm400, %v643, 0
      %659 = vmatprep.subr.bf16.mxu0 0
      %660 = vmatpush1.bf16.msra.mxu0 0
      %661 = vmatprep.subr.bf16.mxu0 0
      %662 = vmatpush1.bf16.msra.mxu0 0
      %663 = vmatprep.subr.bf16.mxu0 0
      %664 = vmatpush1.bf16.msra.mxu0 0
      %665 = vmatprep.subr.bf16.mxu0 0
      %666 = vmatpush1.bf16.msra.mxu0 0
      %667 = vmatprep.subr.bf16.mxu0 0
      %668 = vmatpush1.bf16.msra.mxu0 0
      %669 = vmatprep.subr.bf16.mxu0 0
      %670 = vmatpush1.bf16.msra.mxu0 0
      %671 = vmatprep.subr.bf16.mxu0 0
      %672 = vmatpush1.bf16.msra.mxu0 %v653
      %673 = vmatprep.subr.bf16.mxu0 0
      %674 = vmatpush1.bf16.msra.mxu0 %v652
      %675 = vmatprep.subr.bf16.mxu0 0
      %676 = vmatpush2.bf16.msra.mxu0 0
      %677 = vmatprep.subr.bf16.mxu0 0
      %678 = vmatpush2.bf16.msra.mxu0 0
      %679 = vmatprep.subr.bf16.mxu0 0
      %680 = vmatpush2.bf16.msra.mxu0 0
      %681 = vmatprep.subr.bf16.mxu0 0
      %682 = vmatpush2.bf16.msra.mxu0 0
      %683 = vmatprep.subr.bf16.mxu0 0
      %684 = vmatpush2.bf16.msra.mxu0 0
      %685 = vmatprep.subr.bf16.mxu0 0
      %686 = vmatpush2.bf16.msra.mxu0 0
      %687 = vmatprep.subr.bf16.mxu0 0
      %688 = vmatpush2.bf16.msra.mxu0 0
      %689 = vmatprep.subr.bf16.mxu0 0
      %690 = vmatpush2.bf16.msra.mxu0 0
      %691 = vmatprep.mubr.bf16.mxu0 0
      %692 = vmatmul.mubr.bf16.gmra.mxu0 %v657
      %v693 = vpop.f32.mrf.mxu0
      %v694 = vadd.f32 0.0, %v693
      %v695 = vpop.f32.mrf.mxu0
      %v696 = vpop.f32.mrf.mxu0
      %v697 = vpop.f32.mrf.mxu0
      %698 = vdwg.mxu0
      %v699 = vadd.f32 %v582, %v694
      %v700 = vld [vmem:[%s300] sm:$0x3]
      %s701 = scalar_lea.vmem %s283, 8
      %v702 = vld [vmem:[%s701] sm:$0x3]
      %s703 = scalar_lea.vmem %s2, 64
      %v704 = vld [vmem:[%s703] sm:$0xf]
      %v705 = vld [vmem:[%s703 + $0x4] sm:$0xf]
      %v706 = vld [vmem:[%s703 + $0x8] sm:$0xf]
      %v707 = vld [vmem:[%s703 + $0xc] sm:$0xf]
      %v710 = vcombine.low %v702, %v700
      %v712 = vunpack.c.l.s4 1983009808
      %v713 = vunpack.c.0.s8 %v712
      %v714 = vlaneseq
      %v715 = vshrl.u32 %v714, 7
      %v716 = vsub.s32 %v713, %v715
      %v717 = vrot.slane %v710, %v716
      %v722 = vunpack.c.l.b16 %v704
      %v723 = vunpack.c.l.b16 %v705
      %v724 = vunpack.c.l.b16 %v706
      %v725 = vunpack.c.l.b16 %v707
      %v726 = vpack.c.b16 %v723, %v722
      %v727 = vpack.c.b16 %v725, %v724
      %v731 = vsel %vm400, %v717, 0
      %733 = vmatprep.subr.bf16.mxu0 0
      %734 = vmatpush1.bf16.msra.mxu0 0
      %735 = vmatprep.subr.bf16.mxu0 0
      %736 = vmatpush1.bf16.msra.mxu0 0
      %737 = vmatprep.subr.bf16.mxu0 0
      %738 = vmatpush1.bf16.msra.mxu0 0
      %739 = vmatprep.subr.bf16.mxu0 0
      %740 = vmatpush1.bf16.msra.mxu0 0
      %741 = vmatprep.subr.bf16.mxu0 0
      %742 = vmatpush1.bf16.msra.mxu0 0
      %743 = vmatprep.subr.bf16.mxu0 0
      %744 = vmatpush1.bf16.msra.mxu0 0
      %745 = vmatprep.subr.bf16.mxu0 0
      %746 = vmatpush1.bf16.msra.mxu0 %v727
      %747 = vmatprep.subr.bf16.mxu0 0
      %748 = vmatpush1.bf16.msra.mxu0 %v726
      %749 = vmatprep.subr.bf16.mxu0 0
      %750 = vmatpush2.bf16.msra.mxu0 0
      %751 = vmatprep.subr.bf16.mxu0 0
      %752 = vmatpush2.bf16.msra.mxu0 0
      %753 = vmatprep.subr.bf16.mxu0 0
      %754 = vmatpush2.bf16.msra.mxu0 0
      %755 = vmatprep.subr.bf16.mxu0 0
      %756 = vmatpush2.bf16.msra.mxu0 0
      %757 = vmatprep.subr.bf16.mxu0 0
      %758 = vmatpush2.bf16.msra.mxu0 0
      %759 = vmatprep.subr.bf16.mxu0 0
      %760 = vmatpush2.bf16.msra.mxu0 0
      %761 = vmatprep.subr.bf16.mxu0 0
      %762 = vmatpush2.bf16.msra.mxu0 0
      %763 = vmatprep.subr.bf16.mxu0 0
      %764 = vmatpush2.bf16.msra.mxu0 0
      %765 = vmatprep.mubr.bf16.mxu0 0
      %766 = vmatmul.mubr.bf16.gmra.mxu0 %v731
      %v767 = vpop.f32.mrf.mxu0
      %v768 = vadd.f32 0.0, %v767
      %v769 = vpop.f32.mrf.mxu0
      %v770 = vpop.f32.mrf.mxu0
      %v771 = vpop.f32.mrf.mxu0
      %772 = vdwg.mxu0
      %v773 = vadd.f32 %v699, %v768
      %v774 = vld [vmem:[%s300] sm:$0x7]
      %v775 = vld [vmem:[%s701] sm:$0x7]
      %v779 = vunpack.c.l.s4 1983009808
      %v780 = vunpack.c.0.s8 %v779
      %v781 = vlaneseq
      %v782 = vshrl.u32 %v781, 7
      %v783 = vsub.s32 %v780, %v782
      %v784 = vrot.slane %v775, %v783
      %v785 = vcombine.high %v784, %v784
      %v787 = vunpack.c.l.s4 1983009808
      %v788 = vunpack.c.0.s8 %v787
      %v789 = vlaneseq
      %v790 = vshrl.u32 %v789, 7
      %v791 = vsub.s32 %v788, %v790
      %v792 = vrot.slane %v774, %v791
      %v793 = vcombine.high %v792, %v792
      %v795 = vshrl.u32 %v784, 16
      %v797 = vrot.slane %v795, 6
      %v798 = vshll.u32 %v784, 16
      %v800 = vrot.slane %v798, 7
      %v801 = vor.u32 %v797, %v800
      %v802 = vrot.slane %v801, 2
      %v804 = vshll.u32 %v785, 16
      %v806 = vrot.slane %v804, 7
      %v807 = vsel %vm346, %v802, %v806
      %v809 = vshrl.u32 %v792, 16
      %v811 = vrot.slane %v809, 6
      %v812 = vshll.u32 %v792, 16
      %v814 = vrot.slane %v812, 7
      %v815 = vor.u32 %v811, %v814
      %v816 = vrot.slane %v815, 2
      %v818 = vshll.u32 %v793, 16
      %v820 = vrot.slane %v818, 7
      %v821 = vsel %vm346, %v816, %v820
      %s822 = scalar_lea.vmem %s2, 80
      %v823 = vld [vmem:[%s822] sm:$0xf]
      %v824 = vld [vmem:[%s822 + $0x4] sm:$0xf]
      %v825 = vld [vmem:[%s822 + $0x8] sm:$0xf]
      %v826 = vld [vmem:[%s822 + $0xc] sm:$0xf]
      %v827 = vcombine.low %v807, %v821
      %v829 = vunpack.c.l.s4 1983009808
      %v830 = vunpack.c.0.s8 %v829
      %v831 = vlaneseq
      %v832 = vshrl.u32 %v831, 7
      %v833 = vsub.s32 %v830, %v832
      %v834 = vrot.slane %v827, %v833
      %v839 = vunpack.c.l.b16 %v823
      %v840 = vunpack.c.l.b16 %v824
      %v841 = vunpack.c.l.b16 %v825
      %v842 = vunpack.c.l.b16 %v826
      %v843 = vpack.c.b16 %v840, %v839
      %v844 = vpack.c.b16 %v842, %v841
      %v848 = vsel %vm400, %v834, 0
      %850 = vmatprep.subr.bf16.mxu0 0
      %851 = vmatpush1.bf16.msra.mxu0 0
      %852 = vmatprep.subr.bf16.mxu0 0
      %853 = vmatpush1.bf16.msra.mxu0 0
      %854 = vmatprep.subr.bf16.mxu0 0
      %855 = vmatpush1.bf16.msra.mxu0 0
      %856 = vmatprep.subr.bf16.mxu0 0
      %857 = vmatpush1.bf16.msra.mxu0 0
      %858 = vmatprep.subr.bf16.mxu0 0
      %859 = vmatpush1.bf16.msra.mxu0 0
      %860 = vmatprep.subr.bf16.mxu0 0
      %861 = vmatpush1.bf16.msra.mxu0 0
      %862 = vmatprep.subr.bf16.mxu0 0
      %863 = vmatpush1.bf16.msra.mxu0 %v844
      %864 = vmatprep.subr.bf16.mxu0 0
      %865 = vmatpush1.bf16.msra.mxu0 %v843
      %866 = vmatprep.subr.bf16.mxu0 0
      %867 = vmatpush2.bf16.msra.mxu0 0
      %868 = vmatprep.subr.bf16.mxu0 0
      %869 = vmatpush2.bf16.msra.mxu0 0
      %870 = vmatprep.subr.bf16.mxu0 0
      %871 = vmatpush2.bf16.msra.mxu0 0
      %872 = vmatprep.subr.bf16.mxu0 0
      %873 = vmatpush2.bf16.msra.mxu0 0
      %874 = vmatprep.subr.bf16.mxu0 0
      %875 = vmatpush2.bf16.msra.mxu0 0
      %876 = vmatprep.subr.bf16.mxu0 0
      %877 = vmatpush2.bf16.msra.mxu0 0
      %878 = vmatprep.subr.bf16.mxu0 0
      %879 = vmatpush2.bf16.msra.mxu0 0
      %880 = vmatprep.subr.bf16.mxu0 0
      %881 = vmatpush2.bf16.msra.mxu0 0
      %882 = vmatprep.mubr.bf16.mxu0 0
      %883 = vmatmul.mubr.bf16.gmra.mxu0 %v848
      %v884 = vpop.f32.mrf.mxu0
      %v885 = vadd.f32 0.0, %v884
      %v886 = vpop.f32.mrf.mxu0
      %v887 = vpop.f32.mrf.mxu0
      %v888 = vpop.f32.mrf.mxu0
      %889 = vdwg.mxu0
      %v890 = vadd.f32 %v773, %v885
      %v891 = vld [vmem:[%s3] sm:$0x1]
      %v893 = vlaneseq
      %v894 = vshrl.u32 %v893, 7
      %v895 = vsub.s32 0, %v894
      %v896 = vrot.slane %v891, %v895
      %v898 = vadd.f32 %v890, %v896
      %v899 = vmax.f32 %v898, 0.0
      %v901 = vcombine.high %v899, %v899
      %v903 = vpack.c.bf16 %v899, %v899
      %v904 = vpack.c.bf16 %v901, %v901
      %vm905 = vcmask 254976
      %906 = vst.msk [vmem:[%s311] sm:$0x3] %vm905, %v903
      %907 = vst.msk [vmem:[%s311 + $0x2] sm:$0x3] %vm905, %v904
      %s908 = smul.u32 2, %s20
      %p909 = scmp.lt.s32.totalorder %s19, 1
      %s910 = scalar_select %p909, %s19, 1
      %p911 = scmp.lt.s32.totalorder %s908, 3
      %s912 = scalar_select %p911, %s908, 3
      %s913 = smul.addr %s910, 4
      %s914 = sadd.s32 %s912, %s913
      %s915 = smul.addr %s914, 2
      %s916 = scalar_lea.vmem %s4, %s915
      // Predicated region
      $region37: #{timm_universal_encoder_forward.7} parent=35 // pred_check
        %p917 = pneg %p149
      $region38: #{timm_universal_encoder_forward.7} parent=35 // pred_check_branch
        %919 = sbr.rel (%p917) target = $region40
      $region39: #{timm_universal_encoder_forward.7} parent=35 // pred_region
        %s920 = smul.u32 2, %s20
      $region40: #{timm_universal_encoder_forward.7} parent=35 // pred_fallthru
        _
    $region36: #{timm_universal_encoder_forward.7} parent=5 // pred_fallthru
      _
    %p921 = scmp.le.s32.totalorder 2, %s10
    // Predicated region
    $region41: #{timm_universal_encoder_forward.7} parent=5 // pred_check
      %p922 = pneg %p921
    $region42: #{timm_universal_encoder_forward.7} parent=5 // pred_check_branch
      %924 = sbr.rel (%p922) target = $region44
    $region43: #{timm_universal_encoder_forward.7} parent=5 // pred_region
      %s925 = ssub.s32 %s10, 2
      // Predicated region
      $region45: #{timm_universal_encoder_forward.7} parent=43 // pred_check
        %p926 = pneg %p155
      $region46: #{timm_universal_encoder_forward.7} parent=43 // pred_check_branch
        %928 = sbr.rel (%p926) target = $region48
      $region47: #{timm_universal_encoder_forward.7} parent=43 // pred_region
        %s929 = smul.u32 2, %s22
        %p930 = scmp.lt.s32.totalorder %s21, 1
        %s931 = scalar_select %p930, %s21, 1
        %p932 = scmp.lt.s32.totalorder %s929, 3
        %s933 = scalar_select %p932, %s929, 3
        %s934 = smul.addr %s931, 4
        %s935 = sadd.s32 %s933, %s934
        %s936 = smul.addr %s935, 2
        %s937 = scalar_lea.vmem %s4, %s936
      $region48: #{timm_universal_encoder_forward.7} parent=43 // pred_fallthru
        _
    $region44: #{timm_universal_encoder_forward.7} parent=5 // pred_fallthru
      _
  $region6: #{timm_universal_encoder_forward.7} parent=0 // loop_footer
    %s14 = sadd.s32 1, %s10
  $region7: #{timm_universal_encoder_forward.7} parent=0 // loop_footer_branch
    %9 = sbr.rel target = $region3
  $region8: #{timm_universal_encoder_forward.7} parent=0 // loop_exit
    _

// kernel: timm_universal_encoder_forward.8
$region0: #{timm_universal_encoder_forward.8}
  #allocation0 [shape = 'u32[]', space=smem, size = 0x4, offset = 0x4, fixed_abs, tag = 'smem constant byte address 0x4 - core index']
  #allocation1 [shape = 'u32[144,128]{1,0:T(1,128)}', space=vmem, size = 0x12000, scoped, tag = 'internal scratch']
  %s0 = inlined_call_operand.vmem [shape: bf16[2,3,2,3,64], index: 0, kind: input, shape index: {}, may-alias: {0,1}]
  %s1 = inlined_call_operand.vmem [shape: bf16[2,3,2,3,64], index: 1, kind: input, shape index: {}, may-alias: {0,1}]
  %s2 = inlined_call_operand.vmem [shape: bf16[6,64,64], index: 2, kind: input, shape index: {}]
  %s3 = inlined_call_operand.vmem [shape: f32[1,64], index: 3, kind: input, shape index: {}]
  %s4 = inlined_call_operand.vmem [shape: bf16[2,2,2,64], index: 4, kind: output, shape index: {}]
  %s5 = sld [smem:[#allocation0]]
  $region49: #{timm_universal_encoder_forward.8} parent=0
    _
  %s7 = ssub.s32 1, %s5
  %s8 = scalar_select 0, %s7, %s5
  loop: start=0, step=1, limit=6
  $region2: #{timm_universal_encoder_forward.8} parent=0 // loop_pre_header
    _
  $region3: #{timm_universal_encoder_forward.8} parent=0 // loop_header
    %s10 = sphi 0, %s14
    %p11 = scmp.ge.s32.totalorder %s10, 6
    %s17 = sphi 0, %s29
    %s18 = sphi 0, %s25
    %s19 = sphi 0, %s17
    %s20 = sphi 0, %s18
    %s21 = sphi 0, %s19
    %s22 = sphi 0, %s20
    %s34 = sphi 0, %s36
    %s37 = sphi 0, %s34
    %s38 = sphi 0, %s37
    %s54 = sphi 0, %s38
    %s64 = sphi 0, %s66
    %s67 = sphi 0, %s64
    %s68 = sphi 0, %s67
    %s84 = sphi 0, %s68
    %s88 = sphi 0, %s88
    %s90 = sphi 0, %s88
    %s91 = sphi 0, %s90
    %s105 = sphi 0, %s91
    %s109 = sphi 0, %s109
    %s111 = sphi 0, %s109
    %s112 = sphi 0, %s111
    %s126 = sphi 0, %s112
    %s134 = sphi 0, %s136
    %s137 = sphi 0, %s134
    %s138 = sphi 0, %s137
    %s154 = sphi 0, %s138
  $region4: #{timm_universal_encoder_forward.8} parent=0 // loop_header_branch
    %13 = sbr.rel (%p11) target = $region8
  $region5: #{timm_universal_encoder_forward.8} parent=0 // loop_body
    %s15 = ssub.s32 %s10, 1
    %s16 = ssub.s32 %s10, 2
    %s23 = sadd.s32 1, %s18
    %p24 = scmp.ge.s32.totalorder %s23, 2
    %s25 = scalar_select %p24, 0, %s23
    %s26 = sadd.s32 1, %s17
    %s27 = scalar_select %p24, %s26, %s17
    %p28 = scmp.ge.s32.totalorder %s27, 2
    %s29 = scalar_select %p28, 0, %s27
    %s30 = ssub.s32 %s17, %s29
    %s31 = ssub.s32 %s18, %s25
    %s32 = sor.u32 %s30, %s31
    %p33 = scmp.eq.s32.totalorder %s32, 0
    %s35 = sadd.s32 %s34, 1
    %s36 = scalar_select %p33, %s34, %s35
    %p39 = pneg %p33
    %p40 = scmp.eq.s32.totalorder %s10, 3
    %p41 = por %p39, %p40
    %p42 = scmp.ne.s32.totalorder %s34, %s37
    %p43 = scmp.eq.s32.totalorder %s10, 0
    %p44 = por %p42, %p43
    %p45 = scmp.ne.s32.totalorder %s34, %s37
    %p46 = scmp.eq.s32.totalorder %s15, 3
    %p47 = por %p45, %p46
    %p48 = scmp.ne.s32.totalorder %s37, %s38
    %p49 = scmp.eq.s32.totalorder %s15, 0
    %p50 = por %p48, %p49
    %p51 = scmp.ne.s32.totalorder %s37, %s38
    %p52 = scmp.eq.s32.totalorder %s16, 3
    %p53 = por %p51, %p52
    %p55 = scmp.ne.s32.totalorder %s38, %s54
    %p56 = scmp.eq.s32.totalorder %s16, 0
    %p57 = por %p55, %p56
    %s58 = sadd.s32 %s18, 1
    %s59 = sadd.s32 %s25, 1
    %s60 = ssub.s32 %s17, %s29
    %s61 = ssub.s32 %s58, %s59
    %s62 = sor.u32 %s60, %s61
    %p63 = scmp.eq.s32.totalorder %s62, 0
    %s65 = sadd.s32 %s64, 1
    %s66 = scalar_select %p63, %s64, %s65
    %p69 = pneg %p63
    %p70 = scmp.eq.s32.totalorder %s10, 3
    %p71 = por %p69, %p70
    %p72 = scmp.ne.s32.totalorder %s64, %s67
    %p73 = scmp.eq.s32.totalorder %s10, 0
    %p74 = por %p72, %p73
    %p75 = scmp.ne.s32.totalorder %s64, %s67
    %p76 = scmp.eq.s32.totalorder %s15, 3
    %p77 = por %p75, %p76
    %p78 = scmp.ne.s32.totalorder %s67, %s68
    %p79 = scmp.eq.s32.totalorder %s15, 0
    %p80 = por %p78, %p79
    %p81 = scmp.ne.s32.totalorder %s67, %s68
    %p82 = scmp.eq.s32.totalorder %s16, 3
    %p83 = por %p81, %p82
    %p85 = scmp.ne.s32.totalorder %s68, %s84
    %p86 = scmp.eq.s32.totalorder %s16, 0
    %p87 = por %p85, %p86
    %s89 = sadd.s32 %s88, 1
    %p92 = scmp.eq.s32.totalorder %s10, 3
    %p93 = scmp.ne.s32.totalorder %s88, %s90
    %p94 = scmp.eq.s32.totalorder %s10, 0
    %p95 = por %p93, %p94
    %p96 = scmp.ne.s32.totalorder %s88, %s90
    %p97 = scmp.eq.s32.totalorder %s15, 3
    %p98 = por %p96, %p97
    %p99 = scmp.ne.s32.totalorder %s90, %s91
    %p100 = scmp.eq.s32.totalorder %s15, 0
    %p101 = por %p99, %p100
    %p102 = scmp.ne.s32.totalorder %s90, %s91
    %p103 = scmp.eq.s32.totalorder %s16, 3
    %p104 = por %p102, %p103
    %p106 = scmp.ne.s32.totalorder %s91, %s105
    %p107 = scmp.eq.s32.totalorder %s16, 0
    %p108 = por %p106, %p107
    %s110 = sadd.s32 %s109, 1
    %p113 = scmp.eq.s32.totalorder %s10, 3
    %p114 = scmp.ne.s32.totalorder %s109, %s111
    %p115 = scmp.eq.s32.totalorder %s10, 0
    %p116 = por %p114, %p115
    %p117 = scmp.ne.s32.totalorder %s109, %s111
    %p118 = scmp.eq.s32.totalorder %s15, 3
    %p119 = por %p117, %p118
    %p120 = scmp.ne.s32.totalorder %s111, %s112
    %p121 = scmp.eq.s32.totalorder %s15, 0
    %p122 = por %p120, %p121
    %p123 = scmp.ne.s32.totalorder %s111, %s112
    %p124 = scmp.eq.s32.totalorder %s16, 3
    %p125 = por %p123, %p124
    %p127 = scmp.ne.s32.totalorder %s112, %s126
    %p128 = scmp.eq.s32.totalorder %s16, 0
    %p129 = por %p127, %p128
    %s130 = ssub.s32 %s17, %s29
    %s131 = ssub.s32 %s18, %s25
    %s132 = sor.u32 %s130, %s131
    %p133 = scmp.eq.s32.totalorder %s132, 0
    %s135 = sadd.s32 %s134, 1
    %s136 = scalar_select %p133, %s134, %s135
    %p139 = pneg %p133
    %p140 = scmp.eq.s32.totalorder %s10, 3
    %p141 = por %p139, %p140
    %p142 = scmp.ne.s32.totalorder %s134, %s137
    %p143 = scmp.eq.s32.totalorder %s10, 0
    %p144 = por %p142, %p143
    %p145 = scmp.ne.s32.totalorder %s134, %s137
    %p146 = scmp.eq.s32.totalorder %s15, 3
    %p147 = por %p145, %p146
    %p148 = scmp.ne.s32.totalorder %s137, %s138
    %p149 = scmp.eq.s32.totalorder %s15, 0
    %p150 = por %p148, %p149
    %p151 = scmp.ne.s32.totalorder %s137, %s138
    %p152 = scmp.eq.s32.totalorder %s16, 3
    %p153 = por %p151, %p152
    %p155 = scmp.ne.s32.totalorder %s138, %s154
    %p156 = scmp.eq.s32.totalorder %s16, 0
    %p157 = por %p155, %p156
    %p158 = scmp.le.s32.totalorder 1, %s10
    %p159 = scmp.lt.s32.totalorder %s10, 5
    %p160 = pnand %p158, %p159
    %p161 = pneg %p160
    // Predicated region
    $region9: #{timm_universal_encoder_forward.8} parent=5 // pred_check
      _
    $region10: #{timm_universal_encoder_forward.8} parent=5 // pred_check_branch
      %163 = sbr.rel (%p160) target = $region12
    $region11: #{timm_universal_encoder_forward.8} parent=5 // pred_region
      %s164 = ssub.s32 %s10, 1
      // Predicated region
      $region13: #{timm_universal_encoder_forward.8} parent=11 // pred_check
        %p165 = pneg %p101
      $region14: #{timm_universal_encoder_forward.8} parent=11 // pred_check_branch
        %167 = sbr.rel (%p165) target = $region16
      $region15: #{timm_universal_encoder_forward.8} parent=11 // pred_region
        _
      $region16: #{timm_universal_encoder_forward.8} parent=11 // pred_fallthru
        _
      // Predicated region
      $region17: #{timm_universal_encoder_forward.8} parent=11 // pred_check
        %p168 = pneg %p122
      $region18: #{timm_universal_encoder_forward.8} parent=11 // pred_check_branch
        %170 = sbr.rel (%p168) target = $region20
      $region19: #{timm_universal_encoder_forward.8} parent=11 // pred_region
        _
      $region20: #{timm_universal_encoder_forward.8} parent=11 // pred_fallthru
        _
    $region12: #{timm_universal_encoder_forward.8} parent=5 // pred_fallthru
      _
    %p171 = scmp.lt.s32.totalorder %s10, 4
    // Predicated region
    $region21: #{timm_universal_encoder_forward.8} parent=5 // pred_check
      %p172 = pneg %p171
    $region22: #{timm_universal_encoder_forward.8} parent=5 // pred_check_branch
      %174 = sbr.rel (%p172) target = $region24
    $region23: #{timm_universal_encoder_forward.8} parent=5 // pred_region
      // Predicated region
      $region25: #{timm_universal_encoder_forward.8} parent=23 // pred_check
        %p175 = pneg %p44
      $region26: #{timm_universal_encoder_forward.8} parent=23 // pred_check_branch
        %177 = sbr.rel (%p175) target = $region28
      $region27: #{timm_universal_encoder_forward.8} parent=23 // pred_region
        %p178 = scmp.lt.s32.totalorder %s17, 1
        %s179 = scalar_select %p178, %s17, 1
        %p180 = scmp.lt.s32.totalorder %s18, 2
        %s181 = scalar_select %p180, %s18, 2
        %s182 = smul.addr %s181, 2
        %s183 = smul.addr %s179, 6
        %s184 = sadd.s32 %s182, %s183
        %s185 = smul.addr %s184, 2
        %s186 = scalar_lea.vmem %s0, %s185
      $region28: #{timm_universal_encoder_forward.8} parent=23 // pred_fallthru
        _
      // Predicated region
      $region29: #{timm_universal_encoder_forward.8} parent=23 // pred_check
        %p187 = pneg %p74
      $region30: #{timm_universal_encoder_forward.8} parent=23 // pred_check_branch
        %189 = sbr.rel (%p187) target = $region32
      $region31: #{timm_universal_encoder_forward.8} parent=23 // pred_region
        %s190 = sadd.s32 %s18, 1
        %p191 = scmp.lt.s32.totalorder %s17, 1
        %s192 = scalar_select %p191, %s17, 1
        %p193 = scmp.lt.s32.totalorder %s190, 2
        %s194 = scalar_select %p193, %s190, 2
        %s195 = smul.addr %s194, 2
        %s196 = smul.addr %s192, 6
        %s197 = sadd.s32 %s195, %s196
        %s198 = smul.addr %s197, 2
        %s199 = scalar_lea.vmem %s1, %s198
        %s200 = sadd.s32 %s18, 1
      $region32: #{timm_universal_encoder_forward.8} parent=23 // pred_fallthru
        _
    $region24: #{timm_universal_encoder_forward.8} parent=5 // pred_fallthru
      _
    %p201 = scmp.le.s32.totalorder 1, %s10
    %p202 = scmp.lt.s32.totalorder %s10, 5
    %p203 = pnand %p201, %p202
    %p204 = pneg %p203
    // Predicated region
    $region33: #{timm_universal_encoder_forward.8} parent=5 // pred_check
      _
    $region34: #{timm_universal_encoder_forward.8} parent=5 // pred_check_branch
      %206 = sbr.rel (%p203) target = $region36
    $region35: #{timm_universal_encoder_forward.8} parent=5 // pred_region
      %s207 = ssub.s32 %s10, 1
      %p208 = scmp.lt.s32.totalorder %s19, 1
      %s209 = scalar_select %p208, %s19, 1
      %p210 = scmp.lt.s32.totalorder %s20, 2
      %s211 = scalar_select %p210, %s20, 2
      %s212 = smul.addr %s211, 2
      %s213 = smul.addr %s209, 6
      %s214 = sadd.s32 %s212, %s213
      %s215 = smul.addr %s214, 2
      %s216 = scalar_lea.vmem %s0, %s215
      %p217 = pneg %p50
      %p218 = pneg %p47
      %s219 = sadd.s32 %s20, 1
      %p220 = scmp.lt.s32.totalorder %s19, 1
      %s221 = scalar_select %p220, %s19, 1
      %p222 = scmp.lt.s32.totalorder %s219, 2
      %s223 = scalar_select %p222, %s219, 2
      %s224 = smul.addr %s223, 2
      %s225 = smul.addr %s221, 6
      %s226 = sadd.s32 %s224, %s225
      %s227 = smul.addr %s226, 2
      %s228 = scalar_lea.vmem %s1, %s227
      %p229 = pneg %p80
      %p230 = pneg %p77
      %p231 = pneg %p101
      %p232 = pneg %p98
      %p233 = pneg %p122
      %p234 = pneg %p119
      %p235 = pneg %p150
      %p236 = pneg %p147
      %p237 = scmp.lt.s32.totalorder %s19, 1
      %s238 = scalar_select %p237, %s19, 1
      %p239 = scmp.lt.s32.totalorder %s20, 1
      %s240 = scalar_select %p239, %s20, 1
      %s241 = smul.addr %s238, 2
      %s242 = sadd.s32 %s240, %s241
      %s243 = scalar_lea.vmem %s4, %s242
      %p244 = scmp.lt.s32.totalorder %s19, 1
      %s245 = scalar_select %p244, %s19, 1
      %p246 = scmp.lt.s32.totalorder %s20, 2
      %s247 = scalar_select %p246, %s20, 2
      %s248 = smul.addr %s247, 2
      %s249 = smul.addr %s245, 6
      %s250 = sadd.s32 %s248, %s249
      %s251 = smul.addr %s250, 2
      %s252 = scalar_lea.vmem %s0, %s251
      %s253 = sadd.s32 %s20, 1
      %p254 = scmp.lt.s32.totalorder %s19, 1
      %s255 = scalar_select %p254, %s19, 1
      %p256 = scmp.lt.s32.totalorder %s253, 2
      %s257 = scalar_select %p256, %s253, 2
      %s258 = smul.addr %s257, 2
      %s259 = smul.addr %s255, 6
      %s260 = sadd.s32 %s258, %s259
      %s261 = smul.addr %s260, 2
      %s262 = scalar_lea.vmem %s1, %s261
      %s263 = sadd.s32 %s20, 1
      %p264 = scmp.lt.s32.totalorder %s19, 1
      %s265 = scalar_select %p264, %s19, 1
      %p266 = scmp.lt.s32.totalorder %s20, 1
      %s267 = scalar_select %p266, %s20, 1
      %s268 = smul.addr %s265, 2
      %s269 = sadd.s32 %s267, %s268
      %s270 = scalar_lea.vmem %s4, %s269
      %v272 = vld [vmem:[%s252] sm:$0x1]
      %v273 = vld [vmem:[%s2] sm:$0xf]
      %v274 = vld [vmem:[%s2 + $0x4] sm:$0xf]
      %v275 = vld [vmem:[%s2 + $0x8] sm:$0xf]
      %v276 = vld [vmem:[%s2 + $0xc] sm:$0xf]
      %v277 = vld [vmem:[%s2 + $0x10] sm:$0xf]
      %v278 = vld [vmem:[%s2 + $0x14] sm:$0xf]
      %v279 = vld [vmem:[%s2 + $0x18] sm:$0xf]
      %v280 = vld [vmem:[%s2 + $0x1c] sm:$0xf]
      %v281 = vld [vmem:[%s252] sm:$0x3]
      %s282 = scalar_lea.vmem %s2, 32
      %v283 = vld [vmem:[%s282] sm:$0xf]
      %v284 = vld [vmem:[%s282 + $0x4] sm:$0xf]
      %v285 = vld [vmem:[%s282 + $0x8] sm:$0xf]
      %v286 = vld [vmem:[%s282 + $0xc] sm:$0xf]
      %v287 = vld [vmem:[%s282 + $0x10] sm:$0xf]
      %v288 = vld [vmem:[%s282 + $0x14] sm:$0xf]
      %v289 = vld [vmem:[%s282 + $0x18] sm:$0xf]
      %v290 = vld [vmem:[%s282 + $0x1c] sm:$0xf]
      %v293 = vunpack.c.l.s4 1983009808
      %v294 = vunpack.c.0.s8 %v293
      %v295 = vlaneseq
      %v296 = vshrl.u32 %v295, 7
      %v297 = vsub.s32 %v294, %v296
      %v298 = vrot.slane %v281, %v297
      %v300 = vshrl.u32 %v298, 16
      %v302 = vshll.u32 %v298, 16
      %v304 = vrot.slane %v302, 1
      %v305 = vor.u32 %v300, %v304
      %v314 = vunpack.c.l.b16 %v283
      %v315 = vunpack.c.l.b16 %v284
      %v316 = vunpack.c.l.b16 %v285
      %v317 = vunpack.c.l.b16 %v286
      %v318 = vunpack.c.l.b16 %v287
      %v319 = vunpack.c.l.b16 %v288
      %v320 = vunpack.c.l.b16 %v289
      %v321 = vunpack.c.l.b16 %v290
      %v322 = vpack.c.b16 %v315, %v314
      %v323 = vpack.c.b16 %v317, %v316
      %v324 = vpack.c.b16 %v319, %v318
      %v325 = vpack.c.b16 %v321, %v320
      %vm330 = vcmask 523264
      %v332 = vsel %vm330, %v305, 0
      %334 = vmatprep.subr.bf16.mxu0 0
      %335 = vmatpush1.bf16.msra.mxu0 0
      %336 = vmatprep.subr.bf16.mxu0 0
      %337 = vmatpush1.bf16.msra.mxu0 0
      %338 = vmatprep.subr.bf16.mxu0 0
      %339 = vmatpush1.bf16.msra.mxu0 0
      %340 = vmatprep.subr.bf16.mxu0 0
      %341 = vmatpush1.bf16.msra.mxu0 0
      %342 = vmatprep.subr.bf16.mxu0 0
      %343 = vmatpush1.bf16.msra.mxu0 %v325
      %344 = vmatprep.subr.bf16.mxu0 0
      %345 = vmatpush1.bf16.msra.mxu0 %v324
      %346 = vmatprep.subr.bf16.mxu0 0
      %347 = vmatpush1.bf16.msra.mxu0 %v323
      %348 = vmatprep.subr.bf16.mxu0 0
      %349 = vmatpush1.bf16.msra.mxu0 %v322
      %350 = vmatprep.subr.bf16.mxu0 0
      %351 = vmatpush2.bf16.msra.mxu0 0
      %352 = vmatprep.subr.bf16.mxu0 0
      %353 = vmatpush2.bf16.msra.mxu0 0
      %354 = vmatprep.subr.bf16.mxu0 0
      %355 = vmatpush2.bf16.msra.mxu0 0
      %356 = vmatprep.subr.bf16.mxu0 0
      %357 = vmatpush2.bf16.msra.mxu0 0
      %358 = vmatprep.subr.bf16.mxu0 0
      %359 = vmatpush2.bf16.msra.mxu0 0
      %360 = vmatprep.subr.bf16.mxu0 0
      %361 = vmatpush2.bf16.msra.mxu0 0
      %362 = vmatprep.subr.bf16.mxu0 0
      %363 = vmatpush2.bf16.msra.mxu0 0
      %364 = vmatprep.subr.bf16.mxu0 0
      %365 = vmatpush2.bf16.msra.mxu0 0
      %366 = vmatprep.mubr.bf16.mxu0 0
      %367 = vmatmul.mubr.bf16.gmra.mxu0 %v332
      %v368 = vpop.f32.mrf.mxu0
      %v369 = vadd.f32 0.0, %v368
      %v370 = vpop.f32.mrf.mxu0
      %v371 = vpop.f32.mrf.mxu0
      %v372 = vpop.f32.mrf.mxu0
      %373 = vdwg.mxu0
      %v382 = vunpack.c.l.b16 %v273
      %v383 = vunpack.c.l.b16 %v274
      %v384 = vunpack.c.l.b16 %v275
      %v385 = vunpack.c.l.b16 %v276
      %v386 = vunpack.c.l.b16 %v277
      %v387 = vunpack.c.l.b16 %v278
      %v388 = vunpack.c.l.b16 %v279
      %v389 = vunpack.c.l.b16 %v280
      %v390 = vpack.c.b16 %v383, %v382
      %v391 = vpack.c.b16 %v385, %v384
      %v392 = vpack.c.b16 %v387, %v386
      %v393 = vpack.c.b16 %v389, %v388
      %v399 = vsel %vm330, %v272, 0
      %401 = vmatprep.subr.bf16.mxu0 0
      %402 = vmatpush1.bf16.msra.mxu0 0
      %403 = vmatprep.subr.bf16.mxu0 0
      %404 = vmatpush1.bf16.msra.mxu0 0
      %405 = vmatprep.subr.bf16.mxu0 0
      %406 = vmatpush1.bf16.msra.mxu0 0
      %407 = vmatprep.subr.bf16.mxu0 0
      %408 = vmatpush1.bf16.msra.mxu0 0
      %409 = vmatprep.subr.bf16.mxu0 0
      %410 = vmatpush1.bf16.msra.mxu0 %v393
      %411 = vmatprep.subr.bf16.mxu0 0
      %412 = vmatpush1.bf16.msra.mxu0 %v392
      %413 = vmatprep.subr.bf16.mxu0 0
      %414 = vmatpush1.bf16.msra.mxu0 %v391
      %415 = vmatprep.subr.bf16.mxu0 0
      %416 = vmatpush1.bf16.msra.mxu0 %v390
      %417 = vmatprep.subr.bf16.mxu0 0
      %418 = vmatpush2.bf16.msra.mxu0 0
      %419 = vmatprep.subr.bf16.mxu0 0
      %420 = vmatpush2.bf16.msra.mxu0 0
      %421 = vmatprep.subr.bf16.mxu0 0
      %422 = vmatpush2.bf16.msra.mxu0 0
      %423 = vmatprep.subr.bf16.mxu0 0
      %424 = vmatpush2.bf16.msra.mxu0 0
      %425 = vmatprep.subr.bf16.mxu0 0
      %426 = vmatpush2.bf16.msra.mxu0 0
      %427 = vmatprep.subr.bf16.mxu0 0
      %428 = vmatpush2.bf16.msra.mxu0 0
      %429 = vmatprep.subr.bf16.mxu0 0
      %430 = vmatpush2.bf16.msra.mxu0 0
      %431 = vmatprep.subr.bf16.mxu0 0
      %432 = vmatpush2.bf16.msra.mxu0 0
      %433 = vmatprep.mubr.bf16.mxu0 0
      %434 = vmatmul.mubr.bf16.gmra.mxu0 %v399
      %v435 = vpop.f32.mrf.mxu0
      %v436 = vadd.f32 %v369, %v435
      %v437 = vpop.f32.mrf.mxu0
      %v438 = vpop.f32.mrf.mxu0
      %v439 = vpop.f32.mrf.mxu0
      %440 = vdwg.mxu0
      %s441 = scalar_lea.vmem %s252, 2
      %v442 = vld [vmem:[%s441] sm:$0x1]
      %s443 = scalar_lea.vmem %s2, 64
      %v444 = vld [vmem:[%s443] sm:$0xf]
      %v445 = vld [vmem:[%s443 + $0x4] sm:$0xf]
      %v446 = vld [vmem:[%s443 + $0x8] sm:$0xf]
      %v447 = vld [vmem:[%s443 + $0xc] sm:$0xf]
      %v448 = vld [vmem:[%s443 + $0x10] sm:$0xf]
      %v449 = vld [vmem:[%s443 + $0x14] sm:$0xf]
      %v450 = vld [vmem:[%s443 + $0x18] sm:$0xf]
      %v451 = vld [vmem:[%s443 + $0x1c] sm:$0xf]
      %v460 = vunpack.c.l.b16 %v444
      %v461 = vunpack.c.l.b16 %v445
      %v462 = vunpack.c.l.b16 %v446
      %v463 = vunpack.c.l.b16 %v447
      %v464 = vunpack.c.l.b16 %v448
      %v465 = vunpack.c.l.b16 %v449
      %v466 = vunpack.c.l.b16 %v450
      %v467 = vunpack.c.l.b16 %v451
      %v468 = vpack.c.b16 %v461, %v460
      %v469 = vpack.c.b16 %v463, %v462
      %v470 = vpack.c.b16 %v465, %v464
      %v471 = vpack.c.b16 %v467, %v466
      %v477 = vsel %vm330, %v442, 0
      %479 = vmatprep.subr.bf16.mxu0 0
      %480 = vmatpush1.bf16.msra.mxu0 0
      %481 = vmatprep.subr.bf16.mxu0 0
      %482 = vmatpush1.bf16.msra.mxu0 0
      %483 = vmatprep.subr.bf16.mxu0 0
      %484 = vmatpush1.bf16.msra.mxu0 0
      %485 = vmatprep.subr.bf16.mxu0 0
      %486 = vmatpush1.bf16.msra.mxu0 0
      %487 = vmatprep.subr.bf16.mxu0 0
      %488 = vmatpush1.bf16.msra.mxu0 %v471
      %489 = vmatprep.subr.bf16.mxu0 0
      %490 = vmatpush1.bf16.msra.mxu0 %v470
      %491 = vmatprep.subr.bf16.mxu0 0
      %492 = vmatpush1.bf16.msra.mxu0 %v469
      %493 = vmatprep.subr.bf16.mxu0 0
      %494 = vmatpush1.bf16.msra.mxu0 %v468
      %495 = vmatprep.subr.bf16.mxu0 0
      %496 = vmatpush2.bf16.msra.mxu0 0
      %497 = vmatprep.subr.bf16.mxu0 0
      %498 = vmatpush2.bf16.msra.mxu0 0
      %499 = vmatprep.subr.bf16.mxu0 0
      %500 = vmatpush2.bf16.msra.mxu0 0
      %501 = vmatprep.subr.bf16.mxu0 0
      %502 = vmatpush2.bf16.msra.mxu0 0
      %503 = vmatprep.subr.bf16.mxu0 0
      %504 = vmatpush2.bf16.msra.mxu0 0
      %505 = vmatprep.subr.bf16.mxu0 0
      %506 = vmatpush2.bf16.msra.mxu0 0
      %507 = vmatprep.subr.bf16.mxu0 0
      %508 = vmatpush2.bf16.msra.mxu0 0
      %509 = vmatprep.subr.bf16.mxu0 0
      %510 = vmatpush2.bf16.msra.mxu0 0
      %511 = vmatprep.mubr.bf16.mxu0 0
      %512 = vmatmul.mubr.bf16.gmra.mxu0 %v477
      %v513 = vpop.f32.mrf.mxu0
      %v514 = vadd.f32 0.0, %v513
      %v515 = vpop.f32.mrf.mxu0
      %v516 = vpop.f32.mrf.mxu0
      %v517 = vpop.f32.mrf.mxu0
      %518 = vdwg.mxu0
      %v519 = vadd.f32 %v436, %v514
      %v520 = vld [vmem:[%s441] sm:$0x3]
      %s521 = scalar_lea.vmem %s2, 96
      %v522 = vld [vmem:[%s521] sm:$0xf]
      %v523 = vld [vmem:[%s521 + $0x4] sm:$0xf]
      %v524 = vld [vmem:[%s521 + $0x8] sm:$0xf]
      %v525 = vld [vmem:[%s521 + $0xc] sm:$0xf]
      %v526 = vld [vmem:[%s521 + $0x10] sm:$0xf]
      %v527 = vld [vmem:[%s521 + $0x14] sm:$0xf]
      %v528 = vld [vmem:[%s521 + $0x18] sm:$0xf]
      %v529 = vld [vmem:[%s521 + $0x1c] sm:$0xf]
      %v532 = vunpack.c.l.s4 1983009808
      %v533 = vunpack.c.0.s8 %v532
      %v534 = vlaneseq
      %v535 = vshrl.u32 %v534, 7
      %v536 = vsub.s32 %v533, %v535
      %v537 = vrot.slane %v520, %v536
      %v539 = vshrl.u32 %v537, 16
      %v541 = vshll.u32 %v537, 16
      %v543 = vrot.slane %v541, 1
      %v544 = vor.u32 %v539, %v543
      %v553 = vunpack.c.l.b16 %v522
      %v554 = vunpack.c.l.b16 %v523
      %v555 = vunpack.c.l.b16 %v524
      %v556 = vunpack.c.l.b16 %v525
      %v557 = vunpack.c.l.b16 %v526
      %v558 = vunpack.c.l.b16 %v527
      %v559 = vunpack.c.l.b16 %v528
      %v560 = vunpack.c.l.b16 %v529
      %v561 = vpack.c.b16 %v554, %v553
      %v562 = vpack.c.b16 %v556, %v555
      %v563 = vpack.c.b16 %v558, %v557
      %v564 = vpack.c.b16 %v560, %v559
      %v570 = vsel %vm330, %v544, 0
      %572 = vmatprep.subr.bf16.mxu0 0
      %573 = vmatpush1.bf16.msra.mxu0 0
      %574 = vmatprep.subr.bf16.mxu0 0
      %575 = vmatpush1.bf16.msra.mxu0 0
      %576 = vmatprep.subr.bf16.mxu0 0
      %577 = vmatpush1.bf16.msra.mxu0 0
      %578 = vmatprep.subr.bf16.mxu0 0
      %579 = vmatpush1.bf16.msra.mxu0 0
      %580 = vmatprep.subr.bf16.mxu0 0
      %581 = vmatpush1.bf16.msra.mxu0 %v564
      %582 = vmatprep.subr.bf16.mxu0 0
      %583 = vmatpush1.bf16.msra.mxu0 %v563
      %584 = vmatprep.subr.bf16.mxu0 0
      %585 = vmatpush1.bf16.msra.mxu0 %v562
      %586 = vmatprep.subr.bf16.mxu0 0
      %587 = vmatpush1.bf16.msra.mxu0 %v561
      %588 = vmatprep.subr.bf16.mxu0 0
      %589 = vmatpush2.bf16.msra.mxu0 0
      %590 = vmatprep.subr.bf16.mxu0 0
      %591 = vmatpush2.bf16.msra.mxu0 0
      %592 = vmatprep.subr.bf16.mxu0 0
      %593 = vmatpush2.bf16.msra.mxu0 0
      %594 = vmatprep.subr.bf16.mxu0 0
      %595 = vmatpush2.bf16.msra.mxu0 0
      %596 = vmatprep.subr.bf16.mxu0 0
      %597 = vmatpush2.bf16.msra.mxu0 0
      %598 = vmatprep.subr.bf16.mxu0 0
      %599 = vmatpush2.bf16.msra.mxu0 0
      %600 = vmatprep.subr.bf16.mxu0 0
      %601 = vmatpush2.bf16.msra.mxu0 0
      %602 = vmatprep.subr.bf16.mxu0 0
      %603 = vmatpush2.bf16.msra.mxu0 0
      %604 = vmatprep.mubr.bf16.mxu0 0
      %605 = vmatmul.mubr.bf16.gmra.mxu0 %v570
      %v606 = vpop.f32.mrf.mxu0
      %v607 = vadd.f32 0.0, %v606
      %v608 = vpop.f32.mrf.mxu0
      %v609 = vpop.f32.mrf.mxu0
      %v610 = vpop.f32.mrf.mxu0
      %611 = vdwg.mxu0
      %v612 = vadd.f32 %v519, %v607
      %v613 = vld [vmem:[%s262] sm:$0x1]
      %s614 = scalar_lea.vmem %s2, 128
      %v615 = vld [vmem:[%s614] sm:$0xf]
      %v616 = vld [vmem:[%s614 + $0x4] sm:$0xf]
      %v617 = vld [vmem:[%s614 + $0x8] sm:$0xf]
      %v618 = vld [vmem:[%s614 + $0xc] sm:$0xf]
      %v619 = vld [vmem:[%s614 + $0x10] sm:$0xf]
      %v620 = vld [vmem:[%s614 + $0x14] sm:$0xf]
      %v621 = vld [vmem:[%s614 + $0x18] sm:$0xf]
      %v622 = vld [vmem:[%s614 + $0x1c] sm:$0xf]
      %v631 = vunpack.c.l.b16 %v615
      %v632 = vunpack.c.l.b16 %v616
      %v633 = vunpack.c.l.b16 %v617
      %v634 = vunpack.c.l.b16 %v618
      %v635 = vunpack.c.l.b16 %v619
      %v636 = vunpack.c.l.b16 %v620
      %v637 = vunpack.c.l.b16 %v621
      %v638 = vunpack.c.l.b16 %v622
      %v639 = vpack.c.b16 %v632, %v631
      %v640 = vpack.c.b16 %v634, %v633
      %v641 = vpack.c.b16 %v636, %v635
      %v642 = vpack.c.b16 %v638, %v637
      %v648 = vsel %vm330, %v613, 0
      %650 = vmatprep.subr.bf16.mxu0 0
      %651 = vmatpush1.bf16.msra.mxu0 0
      %652 = vmatprep.subr.bf16.mxu0 0
      %653 = vmatpush1.bf16.msra.mxu0 0
      %654 = vmatprep.subr.bf16.mxu0 0
      %655 = vmatpush1.bf16.msra.mxu0 0
      %656 = vmatprep.subr.bf16.mxu0 0
      %657 = vmatpush1.bf16.msra.mxu0 0
      %658 = vmatprep.subr.bf16.mxu0 0
      %659 = vmatpush1.bf16.msra.mxu0 %v642
      %660 = vmatprep.subr.bf16.mxu0 0
      %661 = vmatpush1.bf16.msra.mxu0 %v641
      %662 = vmatprep.subr.bf16.mxu0 0
      %663 = vmatpush1.bf16.msra.mxu0 %v640
      %664 = vmatprep.subr.bf16.mxu0 0
      %665 = vmatpush1.bf16.msra.mxu0 %v639
      %666 = vmatprep.subr.bf16.mxu0 0
      %667 = vmatpush2.bf16.msra.mxu0 0
      %668 = vmatprep.subr.bf16.mxu0 0
      %669 = vmatpush2.bf16.msra.mxu0 0
      %670 = vmatprep.subr.bf16.mxu0 0
      %671 = vmatpush2.bf16.msra.mxu0 0
      %672 = vmatprep.subr.bf16.mxu0 0
      %673 = vmatpush2.bf16.msra.mxu0 0
      %674 = vmatprep.subr.bf16.mxu0 0
      %675 = vmatpush2.bf16.msra.mxu0 0
      %676 = vmatprep.subr.bf16.mxu0 0
      %677 = vmatpush2.bf16.msra.mxu0 0
      %678 = vmatprep.subr.bf16.mxu0 0
      %679 = vmatpush2.bf16.msra.mxu0 0
      %680 = vmatprep.subr.bf16.mxu0 0
      %681 = vmatpush2.bf16.msra.mxu0 0
      %682 = vmatprep.mubr.bf16.mxu0 0
      %683 = vmatmul.mubr.bf16.gmra.mxu0 %v648
      %v684 = vpop.f32.mrf.mxu0
      %v685 = vadd.f32 0.0, %v684
      %v686 = vpop.f32.mrf.mxu0
      %v687 = vpop.f32.mrf.mxu0
      %v688 = vpop.f32.mrf.mxu0
      %689 = vdwg.mxu0
      %v690 = vadd.f32 %v612, %v685
      %v691 = vld [vmem:[%s262] sm:$0x3]
      %s692 = scalar_lea.vmem %s2, 160
      %v693 = vld [vmem:[%s692] sm:$0xf]
      %v694 = vld [vmem:[%s692 + $0x4] sm:$0xf]
      %v695 = vld [vmem:[%s692 + $0x8] sm:$0xf]
      %v696 = vld [vmem:[%s692 + $0xc] sm:$0xf]
      %v697 = vld [vmem:[%s692 + $0x10] sm:$0xf]
      %v698 = vld [vmem:[%s692 + $0x14] sm:$0xf]
      %v699 = vld [vmem:[%s692 + $0x18] sm:$0xf]
      %v700 = vld [vmem:[%s692 + $0x1c] sm:$0xf]
      %v703 = vunpack.c.l.s4 1983009808
      %v704 = vunpack.c.0.s8 %v703
      %v705 = vlaneseq
      %v706 = vshrl.u32 %v705, 7
      %v707 = vsub.s32 %v704, %v706
      %v708 = vrot.slane %v691, %v707
      %v710 = vshrl.u32 %v708, 16
      %v712 = vshll.u32 %v708, 16
      %v714 = vrot.slane %v712, 1
      %v715 = vor.u32 %v710, %v714
      %v724 = vunpack.c.l.b16 %v693
      %v725 = vunpack.c.l.b16 %v694
      %v726 = vunpack.c.l.b16 %v695
      %v727 = vunpack.c.l.b16 %v696
      %v728 = vunpack.c.l.b16 %v697
      %v729 = vunpack.c.l.b16 %v698
      %v730 = vunpack.c.l.b16 %v699
      %v731 = vunpack.c.l.b16 %v700
      %v732 = vpack.c.b16 %v725, %v724
      %v733 = vpack.c.b16 %v727, %v726
      %v734 = vpack.c.b16 %v729, %v728
      %v735 = vpack.c.b16 %v731, %v730
      %v741 = vsel %vm330, %v715, 0
      %743 = vmatprep.subr.bf16.mxu0 0
      %744 = vmatpush1.bf16.msra.mxu0 0
      %745 = vmatprep.subr.bf16.mxu0 0
      %746 = vmatpush1.bf16.msra.mxu0 0
      %747 = vmatprep.subr.bf16.mxu0 0
      %748 = vmatpush1.bf16.msra.mxu0 0
      %749 = vmatprep.subr.bf16.mxu0 0
      %750 = vmatpush1.bf16.msra.mxu0 0
      %751 = vmatprep.subr.bf16.mxu0 0
      %752 = vmatpush1.bf16.msra.mxu0 %v735
      %753 = vmatprep.subr.bf16.mxu0 0
      %754 = vmatpush1.bf16.msra.mxu0 %v734
      %755 = vmatprep.subr.bf16.mxu0 0
      %756 = vmatpush1.bf16.msra.mxu0 %v733
      %757 = vmatprep.subr.bf16.mxu0 0
      %758 = vmatpush1.bf16.msra.mxu0 %v732
      %759 = vmatprep.subr.bf16.mxu0 0
      %760 = vmatpush2.bf16.msra.mxu0 0
      %761 = vmatprep.subr.bf16.mxu0 0
      %762 = vmatpush2.bf16.msra.mxu0 0
      %763 = vmatprep.subr.bf16.mxu0 0
      %764 = vmatpush2.bf16.msra.mxu0 0
      %765 = vmatprep.subr.bf16.mxu0 0
      %766 = vmatpush2.bf16.msra.mxu0 0
      %767 = vmatprep.subr.bf16.mxu0 0
      %768 = vmatpush2.bf16.msra.mxu0 0
      %769 = vmatprep.subr.bf16.mxu0 0
      %770 = vmatpush2.bf16.msra.mxu0 0
      %771 = vmatprep.subr.bf16.mxu0 0
      %772 = vmatpush2.bf16.msra.mxu0 0
      %773 = vmatprep.subr.bf16.mxu0 0
      %774 = vmatpush2.bf16.msra.mxu0 0
      %775 = vmatprep.mubr.bf16.mxu0 0
      %776 = vmatmul.mubr.bf16.gmra.mxu0 %v741
      %v777 = vpop.f32.mrf.mxu0
      %v778 = vadd.f32 0.0, %v777
      %v779 = vpop.f32.mrf.mxu0
      %v780 = vpop.f32.mrf.mxu0
      %v781 = vpop.f32.mrf.mxu0
      %782 = vdwg.mxu0
      %v783 = vadd.f32 %v690, %v778
      %v784 = vld [vmem:[%s3] sm:$0x1]
      %v786 = vlaneseq
      %v787 = vshrl.u32 %v786, 7
      %v788 = vsub.s32 0, %v787
      %v789 = vrot.slane %v784, %v788
      %v791 = vadd.f32 %v783, %v789
      %v792 = vmax.f32 %v791, 0.0
      %v793 = vpack.c.bf16 %v792, %v792
      %vm794 = vcmask 516096
      %795 = vst.msk [vmem:[%s270] sm:$0x1] %vm794, %v793
      %p796 = scmp.lt.s32.totalorder %s19, 1
      %s797 = scalar_select %p796, %s19, 1
      %p798 = scmp.lt.s32.totalorder %s20, 1
      %s799 = scalar_select %p798, %s20, 1
      %s800 = smul.addr %s797, 2
      %s801 = sadd.s32 %s799, %s800
      %s802 = scalar_lea.vmem %s4, %s801
      // Predicated region
      $region37: #{timm_universal_encoder_forward.8} parent=35 // pred_check
        %p803 = pneg %p147
      $region38: #{timm_universal_encoder_forward.8} parent=35 // pred_check_branch
        %805 = sbr.rel (%p803) target = $region40
      $region39: #{timm_universal_encoder_forward.8} parent=35 // pred_region
        _
      $region40: #{timm_universal_encoder_forward.8} parent=35 // pred_fallthru
        _
    $region36: #{timm_universal_encoder_forward.8} parent=5 // pred_fallthru
      _
    %p806 = scmp.le.s32.totalorder 2, %s10
    // Predicated region
    $region41: #{timm_universal_encoder_forward.8} parent=5 // pred_check
      %p807 = pneg %p806
    $region42: #{timm_universal_encoder_forward.8} parent=5 // pred_check_branch
      %809 = sbr.rel (%p807) target = $region44
    $region43: #{timm_universal_encoder_forward.8} parent=5 // pred_region
      %s810 = ssub.s32 %s10, 2
      // Predicated region
      $region45: #{timm_universal_encoder_forward.8} parent=43 // pred_check
        %p811 = pneg %p153
      $region46: #{timm_universal_encoder_forward.8} parent=43 // pred_check_branch
        %813 = sbr.rel (%p811) target = $region48
      $region47: #{timm_universal_encoder_forward.8} parent=43 // pred_region
        %p814 = scmp.lt.s32.totalorder %s21, 1
        %s815 = scalar_select %p814, %s21, 1
        %p816 = scmp.lt.s32.totalorder %s22, 1
        %s817 = scalar_select %p816, %s22, 1
        %s818 = smul.addr %s815, 2
        %s819 = sadd.s32 %s817, %s818
        %s820 = scalar_lea.vmem %s4, %s819
      $region48: #{timm_universal_encoder_forward.8} parent=43 // pred_fallthru
        _
    $region44: #{timm_universal_encoder_forward.8} parent=5 // pred_fallthru
      _
  $region6: #{timm_universal_encoder_forward.8} parent=0 // loop_footer
    %s14 = sadd.s32 1, %s10
  $region7: #{timm_universal_encoder_forward.8} parent=0 // loop_footer_branch
    %9 = sbr.rel target = $region3
  $region8: #{timm_universal_encoder_forward.8} parent=0 // loop_exit
    _

// kernel: timm_universal_encoder_forward.9
$region0: #{timm_universal_encoder_forward.9}
  #allocation0 [shape = 'u32[]', space=smem, size = 0x4, offset = 0x4, fixed_abs, tag = 'smem constant byte address 0x4 - core index']
  #allocation1 [shape = 'u32[144,128]{1,0:T(1,128)}', space=vmem, size = 0x12000, scoped, tag = 'internal scratch']
  %s0 = inlined_call_operand.vmem [shape: bf16[2,2,2,2,128], index: 0, kind: input, shape index: {}, may-alias: {0,1}]
  %s1 = inlined_call_operand.vmem [shape: bf16[2,2,2,2,128], index: 1, kind: input, shape index: {}, may-alias: {0,1}]
  %s2 = inlined_call_operand.vmem [shape: bf16[6,128,64], index: 2, kind: input, shape index: {}]
  %s3 = inlined_call_operand.vmem [shape: f32[1,64], index: 3, kind: input, shape index: {}]
  %s4 = inlined_call_operand.vmem [shape: bf16[2,1,1,64], index: 4, kind: output, shape index: {}]
  %s5 = sld [smem:[#allocation0]]
  $region49: #{timm_universal_encoder_forward.9} parent=0
    _
  %s7 = ssub.s32 1, %s5
  %s8 = scalar_select 0, %s7, %s5
  loop: start=0, step=1, limit=4
  $region2: #{timm_universal_encoder_forward.9} parent=0 // loop_pre_header
    _
  $region3: #{timm_universal_encoder_forward.9} parent=0 // loop_header
    %s10 = sphi 0, %s14
    %p11 = scmp.ge.s32.totalorder %s10, 4
    %s17 = sphi 0, %s29
    %s18 = sphi 0, %s25
    %s19 = sphi 0, %s17
    %s20 = sphi 0, %s18
    %s21 = sphi 0, %s19
    %s22 = sphi 0, %s20
    %s34 = sphi 0, %s36
    %s37 = sphi 0, %s34
    %s38 = sphi 0, %s37
    %s54 = sphi 0, %s38
    %s64 = sphi 0, %s66
    %s67 = sphi 0, %s64
    %s68 = sphi 0, %s67
    %s84 = sphi 0, %s68
    %s88 = sphi 0, %s88
    %s90 = sphi 0, %s88
    %s91 = sphi 0, %s90
    %s105 = sphi 0, %s91
    %s109 = sphi 0, %s109
    %s111 = sphi 0, %s109
    %s112 = sphi 0, %s111
    %s126 = sphi 0, %s112
    %s134 = sphi 0, %s136
    %s137 = sphi 0, %s134
    %s138 = sphi 0, %s137
    %s154 = sphi 0, %s138
  $region4: #{timm_universal_encoder_forward.9} parent=0 // loop_header_branch
    %13 = sbr.rel (%p11) target = $region8
  $region5: #{timm_universal_encoder_forward.9} parent=0 // loop_body
    %s15 = ssub.s32 %s10, 1
    %s16 = ssub.s32 %s10, 2
    %s23 = sadd.s32 1, %s18
    %p24 = scmp.ge.s32.totalorder %s23, 1
    %s25 = scalar_select %p24, 0, %s23
    %s26 = sadd.s32 1, %s17
    %s27 = scalar_select %p24, %s26, %s17
    %p28 = scmp.ge.s32.totalorder %s27, 2
    %s29 = scalar_select %p28, 0, %s27
    %s30 = ssub.s32 %s17, %s29
    %s31 = ssub.s32 %s18, %s25
    %s32 = sor.u32 %s30, %s31
    %p33 = scmp.eq.s32.totalorder %s32, 0
    %s35 = sadd.s32 %s34, 1
    %s36 = scalar_select %p33, %s34, %s35
    %p39 = pneg %p33
    %p40 = scmp.eq.s32.totalorder %s10, 1
    %p41 = por %p39, %p40
    %p42 = scmp.ne.s32.totalorder %s34, %s37
    %p43 = scmp.eq.s32.totalorder %s10, 0
    %p44 = por %p42, %p43
    %p45 = scmp.ne.s32.totalorder %s34, %s37
    %p46 = scmp.eq.s32.totalorder %s15, 1
    %p47 = por %p45, %p46
    %p48 = scmp.ne.s32.totalorder %s37, %s38
    %p49 = scmp.eq.s32.totalorder %s15, 0
    %p50 = por %p48, %p49
    %p51 = scmp.ne.s32.totalorder %s37, %s38
    %p52 = scmp.eq.s32.totalorder %s16, 1
    %p53 = por %p51, %p52
    %p55 = scmp.ne.s32.totalorder %s38, %s54
    %p56 = scmp.eq.s32.totalorder %s16, 0
    %p57 = por %p55, %p56
    %s58 = sadd.s32 %s18, 1
    %s59 = sadd.s32 %s25, 1
    %s60 = ssub.s32 %s17, %s29
    %s61 = ssub.s32 %s58, %s59
    %s62 = sor.u32 %s60, %s61
    %p63 = scmp.eq.s32.totalorder %s62, 0
    %s65 = sadd.s32 %s64, 1
    %s66 = scalar_select %p63, %s64, %s65
    %p69 = pneg %p63
    %p70 = scmp.eq.s32.totalorder %s10, 1
    %p71 = por %p69, %p70
    %p72 = scmp.ne.s32.totalorder %s64, %s67
    %p73 = scmp.eq.s32.totalorder %s10, 0
    %p74 = por %p72, %p73
    %p75 = scmp.ne.s32.totalorder %s64, %s67
    %p76 = scmp.eq.s32.totalorder %s15, 1
    %p77 = por %p75, %p76
    %p78 = scmp.ne.s32.totalorder %s67, %s68
    %p79 = scmp.eq.s32.totalorder %s15, 0
    %p80 = por %p78, %p79
    %p81 = scmp.ne.s32.totalorder %s67, %s68
    %p82 = scmp.eq.s32.totalorder %s16, 1
    %p83 = por %p81, %p82
    %p85 = scmp.ne.s32.totalorder %s68, %s84
    %p86 = scmp.eq.s32.totalorder %s16, 0
    %p87 = por %p85, %p86
    %s89 = sadd.s32 %s88, 1
    %p92 = scmp.eq.s32.totalorder %s10, 1
    %p93 = scmp.ne.s32.totalorder %s88, %s90
    %p94 = scmp.eq.s32.totalorder %s10, 0
    %p95 = por %p93, %p94
    %p96 = scmp.ne.s32.totalorder %s88, %s90
    %p97 = scmp.eq.s32.totalorder %s15, 1
    %p98 = por %p96, %p97
    %p99 = scmp.ne.s32.totalorder %s90, %s91
    %p100 = scmp.eq.s32.totalorder %s15, 0
    %p101 = por %p99, %p100
    %p102 = scmp.ne.s32.totalorder %s90, %s91
    %p103 = scmp.eq.s32.totalorder %s16, 1
    %p104 = por %p102, %p103
    %p106 = scmp.ne.s32.totalorder %s91, %s105
    %p107 = scmp.eq.s32.totalorder %s16, 0
    %p108 = por %p106, %p107
    %s110 = sadd.s32 %s109, 1
    %p113 = scmp.eq.s32.totalorder %s10, 1
    %p114 = scmp.ne.s32.totalorder %s109, %s111
    %p115 = scmp.eq.s32.totalorder %s10, 0
    %p116 = por %p114, %p115
    %p117 = scmp.ne.s32.totalorder %s109, %s111
    %p118 = scmp.eq.s32.totalorder %s15, 1
    %p119 = por %p117, %p118
    %p120 = scmp.ne.s32.totalorder %s111, %s112
    %p121 = scmp.eq.s32.totalorder %s15, 0
    %p122 = por %p120, %p121
    %p123 = scmp.ne.s32.totalorder %s111, %s112
    %p124 = scmp.eq.s32.totalorder %s16, 1
    %p125 = por %p123, %p124
    %p127 = scmp.ne.s32.totalorder %s112, %s126
    %p128 = scmp.eq.s32.totalorder %s16, 0
    %p129 = por %p127, %p128
    %s130 = ssub.s32 %s17, %s29
    %s131 = ssub.s32 %s18, %s25
    %s132 = sor.u32 %s130, %s131
    %p133 = scmp.eq.s32.totalorder %s132, 0
    %s135 = sadd.s32 %s134, 1
    %s136 = scalar_select %p133, %s134, %s135
    %p139 = pneg %p133
    %p140 = scmp.eq.s32.totalorder %s10, 1
    %p141 = por %p139, %p140
    %p142 = scmp.ne.s32.totalorder %s134, %s137
    %p143 = scmp.eq.s32.totalorder %s10, 0
    %p144 = por %p142, %p143
    %p145 = scmp.ne.s32.totalorder %s134, %s137
    %p146 = scmp.eq.s32.totalorder %s15, 1
    %p147 = por %p145, %p146
    %p148 = scmp.ne.s32.totalorder %s137, %s138
    %p149 = scmp.eq.s32.totalorder %s15, 0
    %p150 = por %p148, %p149
    %p151 = scmp.ne.s32.totalorder %s137, %s138
    %p152 = scmp.eq.s32.totalorder %s16, 1
    %p153 = por %p151, %p152
    %p155 = scmp.ne.s32.totalorder %s138, %s154
    %p156 = scmp.eq.s32.totalorder %s16, 0
    %p157 = por %p155, %p156
    %p158 = scmp.le.s32.totalorder 1, %s10
    %p159 = scmp.lt.s32.totalorder %s10, 3
    %p160 = pnand %p158, %p159
    %p161 = pneg %p160
    // Predicated region
    $region9: #{timm_universal_encoder_forward.9} parent=5 // pred_check
      _
    $region10: #{timm_universal_encoder_forward.9} parent=5 // pred_check_branch
      %163 = sbr.rel (%p160) target = $region12
    $region11: #{timm_universal_encoder_forward.9} parent=5 // pred_region
      %s164 = ssub.s32 %s10, 1
      // Predicated region
      $region13: #{timm_universal_encoder_forward.9} parent=11 // pred_check
        %p165 = pneg %p101
      $region14: #{timm_universal_encoder_forward.9} parent=11 // pred_check_branch
        %167 = sbr.rel (%p165) target = $region16
      $region15: #{timm_universal_encoder_forward.9} parent=11 // pred_region
        _
      $region16: #{timm_universal_encoder_forward.9} parent=11 // pred_fallthru
        _
      // Predicated region
      $region17: #{timm_universal_encoder_forward.9} parent=11 // pred_check
        %p168 = pneg %p122
      $region18: #{timm_universal_encoder_forward.9} parent=11 // pred_check_branch
        %170 = sbr.rel (%p168) target = $region20
      $region19: #{timm_universal_encoder_forward.9} parent=11 // pred_region
        _
      $region20: #{timm_universal_encoder_forward.9} parent=11 // pred_fallthru
        _
    $region12: #{timm_universal_encoder_forward.9} parent=5 // pred_fallthru
      _
    %p171 = scmp.lt.s32.totalorder %s10, 2
    // Predicated region
    $region21: #{timm_universal_encoder_forward.9} parent=5 // pred_check
      %p172 = pneg %p171
    $region22: #{timm_universal_encoder_forward.9} parent=5 // pred_check_branch
      %174 = sbr.rel (%p172) target = $region24
    $region23: #{timm_universal_encoder_forward.9} parent=5 // pred_region
      // Predicated region
      $region25: #{timm_universal_encoder_forward.9} parent=23 // pred_check
        %p175 = pneg %p44
      $region26: #{timm_universal_encoder_forward.9} parent=23 // pred_check_branch
        %177 = sbr.rel (%p175) target = $region28
      $region27: #{timm_universal_encoder_forward.9} parent=23 // pred_region
        %p178 = scmp.lt.s32.totalorder %s17, 1
        %s179 = scalar_select %p178, %s17, 1
        %p180 = scmp.lt.s32.totalorder %s18, 1
        %s181 = scalar_select %p180, %s18, 1
        %s182 = smul.addr %s181, 2
        %s183 = smul.addr %s179, 4
        %s184 = sadd.s32 %s182, %s183
        %s185 = scalar_lea.vmem %s0, %s184
      $region28: #{timm_universal_encoder_forward.9} parent=23 // pred_fallthru
        _
      // Predicated region
      $region29: #{timm_universal_encoder_forward.9} parent=23 // pred_check
        %p186 = pneg %p74
      $region30: #{timm_universal_encoder_forward.9} parent=23 // pred_check_branch
        %188 = sbr.rel (%p186) target = $region32
      $region31: #{timm_universal_encoder_forward.9} parent=23 // pred_region
        %s189 = sadd.s32 %s18, 1
        %p190 = scmp.lt.s32.totalorder %s17, 1
        %s191 = scalar_select %p190, %s17, 1
        %p192 = scmp.lt.s32.totalorder %s189, 1
        %s193 = scalar_select %p192, %s189, 1
        %s194 = smul.addr %s193, 2
        %s195 = smul.addr %s191, 4
        %s196 = sadd.s32 %s194, %s195
        %s197 = scalar_lea.vmem %s1, %s196
        %s198 = sadd.s32 %s18, 1
      $region32: #{timm_universal_encoder_forward.9} parent=23 // pred_fallthru
        _
    $region24: #{timm_universal_encoder_forward.9} parent=5 // pred_fallthru
      _
    %p199 = scmp.le.s32.totalorder 1, %s10
    %p200 = scmp.lt.s32.totalorder %s10, 3
    %p201 = pnand %p199, %p200
    %p202 = pneg %p201
    // Predicated region
    $region33: #{timm_universal_encoder_forward.9} parent=5 // pred_check
      _
    $region34: #{timm_universal_encoder_forward.9} parent=5 // pred_check_branch
      %204 = sbr.rel (%p201) target = $region36
    $region35: #{timm_universal_encoder_forward.9} parent=5 // pred_region
      %s205 = ssub.s32 %s10, 1
      %p206 = scmp.lt.s32.totalorder %s19, 1
      %s207 = scalar_select %p206, %s19, 1
      %p208 = scmp.lt.s32.totalorder %s20, 1
      %s209 = scalar_select %p208, %s20, 1
      %s210 = smul.addr %s209, 2
      %s211 = smul.addr %s207, 4
      %s212 = sadd.s32 %s210, %s211
      %s213 = scalar_lea.vmem %s0, %s212
      %p214 = pneg %p50
      %p215 = pneg %p47
      %s216 = sadd.s32 %s20, 1
      %p217 = scmp.lt.s32.totalorder %s19, 1
      %s218 = scalar_select %p217, %s19, 1
      %p219 = scmp.lt.s32.totalorder %s216, 1
      %s220 = scalar_select %p219, %s216, 1
      %s221 = smul.addr %s220, 2
      %s222 = smul.addr %s218, 4
      %s223 = sadd.s32 %s221, %s222
      %s224 = scalar_lea.vmem %s1, %s223
      %p225 = pneg %p80
      %p226 = pneg %p77
      %p227 = pneg %p101
      %p228 = pneg %p98
      %p229 = pneg %p122
      %p230 = pneg %p119
      %p231 = pneg %p150
      %p232 = pneg %p147
      %p233 = scmp.lt.s32.totalorder %s19, 1
      %s234 = scalar_select %p233, %s19, 1
      %p235 = scmp.lt.s32.totalorder %s20, 0
      %s236 = scalar_select %p235, %s20, 0
      %s237 = sadd.s32 %s236, %s234
      %s238 = scalar_lea.vmem %s4, %s237
      %p239 = scmp.lt.s32.totalorder %s19, 1
      %s240 = scalar_select %p239, %s19, 1
      %p241 = scmp.lt.s32.totalorder %s20, 1
      %s242 = scalar_select %p241, %s20, 1
      %s243 = smul.addr %s242, 2
      %s244 = smul.addr %s240, 4
      %s245 = sadd.s32 %s243, %s244
      %s246 = scalar_lea.vmem %s0, %s245
      %s247 = sadd.s32 %s20, 1
      %p248 = scmp.lt.s32.totalorder %s19, 1
      %s249 = scalar_select %p248, %s19, 1
      %p250 = scmp.lt.s32.totalorder %s247, 1
      %s251 = scalar_select %p250, %s247, 1
      %s252 = smul.addr %s251, 2
      %s253 = smul.addr %s249, 4
      %s254 = sadd.s32 %s252, %s253
      %s255 = scalar_lea.vmem %s1, %s254
      %s256 = sadd.s32 %s20, 1
      %p257 = scmp.lt.s32.totalorder %s19, 1
      %s258 = scalar_select %p257, %s19, 1
      %p259 = scmp.lt.s32.totalorder %s20, 0
      %s260 = scalar_select %p259, %s20, 0
      %s261 = sadd.s32 %s260, %s258
      %s262 = scalar_lea.vmem %s4, %s261
      %v264 = vld [vmem:[%s246] sm:$0x1]
      %v265 = vld [vmem:[%s2] sm:$0xf]
      %v266 = vld [vmem:[%s2 + $0x4] sm:$0xf]
      %v267 = vld [vmem:[%s2 + $0x8] sm:$0xf]
      %v268 = vld [vmem:[%s2 + $0xc] sm:$0xf]
      %v269 = vld [vmem:[%s2 + $0x10] sm:$0xf]
      %v270 = vld [vmem:[%s2 + $0x14] sm:$0xf]
      %v271 = vld [vmem:[%s2 + $0x18] sm:$0xf]
      %v272 = vld [vmem:[%s2 + $0x1c] sm:$0xf]
      %v273 = vld [vmem:[%s2 + $0x20] sm:$0xf]
      %v274 = vld [vmem:[%s2 + $0x24] sm:$0xf]
      %v275 = vld [vmem:[%s2 + $0x28] sm:$0xf]
      %v276 = vld [vmem:[%s2 + $0x2c] sm:$0xf]
      %v277 = vld [vmem:[%s2 + $0x30] sm:$0xf]
      %v278 = vld [vmem:[%s2 + $0x34] sm:$0xf]
      %v279 = vld [vmem:[%s2 + $0x38] sm:$0xf]
      %v280 = vld [vmem:[%s2 + $0x3c] sm:$0xf]
      %s281 = scalar_lea.vmem %s2, 64
      %v282 = vld [vmem:[%s281] sm:$0xf]
      %v283 = vld [vmem:[%s281 + $0x4] sm:$0xf]
      %v284 = vld [vmem:[%s281 + $0x8] sm:$0xf]
      %v285 = vld [vmem:[%s281 + $0xc] sm:$0xf]
      %v286 = vld [vmem:[%s281 + $0x10] sm:$0xf]
      %v287 = vld [vmem:[%s281 + $0x14] sm:$0xf]
      %v288 = vld [vmem:[%s281 + $0x18] sm:$0xf]
      %v289 = vld [vmem:[%s281 + $0x1c] sm:$0xf]
      %v290 = vld [vmem:[%s281 + $0x20] sm:$0xf]
      %v291 = vld [vmem:[%s281 + $0x24] sm:$0xf]
      %v292 = vld [vmem:[%s281 + $0x28] sm:$0xf]
      %v293 = vld [vmem:[%s281 + $0x2c] sm:$0xf]
      %v294 = vld [vmem:[%s281 + $0x30] sm:$0xf]
      %v295 = vld [vmem:[%s281 + $0x34] sm:$0xf]
      %v296 = vld [vmem:[%s281 + $0x38] sm:$0xf]
      %v297 = vld [vmem:[%s281 + $0x3c] sm:$0xf]
      %v300 = vunpack.c.l.s4 1966171168
      %v301 = vunpack.c.0.s8 %v300
      %v302 = vlaneseq
      %v303 = vshrl.u32 %v302, 7
      %v304 = vsub.s32 %v301, %v303
      %v305 = vrot.slane %v264, %v304
      %v307 = vunpack.c.l.s4 1966171168
      %v308 = vunpack.c.0.s8 %v307
      %v309 = vlaneseq
      %v310 = vshrl.u32 %v309, 7
      %v311 = vsub.s32 %v308, %v310
      %v312 = vrot.slane %v305, %v311
      %v314 = vshrl.u32 %v312, 16
      %v333 = vunpack.c.l.b16 %v282
      %v334 = vunpack.c.l.b16 %v283
      %v335 = vunpack.c.l.b16 %v284
      %v336 = vunpack.c.l.b16 %v285
      %v337 = vunpack.c.l.b16 %v286
      %v338 = vunpack.c.l.b16 %v287
      %v339 = vunpack.c.l.b16 %v288
      %v340 = vunpack.c.l.b16 %v289
      %v341 = vunpack.c.l.b16 %v290
      %v342 = vunpack.c.l.b16 %v291
      %v343 = vunpack.c.l.b16 %v292
      %v344 = vunpack.c.l.b16 %v293
      %v345 = vunpack.c.l.b16 %v294
      %v346 = vunpack.c.l.b16 %v295
      %v347 = vunpack.c.l.b16 %v296
      %v348 = vunpack.c.l.b16 %v297
      %v349 = vpack.c.b16 %v334, %v333
      %v350 = vpack.c.b16 %v336, %v335
      %v351 = vpack.c.b16 %v338, %v337
      %v352 = vpack.c.b16 %v340, %v339
      %v353 = vpack.c.b16 %v342, %v341
      %v354 = vpack.c.b16 %v344, %v343
      %v355 = vpack.c.b16 %v346, %v345
      %v356 = vpack.c.b16 %v348, %v347
      %365 = vmatprep.subr.bf16.mxu0 0
      %366 = vmatpush1.bf16.msra.mxu0 %v356
      %367 = vmatprep.subr.bf16.mxu0 0
      %368 = vmatpush1.bf16.msra.mxu0 %v355
      %369 = vmatprep.subr.bf16.mxu0 0
      %370 = vmatpush1.bf16.msra.mxu0 %v354
      %371 = vmatprep.subr.bf16.mxu0 0
      %372 = vmatpush1.bf16.msra.mxu0 %v353
      %373 = vmatprep.subr.bf16.mxu0 0
      %374 = vmatpush1.bf16.msra.mxu0 %v352
      %375 = vmatprep.subr.bf16.mxu0 0
      %376 = vmatpush1.bf16.msra.mxu0 %v351
      %377 = vmatprep.subr.bf16.mxu0 0
      %378 = vmatpush1.bf16.msra.mxu0 %v350
      %379 = vmatprep.subr.bf16.mxu0 0
      %380 = vmatpush1.bf16.msra.mxu0 %v349
      %381 = vmatprep.subr.bf16.mxu0 0
      %382 = vmatpush2.bf16.msra.mxu0 0
      %383 = vmatprep.subr.bf16.mxu0 0
      %384 = vmatpush2.bf16.msra.mxu0 0
      %385 = vmatprep.subr.bf16.mxu0 0
      %386 = vmatpush2.bf16.msra.mxu0 0
      %387 = vmatprep.subr.bf16.mxu0 0
      %388 = vmatpush2.bf16.msra.mxu0 0
      %389 = vmatprep.subr.bf16.mxu0 0
      %390 = vmatpush2.bf16.msra.mxu0 0
      %391 = vmatprep.subr.bf16.mxu0 0
      %392 = vmatpush2.bf16.msra.mxu0 0
      %393 = vmatprep.subr.bf16.mxu0 0
      %394 = vmatpush2.bf16.msra.mxu0 0
      %395 = vmatprep.subr.bf16.mxu0 0
      %396 = vmatpush2.bf16.msra.mxu0 0
      %397 = vmatprep.mubr.bf16.mxu0 0
      %398 = vmatmul.mubr.bf16.gmra.mxu0 %v314
      %v399 = vpop.f32.mrf.mxu0
      %v400 = vadd.f32 0.0, %v399
      %v401 = vpop.f32.mrf.mxu0
      %v402 = vpop.f32.mrf.mxu0
      %v403 = vpop.f32.mrf.mxu0
      %404 = vdwg.mxu0
      %v421 = vunpack.c.l.b16 %v265
      %v422 = vunpack.c.l.b16 %v266
      %v423 = vunpack.c.l.b16 %v267
      %v424 = vunpack.c.l.b16 %v268
      %v425 = vunpack.c.l.b16 %v269
      %v426 = vunpack.c.l.b16 %v270
      %v427 = vunpack.c.l.b16 %v271
      %v428 = vunpack.c.l.b16 %v272
      %v429 = vunpack.c.l.b16 %v273
      %v430 = vunpack.c.l.b16 %v274
      %v431 = vunpack.c.l.b16 %v275
      %v432 = vunpack.c.l.b16 %v276
      %v433 = vunpack.c.l.b16 %v277
      %v434 = vunpack.c.l.b16 %v278
      %v435 = vunpack.c.l.b16 %v279
      %v436 = vunpack.c.l.b16 %v280
      %v437 = vpack.c.b16 %v422, %v421
      %v438 = vpack.c.b16 %v424, %v423
      %v439 = vpack.c.b16 %v426, %v425
      %v440 = vpack.c.b16 %v428, %v427
      %v441 = vpack.c.b16 %v430, %v429
      %v442 = vpack.c.b16 %v432, %v431
      %v443 = vpack.c.b16 %v434, %v433
      %v444 = vpack.c.b16 %v436, %v435
      %453 = vmatprep.subr.bf16.mxu0 0
      %454 = vmatpush1.bf16.msra.mxu0 %v444
      %455 = vmatprep.subr.bf16.mxu0 0
      %456 = vmatpush1.bf16.msra.mxu0 %v443
      %457 = vmatprep.subr.bf16.mxu0 0
      %458 = vmatpush1.bf16.msra.mxu0 %v442
      %459 = vmatprep.subr.bf16.mxu0 0
      %460 = vmatpush1.bf16.msra.mxu0 %v441
      %461 = vmatprep.subr.bf16.mxu0 0
      %462 = vmatpush1.bf16.msra.mxu0 %v440
      %463 = vmatprep.subr.bf16.mxu0 0
      %464 = vmatpush1.bf16.msra.mxu0 %v439
      %465 = vmatprep.subr.bf16.mxu0 0
      %466 = vmatpush1.bf16.msra.mxu0 %v438
      %467 = vmatprep.subr.bf16.mxu0 0
      %468 = vmatpush1.bf16.msra.mxu0 %v437
      %469 = vmatprep.subr.bf16.mxu0 0
      %470 = vmatpush2.bf16.msra.mxu0 0
      %471 = vmatprep.subr.bf16.mxu0 0
      %472 = vmatpush2.bf16.msra.mxu0 0
      %473 = vmatprep.subr.bf16.mxu0 0
      %474 = vmatpush2.bf16.msra.mxu0 0
      %475 = vmatprep.subr.bf16.mxu0 0
      %476 = vmatpush2.bf16.msra.mxu0 0
      %477 = vmatprep.subr.bf16.mxu0 0
      %478 = vmatpush2.bf16.msra.mxu0 0
      %479 = vmatprep.subr.bf16.mxu0 0
      %480 = vmatpush2.bf16.msra.mxu0 0
      %481 = vmatprep.subr.bf16.mxu0 0
      %482 = vmatpush2.bf16.msra.mxu0 0
      %483 = vmatprep.subr.bf16.mxu0 0
      %484 = vmatpush2.bf16.msra.mxu0 0
      %485 = vmatprep.mubr.bf16.mxu0 0
      %486 = vmatmul.mubr.bf16.gmra.mxu0 %v264
      %v487 = vpop.f32.mrf.mxu0
      %v488 = vadd.f32 %v400, %v487
      %v489 = vpop.f32.mrf.mxu0
      %v490 = vpop.f32.mrf.mxu0
      %v491 = vpop.f32.mrf.mxu0
      %492 = vdwg.mxu0
      %s493 = scalar_lea.vmem %s246, 1
      %v494 = vld [vmem:[%s493] sm:$0x1]
      %s495 = scalar_lea.vmem %s2, 128
      %v496 = vld [vmem:[%s495] sm:$0xf]
      %v497 = vld [vmem:[%s495 + $0x4] sm:$0xf]
      %v498 = vld [vmem:[%s495 + $0x8] sm:$0xf]
      %v499 = vld [vmem:[%s495 + $0xc] sm:$0xf]
      %v500 = vld [vmem:[%s495 + $0x10] sm:$0xf]
      %v501 = vld [vmem:[%s495 + $0x14] sm:$0xf]
      %v502 = vld [vmem:[%s495 + $0x18] sm:$0xf]
      %v503 = vld [vmem:[%s495 + $0x1c] sm:$0xf]
      %v504 = vld [vmem:[%s495 + $0x20] sm:$0xf]
      %v505 = vld [vmem:[%s495 + $0x24] sm:$0xf]
      %v506 = vld [vmem:[%s495 + $0x28] sm:$0xf]
      %v507 = vld [vmem:[%s495 + $0x2c] sm:$0xf]
      %v508 = vld [vmem:[%s495 + $0x30] sm:$0xf]
      %v509 = vld [vmem:[%s495 + $0x34] sm:$0xf]
      %v510 = vld [vmem:[%s495 + $0x38] sm:$0xf]
      %v511 = vld [vmem:[%s495 + $0x3c] sm:$0xf]
      %v528 = vunpack.c.l.b16 %v496
      %v529 = vunpack.c.l.b16 %v497
      %v530 = vunpack.c.l.b16 %v498
      %v531 = vunpack.c.l.b16 %v499
      %v532 = vunpack.c.l.b16 %v500
      %v533 = vunpack.c.l.b16 %v501
      %v534 = vunpack.c.l.b16 %v502
      %v535 = vunpack.c.l.b16 %v503
      %v536 = vunpack.c.l.b16 %v504
      %v537 = vunpack.c.l.b16 %v505
      %v538 = vunpack.c.l.b16 %v506
      %v539 = vunpack.c.l.b16 %v507
      %v540 = vunpack.c.l.b16 %v508
      %v541 = vunpack.c.l.b16 %v509
      %v542 = vunpack.c.l.b16 %v510
      %v543 = vunpack.c.l.b16 %v511
      %v544 = vpack.c.b16 %v529, %v528
      %v545 = vpack.c.b16 %v531, %v530
      %v546 = vpack.c.b16 %v533, %v532
      %v547 = vpack.c.b16 %v535, %v534
      %v548 = vpack.c.b16 %v537, %v536
      %v549 = vpack.c.b16 %v539, %v538
      %v550 = vpack.c.b16 %v541, %v540
      %v551 = vpack.c.b16 %v543, %v542
      %560 = vmatprep.subr.bf16.mxu0 0
      %561 = vmatpush1.bf16.msra.mxu0 %v551
      %562 = vmatprep.subr.bf16.mxu0 0
      %563 = vmatpush1.bf16.msra.mxu0 %v550
      %564 = vmatprep.subr.bf16.mxu0 0
      %565 = vmatpush1.bf16.msra.mxu0 %v549
      %566 = vmatprep.subr.bf16.mxu0 0
      %567 = vmatpush1.bf16.msra.mxu0 %v548
      %568 = vmatprep.subr.bf16.mxu0 0
      %569 = vmatpush1.bf16.msra.mxu0 %v547
      %570 = vmatprep.subr.bf16.mxu0 0
      %571 = vmatpush1.bf16.msra.mxu0 %v546
      %572 = vmatprep.subr.bf16.mxu0 0
      %573 = vmatpush1.bf16.msra.mxu0 %v545
      %574 = vmatprep.subr.bf16.mxu0 0
      %575 = vmatpush1.bf16.msra.mxu0 %v544
      %576 = vmatprep.subr.bf16.mxu0 0
      %577 = vmatpush2.bf16.msra.mxu0 0
      %578 = vmatprep.subr.bf16.mxu0 0
      %579 = vmatpush2.bf16.msra.mxu0 0
      %580 = vmatprep.subr.bf16.mxu0 0
      %581 = vmatpush2.bf16.msra.mxu0 0
      %582 = vmatprep.subr.bf16.mxu0 0
      %583 = vmatpush2.bf16.msra.mxu0 0
      %584 = vmatprep.subr.bf16.mxu0 0
      %585 = vmatpush2.bf16.msra.mxu0 0
      %586 = vmatprep.subr.bf16.mxu0 0
      %587 = vmatpush2.bf16.msra.mxu0 0
      %588 = vmatprep.subr.bf16.mxu0 0
      %589 = vmatpush2.bf16.msra.mxu0 0
      %590 = vmatprep.subr.bf16.mxu0 0
      %591 = vmatpush2.bf16.msra.mxu0 0
      %592 = vmatprep.mubr.bf16.mxu0 0
      %593 = vmatmul.mubr.bf16.gmra.mxu0 %v494
      %v594 = vpop.f32.mrf.mxu0
      %v595 = vadd.f32 0.0, %v594
      %v596 = vpop.f32.mrf.mxu0
      %v597 = vpop.f32.mrf.mxu0
      %v598 = vpop.f32.mrf.mxu0
      %599 = vdwg.mxu0
      %v600 = vadd.f32 %v488, %v595
      %s601 = scalar_lea.vmem %s2, 192
      %v602 = vld [vmem:[%s601] sm:$0xf]
      %v603 = vld [vmem:[%s601 + $0x4] sm:$0xf]
      %v604 = vld [vmem:[%s601 + $0x8] sm:$0xf]
      %v605 = vld [vmem:[%s601 + $0xc] sm:$0xf]
      %v606 = vld [vmem:[%s601 + $0x10] sm:$0xf]
      %v607 = vld [vmem:[%s601 + $0x14] sm:$0xf]
      %v608 = vld [vmem:[%s601 + $0x18] sm:$0xf]
      %v609 = vld [vmem:[%s601 + $0x1c] sm:$0xf]
      %v610 = vld [vmem:[%s601 + $0x20] sm:$0xf]
      %v611 = vld [vmem:[%s601 + $0x24] sm:$0xf]
      %v612 = vld [vmem:[%s601 + $0x28] sm:$0xf]
      %v613 = vld [vmem:[%s601 + $0x2c] sm:$0xf]
      %v614 = vld [vmem:[%s601 + $0x30] sm:$0xf]
      %v615 = vld [vmem:[%s601 + $0x34] sm:$0xf]
      %v616 = vld [vmem:[%s601 + $0x38] sm:$0xf]
      %v617 = vld [vmem:[%s601 + $0x3c] sm:$0xf]
      %v620 = vunpack.c.l.s4 1966171168
      %v621 = vunpack.c.0.s8 %v620
      %v622 = vlaneseq
      %v623 = vshrl.u32 %v622, 7
      %v624 = vsub.s32 %v621, %v623
      %v625 = vrot.slane %v494, %v624
      %v627 = vunpack.c.l.s4 1966171168
      %v628 = vunpack.c.0.s8 %v627
      %v629 = vlaneseq
      %v630 = vshrl.u32 %v629, 7
      %v631 = vsub.s32 %v628, %v630
      %v632 = vrot.slane %v625, %v631
      %v634 = vshrl.u32 %v632, 16
      %v653 = vunpack.c.l.b16 %v602
      %v654 = vunpack.c.l.b16 %v603
      %v655 = vunpack.c.l.b16 %v604
      %v656 = vunpack.c.l.b16 %v605
      %v657 = vunpack.c.l.b16 %v606
      %v658 = vunpack.c.l.b16 %v607
      %v659 = vunpack.c.l.b16 %v608
      %v660 = vunpack.c.l.b16 %v609
      %v661 = vunpack.c.l.b16 %v610
      %v662 = vunpack.c.l.b16 %v611
      %v663 = vunpack.c.l.b16 %v612
      %v664 = vunpack.c.l.b16 %v613
      %v665 = vunpack.c.l.b16 %v614
      %v666 = vunpack.c.l.b16 %v615
      %v667 = vunpack.c.l.b16 %v616
      %v668 = vunpack.c.l.b16 %v617
      %v669 = vpack.c.b16 %v654, %v653
      %v670 = vpack.c.b16 %v656, %v655
      %v671 = vpack.c.b16 %v658, %v657
      %v672 = vpack.c.b16 %v660, %v659
      %v673 = vpack.c.b16 %v662, %v661
      %v674 = vpack.c.b16 %v664, %v663
      %v675 = vpack.c.b16 %v666, %v665
      %v676 = vpack.c.b16 %v668, %v667
      %685 = vmatprep.subr.bf16.mxu0 0
      %686 = vmatpush1.bf16.msra.mxu0 %v676
      %687 = vmatprep.subr.bf16.mxu0 0
      %688 = vmatpush1.bf16.msra.mxu0 %v675
      %689 = vmatprep.subr.bf16.mxu0 0
      %690 = vmatpush1.bf16.msra.mxu0 %v674
      %691 = vmatprep.subr.bf16.mxu0 0
      %692 = vmatpush1.bf16.msra.mxu0 %v673
      %693 = vmatprep.subr.bf16.mxu0 0
      %694 = vmatpush1.bf16.msra.mxu0 %v672
      %695 = vmatprep.subr.bf16.mxu0 0
      %696 = vmatpush1.bf16.msra.mxu0 %v671
      %697 = vmatprep.subr.bf16.mxu0 0
      %698 = vmatpush1.bf16.msra.mxu0 %v670
      %699 = vmatprep.subr.bf16.mxu0 0
      %700 = vmatpush1.bf16.msra.mxu0 %v669
      %701 = vmatprep.subr.bf16.mxu0 0
      %702 = vmatpush2.bf16.msra.mxu0 0
      %703 = vmatprep.subr.bf16.mxu0 0
      %704 = vmatpush2.bf16.msra.mxu0 0
      %705 = vmatprep.subr.bf16.mxu0 0
      %706 = vmatpush2.bf16.msra.mxu0 0
      %707 = vmatprep.subr.bf16.mxu0 0
      %708 = vmatpush2.bf16.msra.mxu0 0
      %709 = vmatprep.subr.bf16.mxu0 0
      %710 = vmatpush2.bf16.msra.mxu0 0
      %711 = vmatprep.subr.bf16.mxu0 0
      %712 = vmatpush2.bf16.msra.mxu0 0
      %713 = vmatprep.subr.bf16.mxu0 0
      %714 = vmatpush2.bf16.msra.mxu0 0
      %715 = vmatprep.subr.bf16.mxu0 0
      %716 = vmatpush2.bf16.msra.mxu0 0
      %717 = vmatprep.mubr.bf16.mxu0 0
      %718 = vmatmul.mubr.bf16.gmra.mxu0 %v634
      %v719 = vpop.f32.mrf.mxu0
      %v720 = vadd.f32 0.0, %v719
      %v721 = vpop.f32.mrf.mxu0
      %v722 = vpop.f32.mrf.mxu0
      %v723 = vpop.f32.mrf.mxu0
      %724 = vdwg.mxu0
      %v725 = vadd.f32 %v600, %v720
      %v726 = vld [vmem:[%s255] sm:$0x1]
      %s727 = scalar_lea.vmem %s2, 256
      %v728 = vld [vmem:[%s727] sm:$0xf]
      %v729 = vld [vmem:[%s727 + $0x4] sm:$0xf]
      %v730 = vld [vmem:[%s727 + $0x8] sm:$0xf]
      %v731 = vld [vmem:[%s727 + $0xc] sm:$0xf]
      %v732 = vld [vmem:[%s727 + $0x10] sm:$0xf]
      %v733 = vld [vmem:[%s727 + $0x14] sm:$0xf]
      %v734 = vld [vmem:[%s727 + $0x18] sm:$0xf]
      %v735 = vld [vmem:[%s727 + $0x1c] sm:$0xf]
      %v736 = vld [vmem:[%s727 + $0x20] sm:$0xf]
      %v737 = vld [vmem:[%s727 + $0x24] sm:$0xf]
      %v738 = vld [vmem:[%s727 + $0x28] sm:$0xf]
      %v739 = vld [vmem:[%s727 + $0x2c] sm:$0xf]
      %v740 = vld [vmem:[%s727 + $0x30] sm:$0xf]
      %v741 = vld [vmem:[%s727 + $0x34] sm:$0xf]
      %v742 = vld [vmem:[%s727 + $0x38] sm:$0xf]
      %v743 = vld [vmem:[%s727 + $0x3c] sm:$0xf]
      %v760 = vunpack.c.l.b16 %v728
      %v761 = vunpack.c.l.b16 %v729
      %v762 = vunpack.c.l.b16 %v730
      %v763 = vunpack.c.l.b16 %v731
      %v764 = vunpack.c.l.b16 %v732
      %v765 = vunpack.c.l.b16 %v733
      %v766 = vunpack.c.l.b16 %v734
      %v767 = vunpack.c.l.b16 %v735
      %v768 = vunpack.c.l.b16 %v736
      %v769 = vunpack.c.l.b16 %v737
      %v770 = vunpack.c.l.b16 %v738
      %v771 = vunpack.c.l.b16 %v739
      %v772 = vunpack.c.l.b16 %v740
      %v773 = vunpack.c.l.b16 %v741
      %v774 = vunpack.c.l.b16 %v742
      %v775 = vunpack.c.l.b16 %v743
      %v776 = vpack.c.b16 %v761, %v760
      %v777 = vpack.c.b16 %v763, %v762
      %v778 = vpack.c.b16 %v765, %v764
      %v779 = vpack.c.b16 %v767, %v766
      %v780 = vpack.c.b16 %v769, %v768
      %v781 = vpack.c.b16 %v771, %v770
      %v782 = vpack.c.b16 %v773, %v772
      %v783 = vpack.c.b16 %v775, %v774
      %792 = vmatprep.subr.bf16.mxu0 0
      %793 = vmatpush1.bf16.msra.mxu0 %v783
      %794 = vmatprep.subr.bf16.mxu0 0
      %795 = vmatpush1.bf16.msra.mxu0 %v782
      %796 = vmatprep.subr.bf16.mxu0 0
      %797 = vmatpush1.bf16.msra.mxu0 %v781
      %798 = vmatprep.subr.bf16.mxu0 0
      %799 = vmatpush1.bf16.msra.mxu0 %v780
      %800 = vmatprep.subr.bf16.mxu0 0
      %801 = vmatpush1.bf16.msra.mxu0 %v779
      %802 = vmatprep.subr.bf16.mxu0 0
      %803 = vmatpush1.bf16.msra.mxu0 %v778
      %804 = vmatprep.subr.bf16.mxu0 0
      %805 = vmatpush1.bf16.msra.mxu0 %v777
      %806 = vmatprep.subr.bf16.mxu0 0
      %807 = vmatpush1.bf16.msra.mxu0 %v776
      %808 = vmatprep.subr.bf16.mxu0 0
      %809 = vmatpush2.bf16.msra.mxu0 0
      %810 = vmatprep.subr.bf16.mxu0 0
      %811 = vmatpush2.bf16.msra.mxu0 0
      %812 = vmatprep.subr.bf16.mxu0 0
      %813 = vmatpush2.bf16.msra.mxu0 0
      %814 = vmatprep.subr.bf16.mxu0 0
      %815 = vmatpush2.bf16.msra.mxu0 0
      %816 = vmatprep.subr.bf16.mxu0 0
      %817 = vmatpush2.bf16.msra.mxu0 0
      %818 = vmatprep.subr.bf16.mxu0 0
      %819 = vmatpush2.bf16.msra.mxu0 0
      %820 = vmatprep.subr.bf16.mxu0 0
      %821 = vmatpush2.bf16.msra.mxu0 0
      %822 = vmatprep.subr.bf16.mxu0 0
      %823 = vmatpush2.bf16.msra.mxu0 0
      %824 = vmatprep.mubr.bf16.mxu0 0
      %825 = vmatmul.mubr.bf16.gmra.mxu0 %v726
      %v826 = vpop.f32.mrf.mxu0
      %v827 = vadd.f32 0.0, %v826
      %v828 = vpop.f32.mrf.mxu0
      %v829 = vpop.f32.mrf.mxu0
      %v830 = vpop.f32.mrf.mxu0
      %831 = vdwg.mxu0
      %v832 = vadd.f32 %v725, %v827
      %s833 = scalar_lea.vmem %s2, 320
      %v834 = vld [vmem:[%s833] sm:$0xf]
      %v835 = vld [vmem:[%s833 + $0x4] sm:$0xf]
      %v836 = vld [vmem:[%s833 + $0x8] sm:$0xf]
      %v837 = vld [vmem:[%s833 + $0xc] sm:$0xf]
      %v838 = vld [vmem:[%s833 + $0x10] sm:$0xf]
      %v839 = vld [vmem:[%s833 + $0x14] sm:$0xf]
      %v840 = vld [vmem:[%s833 + $0x18] sm:$0xf]
      %v841 = vld [vmem:[%s833 + $0x1c] sm:$0xf]
      %v842 = vld [vmem:[%s833 + $0x20] sm:$0xf]
      %v843 = vld [vmem:[%s833 + $0x24] sm:$0xf]
      %v844 = vld [vmem:[%s833 + $0x28] sm:$0xf]
      %v845 = vld [vmem:[%s833 + $0x2c] sm:$0xf]
      %v846 = vld [vmem:[%s833 + $0x30] sm:$0xf]
      %v847 = vld [vmem:[%s833 + $0x34] sm:$0xf]
      %v848 = vld [vmem:[%s833 + $0x38] sm:$0xf]
      %v849 = vld [vmem:[%s833 + $0x3c] sm:$0xf]
      %v852 = vunpack.c.l.s4 1966171168
      %v853 = vunpack.c.0.s8 %v852
      %v854 = vlaneseq
      %v855 = vshrl.u32 %v854, 7
      %v856 = vsub.s32 %v853, %v855
      %v857 = vrot.slane %v726, %v856
      %v859 = vunpack.c.l.s4 1966171168
      %v860 = vunpack.c.0.s8 %v859
      %v861 = vlaneseq
      %v862 = vshrl.u32 %v861, 7
      %v863 = vsub.s32 %v860, %v862
      %v864 = vrot.slane %v857, %v863
      %v866 = vshrl.u32 %v864, 16
      %v885 = vunpack.c.l.b16 %v834
      %v886 = vunpack.c.l.b16 %v835
      %v887 = vunpack.c.l.b16 %v836
      %v888 = vunpack.c.l.b16 %v837
      %v889 = vunpack.c.l.b16 %v838
      %v890 = vunpack.c.l.b16 %v839
      %v891 = vunpack.c.l.b16 %v840
      %v892 = vunpack.c.l.b16 %v841
      %v893 = vunpack.c.l.b16 %v842
      %v894 = vunpack.c.l.b16 %v843
      %v895 = vunpack.c.l.b16 %v844
      %v896 = vunpack.c.l.b16 %v845
      %v897 = vunpack.c.l.b16 %v846
      %v898 = vunpack.c.l.b16 %v847
      %v899 = vunpack.c.l.b16 %v848
      %v900 = vunpack.c.l.b16 %v849
      %v901 = vpack.c.b16 %v886, %v885
      %v902 = vpack.c.b16 %v888, %v887
      %v903 = vpack.c.b16 %v890, %v889
      %v904 = vpack.c.b16 %v892, %v891
      %v905 = vpack.c.b16 %v894, %v893
      %v906 = vpack.c.b16 %v896, %v895
      %v907 = vpack.c.b16 %v898, %v897
      %v908 = vpack.c.b16 %v900, %v899
      %917 = vmatprep.subr.bf16.mxu0 0
      %918 = vmatpush1.bf16.msra.mxu0 %v908
      %919 = vmatprep.subr.bf16.mxu0 0
      %920 = vmatpush1.bf16.msra.mxu0 %v907
      %921 = vmatprep.subr.bf16.mxu0 0
      %922 = vmatpush1.bf16.msra.mxu0 %v906
      %923 = vmatprep.subr.bf16.mxu0 0
      %924 = vmatpush1.bf16.msra.mxu0 %v905
      %925 = vmatprep.subr.bf16.mxu0 0
      %926 = vmatpush1.bf16.msra.mxu0 %v904
      %927 = vmatprep.subr.bf16.mxu0 0
      %928 = vmatpush1.bf16.msra.mxu0 %v903
      %929 = vmatprep.subr.bf16.mxu0 0
      %930 = vmatpush1.bf16.msra.mxu0 %v902
      %931 = vmatprep.subr.bf16.mxu0 0
      %932 = vmatpush1.bf16.msra.mxu0 %v901
      %933 = vmatprep.subr.bf16.mxu0 0
      %934 = vmatpush2.bf16.msra.mxu0 0
      %935 = vmatprep.subr.bf16.mxu0 0
      %936 = vmatpush2.bf16.msra.mxu0 0
      %937 = vmatprep.subr.bf16.mxu0 0
      %938 = vmatpush2.bf16.msra.mxu0 0
      %939 = vmatprep.subr.bf16.mxu0 0
      %940 = vmatpush2.bf16.msra.mxu0 0
      %941 = vmatprep.subr.bf16.mxu0 0
      %942 = vmatpush2.bf16.msra.mxu0 0
      %943 = vmatprep.subr.bf16.mxu0 0
      %944 = vmatpush2.bf16.msra.mxu0 0
      %945 = vmatprep.subr.bf16.mxu0 0
      %946 = vmatpush2.bf16.msra.mxu0 0
      %947 = vmatprep.subr.bf16.mxu0 0
      %948 = vmatpush2.bf16.msra.mxu0 0
      %949 = vmatprep.mubr.bf16.mxu0 0
      %950 = vmatmul.mubr.bf16.gmra.mxu0 %v866
      %v951 = vpop.f32.mrf.mxu0
      %v952 = vadd.f32 0.0, %v951
      %v953 = vpop.f32.mrf.mxu0
      %v954 = vpop.f32.mrf.mxu0
      %v955 = vpop.f32.mrf.mxu0
      %956 = vdwg.mxu0
      %v957 = vadd.f32 %v832, %v952
      %v958 = vld [vmem:[%s3] sm:$0x1]
      %v959 = vadd.f32 %v957, %v958
      %v960 = vmax.f32 %v959, 0.0
      %v961 = vpack.c.bf16 %v960, %v960
      %vm962 = vcmask 516096
      %vm963 = vsmask.f32 256
      %vm964 = vmand %vm962, %vm963
      %v965 = vld [vmem:[%s262] sm:$0x1]
      %v966 = vsel %vm964, %v961, %v965
      %967 = vst [vmem:[%s262] sm:$0x1] %v966
      %p968 = scmp.lt.s32.totalorder %s19, 1
      %s969 = scalar_select %p968, %s19, 1
      %p970 = scmp.lt.s32.totalorder %s20, 0
      %s971 = scalar_select %p970, %s20, 0
      %s972 = sadd.s32 %s971, %s969
      %s973 = scalar_lea.vmem %s4, %s972
      // Predicated region
      $region37: #{timm_universal_encoder_forward.9} parent=35 // pred_check
        %p974 = pneg %p147
      $region38: #{timm_universal_encoder_forward.9} parent=35 // pred_check_branch
        %976 = sbr.rel (%p974) target = $region40
      $region39: #{timm_universal_encoder_forward.9} parent=35 // pred_region
        _
      $region40: #{timm_universal_encoder_forward.9} parent=35 // pred_fallthru
        _
    $region36: #{timm_universal_encoder_forward.9} parent=5 // pred_fallthru
      _
    %p977 = scmp.le.s32.totalorder 2, %s10
    // Predicated region
    $region41: #{timm_universal_encoder_forward.9} parent=5 // pred_check
      %p978 = pneg %p977
    $region42: #{timm_universal_encoder_forward.9} parent=5 // pred_check_branch
      %980 = sbr.rel (%p978) target = $region44
    $region43: #{timm_universal_encoder_forward.9} parent=5 // pred_region
      %s981 = ssub.s32 %s10, 2
      // Predicated region
      $region45: #{timm_universal_encoder_forward.9} parent=43 // pred_check
        %p982 = pneg %p153
      $region46: #{timm_universal_encoder_forward.9} parent=43 // pred_check_branch
        %984 = sbr.rel (%p982) target = $region48
      $region47: #{timm_universal_encoder_forward.9} parent=43 // pred_region
        %p985 = scmp.lt.s32.totalorder %s21, 1
        %s986 = scalar_select %p985, %s21, 1
        %p987 = scmp.lt.s32.totalorder %s22, 0
        %s988 = scalar_select %p987, %s22, 0
        %s989 = sadd.s32 %s988, %s986
        %s990 = scalar_lea.vmem %s4, %s989
      $region48: #{timm_universal_encoder_forward.9} parent=43 // pred_fallthru
        _
    $region44: #{timm_universal_encoder_forward.9} parent=5 // pred_fallthru
      _
  $region6: #{timm_universal_encoder_forward.9} parent=0 // loop_footer
    %s14 = sadd.s32 1, %s10
  $region7: #{timm_universal_encoder_forward.9} parent=0 // loop_footer_branch
    %9 = sbr.rel target = $region3
  $region8: #{timm_universal_encoder_forward.9} parent=0 // loop_exit
    _

</llo_original>
